<compile_context>
chip_gen: v5e
topology: v5e:2x2
jax: 0.10.0
libtpu: 0.0.40
codegen_flags: <defaults>
</compile_context>

<pallas_src>
import numpy as np
import jax
import jax.numpy as jnp
from jax import lax
from jax.experimental import pallas as pl
from jax.experimental.pallas import tpu as pltpu

_TBC = 8  # samples per conv-stage grid step (inner per-sample fori_loop)


def _round_up(a, b):
    return -(-a // b) * b


# --------------------------------------------------------------------------- #
# Flattened-spatial geometry (per sample):
#   input  : 28x28 -> zero-pad -> 31x30 -> flat 930   (1 channel)
#   conv1  : 29x30 map (col 29 is junk) -> (16, 870)
#   avgpool + pad : 17x16 map           -> (16, 272)
#   conv2  : 15x16 map (col 15 is junk) -> (32, 240)
#   maxpool: dense 4-tap max (32, 223), stride-2 subsample -> (32, 49)
#   flatten: torch (C,H,W) order == row-major (32,49) -> (1568) -> fc stack
# --------------------------------------------------------------------------- #

def _pool_selection_matrices():
    # AvgPool2d(2,2) of the 29x29 conv1 map + zero-pad(1) for conv2, as one
    # (870 -> 272) selection matrix with weights 0.25 (exact in bf16).
    s1 = np.zeros((870, 272), np.float32)
    for p in range(14):
        for q in range(14):
            u = (p + 1) * 16 + (q + 1)
            for dh in range(2):
                for dw in range(2):
                    s1[(2 * p + dh) * 30 + (2 * q + dw), u] = 0.25
    # Stride-2 subsample of the dense max map (223 -> 49), 0/1 selection.
    s2 = np.zeros((223, 49), np.float32)
    for p in range(7):
        for q in range(7):
            s2[32 * p + 2 * q, 7 * p + q] = 1.0
    return jnp.asarray(s1, dtype=jnp.bfloat16), jnp.asarray(s2)


# ---------------------------- conv-stage kernel ----------------------------- #

def _conv_kernel(x_ref, w1_ref, b1_ref, s1_ref, w2_ref, b2_ref, s2_ref,
                 out_ref):
    f32 = jnp.float32
    tb = x_ref.shape[0]

    def sample_body(t, carry):
        # ---- conv1 (1->16, k=2, s=1, p=1) + BN1 + ReLU : 4 VPU FMAs ----------
        x = x_ref[pl.ds(t, 1), :]                     # (1, 930) padded 31x30
        w1 = w1_ref[...]                              # (16, 4) BN folded
        acc1 = (w1[:, 0:1] * x[:, 0:870]              # tap (0,0)
                + w1[:, 1:2] * x[:, 1:871]            #     (0,1)
                + w1[:, 2:3] * x[:, 30:900]           #     (1,0)
                + w1[:, 3:4] * x[:, 31:901])          #     (1,1)
        c1 = jnp.maximum(acc1 + b1_ref[...], 0.0)     # (16, 870) = 29x30 map

        # ---- AvgPool2d(2,2) + re-pad as one bf16 selection matmul ------------
        a2 = jnp.dot(c1.astype(jnp.bfloat16), s1_ref[...],
                     preferred_element_type=f32)      # (16, 272) = 17x16 map

        # ---- conv2 (16->32, k=2, s=1, p=1) + BN2 + ReLU : ONE fused matmul ---
        a2cat = jnp.concatenate(
            [a2[:, 0:240], a2[:, 1:241], a2[:, 16:256], a2[:, 17:257]],
            axis=0)                                   # (64, 240), tap-stacked
        acc2 = jnp.dot(w2_ref[...], a2cat, preferred_element_type=f32)
        c2 = jnp.maximum(acc2 + b2_ref[...], 0.0)     # (32, 240) = 15x16 map

        # ---- MaxPool2d(2,2): dense 4-tap max, stride-2 subsample on MXU ------
        m = jnp.maximum(jnp.maximum(c2[:, 0:223], c2[:, 1:224]),
                        jnp.maximum(c2[:, 16:239], c2[:, 17:240]))  # (32, 223)
        pooled = jnp.dot(m, s2_ref[...], preferred_element_type=f32)  # (32, 49)

        # One clean (32,49) tile store per sample (torch (C,H,W) flatten order
        # after the host-side row-major reshape to 1568).
        out_ref[pl.ds(t, 1), :, :] = pooled[None].astype(out_ref.dtype)
        return carry

    lax.fori_loop(0, tb, sample_body, 0)


# ------------------------------ FC-head kernel ------------------------------ #

def _fc_kernel(f_ref, fw1_ref, fb1_ref, fw2_ref, fb2_ref, fw3_ref, fb3_ref,
               out_ref):
    f32 = jnp.float32
    # TODO(synk): self.global_avg_pool is undefined in the reference __init__;
    # treated as identity so the flatten size matches fc1's 32*7*7 input.
    # TODO(synk): Dropout(p=0.05) layers are identity (inference mode).
    f = f_ref[...]                                                   # (TB,1568) bf16
    h1 = jnp.dot(f, fw1_ref[...], preferred_element_type=f32) + fb1_ref[...]
    h1 = jnp.maximum(h1, 0.0)                                        # (TB, 256)
    h2 = jnp.dot(h1.astype(jnp.bfloat16), fw2_ref[...],
                 preferred_element_type=f32) + fb2_ref[...]
    h2 = jnp.maximum(h2, 0.0)                                        # (TB, 128)
    z = jnp.dot(h2.astype(jnp.bfloat16), fw3_ref[...],
                preferred_element_type=f32) + fb3_ref[...]           # (TB, 2)
    z = z - jnp.max(z, axis=1, keepdims=True)
    e = jnp.exp(z)
    out_ref[...] = e / jnp.sum(e, axis=1, keepdims=True)


# ------------------------------ host wrapper -------------------------------- #

def _fixed(shape):
    # Whole-array block with constant index_map -> stays VMEM-resident across
    # grid steps (no per-step weight re-DMA).
    return pl.BlockSpec(shape, lambda i: (0,) * len(shape))


@jax.jit
def deep_cnn_forward(x_nchw, p):
    n = x_nchw.shape[0]
    x = x_nchw.reshape(n, 28, 28).astype(jnp.float32)
    # Pad 1 top / 2 bottom / 1 each side -> 31x30, flatten row-major so every
    # 2x2 conv tap is a pure lane offset (the extra bottom row only keeps the
    # last tap slice in-bounds and never reaches a valid output).
    xflat = jnp.pad(x, ((0, 0), (1, 2), (1, 1))).reshape(n, 930)

    tbf = 128
    n_pad = _round_up(n, _TBC)
    if n_pad >= tbf:
        n_pad = _round_up(n_pad, tbf)
    else:
        tbf = n_pad
    if n_pad != n:
        xflat = jnp.concatenate(
            [xflat, jnp.zeros((n_pad - n, 930), jnp.float32)], axis=0)

    # ---------- stage 1: conv / pool feature extractor (batch-blocked) -------
    conv_grid = pltpu.PrefetchScalarGridSpec(
        num_scalar_prefetch=0,
        grid=(n_pad // _TBC,),
        in_specs=[
            pl.BlockSpec((_TBC, 930), lambda i: (i, 0)),  # per-block input
            _fixed((16, 4)),       # conv1 weight (BN folded), tap-minor
            _fixed((16, 1)),       # conv1/bn1 bias
            _fixed((870, 272)),    # avg-pool + re-pad selection (bf16)
            _fixed((32, 64)),      # conv2 weight (BN folded), taps fused on K
            _fixed((32, 1)),       # conv2/bn2 bias
            _fixed((223, 49)),     # max-pool subsample selection
        ],
        out_specs=pl.BlockSpec((_TBC, 32, 49), lambda i: (i, 0, 0)),
    )
    feats = pl.pallas_call(
        _conv_kernel,
        out_shape=jax.ShapeDtypeStruct((n_pad, 32, 49), jnp.bfloat16),
        grid_spec=conv_grid,
        compiler_params=pltpu.CompilerParams(
            dimension_semantics=("parallel",)),
    )(xflat, p["w1f"], p["b1f"], p["s1"], p["w2f"], p["b2f"], p["s2"])

    # Free row-major view: (32,49) per sample == torch.flatten (C,H,W) order.
    feats = feats.reshape(n_pad, 32 * 49)

    # ---------- stage 2: batched FC head (fc1+ReLU, fc2+ReLU, fc3+softmax) ---
    fc_grid = pltpu.PrefetchScalarGridSpec(
        num_scalar_prefetch=0,
        grid=(n_pad // tbf,),
        in_specs=[
            pl.BlockSpec((tbf, 1568), lambda i: (i, 0)),
            _fixed((1568, 256)),   # fc1 weight (bf16, torch flatten row order)
            _fixed((1, 256)),      # fc1 bias
            _fixed((256, 128)),    # fc2 weight (bf16)
            _fixed((1, 128)),      # fc2 bias
            _fixed((128, 2)),      # fc3 weight (bf16)
            _fixed((1, 2)),        # fc3 bias
        ],
        out_specs=pl.BlockSpec((tbf, 2), lambda i: (i, 0)),
    )
    out = pl.pallas_call(
        _fc_kernel,
        out_shape=jax.ShapeDtypeStruct((n_pad, 2), jnp.float32),
        grid_spec=fc_grid,
        compiler_params=pltpu.CompilerParams(
            dimension_semantics=("parallel",)),
    )(feats, p["fw1"], p["fb1"], p["fw2"], p["fb2"], p["fw3"], p["fb3"])
    return out[:n]


# -------------------------------- parameters -------------------------------- #

def init_params(key):
    ks = jax.random.split(key, 14)
    eps = 1e-5

    def rnd(k, shape, scale=0.1):
        return (scale * jax.random.normal(k, shape)).astype(jnp.float32)

    # conv1: torch weight (16,1,2,2) -> (16, 4) with tap index t = kh*2 + kw.
    w1 = rnd(ks[0], (16, 4))
    cb1 = rnd(ks[1], (16,))
    g1, be1 = 1.0 + rnd(ks[2], (16,)), rnd(ks[3], (16,))
    rm1, rv1 = jnp.zeros((16,), jnp.float32), jnp.ones((16,), jnp.float32)
    sc1 = g1 / jnp.sqrt(rv1 + eps)
    w1f = w1 * sc1[:, None]                                   # BN scale folded
    b1f = ((cb1 - rm1) * sc1 + be1).reshape(16, 1)

    # conv2: torch weight (32,16,2,2) -> tap-major (4, 32, 16) -> fused (32,64)
    # with columns [t*16:(t+1)*16] = tap t's (Cout, Cin) matrix.
    w2 = rnd(ks[4], (4, 32, 16))
    cb2 = rnd(ks[5], (32,))
    g2, be2 = 1.0 + rnd(ks[6], (32,)), rnd(ks[7], (32,))
    rm2, rv2 = jnp.zeros((32,), jnp.float32), jnp.ones((32,), jnp.float32)
    sc2 = g2 / jnp.sqrt(rv2 + eps)
    w2f = jnp.transpose(w2 * sc2[None, :, None], (1, 0, 2)).reshape(32, 64)
    b2f = ((cb2 - rm2) * sc2 + be2).reshape(32, 1)

    # FC weights stored (in, out), bf16 on the MXU operand side.  fw1 rows are
    # in torch.flatten order (c*49 + h*7 + w); a real checkpoint would be
    # loaded as fc1.weight.T (etc.).
    fw1 = rnd(ks[8], (32 * 7 * 7, 256), 0.02).astype(jnp.bfloat16)
    fb1 = rnd(ks[9], (256,)).reshape(1, -1)
    fw2 = rnd(ks[10], (256, 128), 0.05).astype(jnp.bfloat16)
    fb2 = rnd(ks[11], (128,)).reshape(1, -1)
    fw3 = rnd(ks[12], (128, 2), 0.05).astype(jnp.bfloat16)
    fb3 = rnd(ks[13], (2,)).reshape(1, -1)

    s1, s2 = _pool_selection_matrices()
    return dict(w1f=w1f, b1f=b1f, w2f=w2f, b2f=b2f, s1=s1, s2=s2,
                fw1=fw1, fb1=fb1, fw2=fw2, fb2=fb2, fw3=fw3, fb3=fb3)


# ---------------------------- pure-JAX reference ----------------------------- #

@jax.jit
def reference_forward(x_nchw, p):
    """Plain NCHW reference mirroring the PyTorch module (same folded params
    and the same bf16 quantization points as the kernel)."""
    hp = jax.lax.Precision.HIGHEST
    f32 = jnp.float32
    n = x_nchw.shape[0]
    x = x_nchw.astype(f32)[:, 0]                               # (N, 28, 28)
    xp = jnp.pad(x, ((0, 0), (1, 1), (1, 1)))                  # (N, 30, 30)
    w1, b1 = p["w1f"], p["b1f"][:, 0]
    c1 = (w1[:, 0][None, :, None, None] * xp[:, None, 0:29, 0:29]
          + w1[:, 1][None, :, None, None] * xp[:, None, 0:29, 1:30]
          + w1[:, 2][None, :, None, None] * xp[:, None, 1:30, 0:29]
          + w1[:, 3][None, :, None, None] * xp[:, None, 1:30, 1:30]
          + b1[None, :, None, None])
    c1 = jnp.maximum(c1, 0.0)                                   # (N,16,29,29)
    c1q = c1.astype(jnp.bfloat16).astype(f32)                   # mirror bf16 pool
    p1 = c1q[:, :, :28, :28].reshape(n, 16, 14, 2, 14, 2).sum(axis=(3, 5)) * 0.25
    p1p = jnp.pad(p1, ((0, 0), (0, 0), (1, 1), (1, 1)))         # (N,16,16,16)
    w2r = p["w2f"].reshape(32, 4, 16)
    b2 = p["b2f"][:, 0]
    c2 = b2[None, :, None, None]
    for t, (kh, kw) in enumerate(((0, 0), (0, 1), (1, 0), (1, 1))):
        c2 = c2 + jnp.einsum("oc,nchw->nohw", w2r[:, t, :],
                             p1p[:, :, kh:kh + 15, kw:kw + 15], precision=hp)
    c2 = jnp.maximum(c2, 0.0)                                   # (N,32,15,15)
    mp = c2[:, :, :14, :14].reshape(n, 32, 7, 2, 7, 2).max(axis=(3, 5))
    f = mp.reshape(n, 32 * 7 * 7).astype(jnp.bfloat16)          # torch flatten
    h1 = jnp.maximum(jnp.dot(f, p["fw1"], preferred_element_type=f32)
                     + p["fb1"], 0.0)
    h2 = jnp.maximum(jnp.dot(h1.astype(jnp.bfloat16), p["fw2"],
                             preferred_element_type=f32) + p["fb2"], 0.0)
    z = jnp.dot(h2.astype(jnp.bfloat16), p["fw3"],
                preferred_element_type=f32) + p["fb3"]
    return jax.nn.softmax(z, axis=1)


# ----------------------------------- main ------------------------------------ #

if __name__ == "__main__":
    key = jax.random.PRNGKey(0)
    k_x, k_p = jax.random.split(key)
    # 28x28 single-channel input (the only spatial size consistent with 32*7*7).
    # batch=16 so the conv grid has 2 (even) "parallel" steps of 8 samples.
    x = jax.random.normal(k_x, (16, 1, 28, 28), dtype=jnp.float32)
    params = init_params(k_p)

    out = jax.block_until_ready(deep_cnn_forward(x, params))

    assert out.shape == (16, 2), out.shape
    assert bool(jnp.all(jnp.isfinite(out)))
    # softmax rows sum to 1
    assert bool(jnp.allclose(jnp.sum(out, axis=1), 1.0, atol=1e-5))
    # cross-check against a plain-JAX reference of the same module
    ref = jax.block_until_ready(reference_forward(x, params))
    assert bool(jnp.allclose(out, ref, atol=2e-3, rtol=2e-3)), (out, ref)

    print("KERNEL_OK")
</pallas_src>

<mosaic_0001>
module attributes {stable_mosaic.version = 11 : i64} {
  func.func @_conv_kernel(%arg0: i32, %arg1: memref<8x930xf32, #tpu.memory_space<vmem>>, %arg2: memref<16x4xf32, #tpu.memory_space<vmem>>, %arg3: memref<16x1xf32, #tpu.memory_space<vmem>>, %arg4: memref<870x272xbf16, #tpu.memory_space<vmem>>, %arg5: memref<32x64xf32, #tpu.memory_space<vmem>>, %arg6: memref<32x1xf32, #tpu.memory_space<vmem>>, %arg7: memref<223x49xf32, #tpu.memory_space<vmem>>, %arg8: memref<8x32x49xbf16, #tpu.memory_space<vmem>>) attributes {dimension_semantics = [#tpu.dimension_semantics<parallel>], iteration_bounds = array<i64: 2>, scalar_prefetch = 0 : i64, scratch_operands = 0 : i64, tpu.core_type = #tpu.core_type<tc>, window_params = [{transform_indices = @transform_0, window_bounds = array<i64: 8, 930>}, {pipeline_mode = #tpu.pipeline_mode<synchronous>, transform_indices = @transform_1, window_bounds = array<i64: 16, 4>}, {pipeline_mode = #tpu.pipeline_mode<synchronous>, transform_indices = @transform_2, window_bounds = array<i64: 16, 1>}, {pipeline_mode = #tpu.pipeline_mode<synchronous>, transform_indices = @transform_3, window_bounds = array<i64: 870, 272>}, {pipeline_mode = #tpu.pipeline_mode<synchronous>, transform_indices = @transform_4, window_bounds = array<i64: 32, 64>}, {pipeline_mode = #tpu.pipeline_mode<synchronous>, transform_indices = @transform_5, window_bounds = array<i64: 32, 1>}, {pipeline_mode = #tpu.pipeline_mode<synchronous>, transform_indices = @transform_6, window_bounds = array<i64: 223, 49>}, {transform_indices = @transform_7, window_bounds = array<i64: 8, 32, 49>}]} {
    %c0_i32 = arith.constant 0 : i32
    %c8_i32 = arith.constant 8 : i32
    %0 = arith.addi %c0_i32, %c8_i32 : i32
    %c1_i32 = arith.constant 1 : i32
    scf.for %arg9 = %c0_i32 to %0 step %c1_i32  : i32 {
      %1 = arith.index_cast %arg9 : i32 to index
      %c0 = arith.constant 0 : index
      %2 = vector.load %arg1[%1, %c0] : memref<8x930xf32, #tpu.memory_space<vmem>>, vector<1x930xf32>
      %c0_1 = arith.constant 0 : index
      %c0_2 = arith.constant 0 : index
      %3 = vector.load %arg2[%c0_1, %c0_2] : memref<16x4xf32, #tpu.memory_space<vmem>>, vector<16x4xf32>
      %4 = vector.extract_strided_slice %3 {offsets = [0, 0], sizes = [16, 1], strides = [1, 1]} : vector<16x4xf32> to vector<16x1xf32>
      %5 = vector.extract_strided_slice %2 {offsets = [0, 0], sizes = [1, 870], strides = [1, 1]} : vector<1x930xf32> to vector<1x870xf32>
      %6 = vector.broadcast %4 : vector<16x1xf32> to vector<16x870xf32>
      %7 = vector.broadcast %5 : vector<1x870xf32> to vector<16x870xf32>
      %8 = arith.mulf %6, %7 : vector<16x870xf32>
      %9 = vector.extract_strided_slice %3 {offsets = [0, 1], sizes = [16, 1], strides = [1, 1]} : vector<16x4xf32> to vector<16x1xf32>
      %10 = vector.extract_strided_slice %2 {offsets = [0, 1], sizes = [1, 870], strides = [1, 1]} : vector<1x930xf32> to vector<1x870xf32>
      %11 = vector.broadcast %9 : vector<16x1xf32> to vector<16x870xf32>
      %12 = vector.broadcast %10 : vector<1x870xf32> to vector<16x870xf32>
      %13 = arith.mulf %11, %12 : vector<16x870xf32>
      %14 = arith.addf %8, %13 : vector<16x870xf32>
      %15 = vector.extract_strided_slice %3 {offsets = [0, 2], sizes = [16, 1], strides = [1, 1]} : vector<16x4xf32> to vector<16x1xf32>
      %16 = vector.extract_strided_slice %2 {offsets = [0, 30], sizes = [1, 870], strides = [1, 1]} : vector<1x930xf32> to vector<1x870xf32>
      %17 = vector.broadcast %15 : vector<16x1xf32> to vector<16x870xf32>
      %18 = vector.broadcast %16 : vector<1x870xf32> to vector<16x870xf32>
      %19 = arith.mulf %17, %18 : vector<16x870xf32>
      %20 = arith.addf %14, %19 : vector<16x870xf32>
      %21 = vector.extract_strided_slice %3 {offsets = [0, 3], sizes = [16, 1], strides = [1, 1]} : vector<16x4xf32> to vector<16x1xf32>
      %22 = vector.extract_strided_slice %2 {offsets = [0, 31], sizes = [1, 870], strides = [1, 1]} : vector<1x930xf32> to vector<1x870xf32>
      %23 = vector.broadcast %21 : vector<16x1xf32> to vector<16x870xf32>
      %24 = vector.broadcast %22 : vector<1x870xf32> to vector<16x870xf32>
      %25 = arith.mulf %23, %24 : vector<16x870xf32>
      %26 = arith.addf %20, %25 : vector<16x870xf32>
      %c0_3 = arith.constant 0 : index
      %c0_4 = arith.constant 0 : index
      %27 = vector.load %arg3[%c0_3, %c0_4] : memref<16x1xf32, #tpu.memory_space<vmem>>, vector<16x1xf32>
      %28 = vector.broadcast %27 : vector<16x1xf32> to vector<16x870xf32>
      %29 = arith.addf %26, %28 : vector<16x870xf32>
      %cst = arith.constant 0.000000e+00 : f32
      %30 = vector.broadcast %cst : f32 to vector<16x870xf32>
      %31 = arith.maximumf %29, %30 : vector<16x870xf32>
      %32 = arith.truncf %31 : vector<16x870xf32> to vector<16x870xbf16>
      %c0_5 = arith.constant 0 : index
      %c0_6 = arith.constant 0 : index
      %33 = vector.load %arg4[%c0_5, %c0_6] : memref<870x272xbf16, #tpu.memory_space<vmem>>, vector<870x272xbf16>
      %cst_7 = arith.constant dense<0.000000e+00> : vector<16x272xf32>
      %34 = tpu.matmul %32, %33, %cst_7 {dimension_numbers = #tpu.dot_dimension_numbers<[1], [0], [0], [1], [0, 0, 1, 1], [], []>} : vector<16x870xbf16>, vector<870x272xbf16>, vector<16x272xf32> -> vector<16x272xf32>
      %35 = vector.extract_strided_slice %34 {offsets = [0, 0], sizes = [16, 240], strides = [1, 1]} : vector<16x272xf32> to vector<16x240xf32>
      %36 = vector.extract_strided_slice %34 {offsets = [0, 1], sizes = [16, 240], strides = [1, 1]} : vector<16x272xf32> to vector<16x240xf32>
      %37 = vector.extract_strided_slice %34 {offsets = [0, 16], sizes = [16, 240], strides = [1, 1]} : vector<16x272xf32> to vector<16x240xf32>
      %38 = vector.extract_strided_slice %34 {offsets = [0, 17], sizes = [16, 240], strides = [1, 1]} : vector<16x272xf32> to vector<16x240xf32>
      %39 = tpu.concatenate %35, %36, %37, %38 in 0 : vector<16x240xf32>, vector<16x240xf32>, vector<16x240xf32>, vector<16x240xf32> -> vector<64x240xf32>
      %c0_8 = arith.constant 0 : index
      %c0_9 = arith.constant 0 : index
      %40 = vector.load %arg5[%c0_8, %c0_9] : memref<32x64xf32, #tpu.memory_space<vmem>>, vector<32x64xf32>
      %cst_10 = arith.constant dense<0.000000e+00> : vector<32x240xf32>
      %41 = tpu.matmul %40, %39, %cst_10 {dimension_numbers = #tpu.dot_dimension_numbers<[1], [0], [0], [1], [0, 0, 1, 1], [], []>} : vector<32x64xf32>, vector<64x240xf32>, vector<32x240xf32> -> vector<32x240xf32>
      %c0_11 = arith.constant 0 : index
      %c0_12 = arith.constant 0 : index
      %42 = vector.load %arg6[%c0_11, %c0_12] : memref<32x1xf32, #tpu.memory_space<vmem>>, vector<32x1xf32>
      %43 = vector.broadcast %42 : vector<32x1xf32> to vector<32x240xf32>
      %44 = arith.addf %41, %43 : vector<32x240xf32>
      %cst_13 = arith.constant 0.000000e+00 : f32
      %45 = vector.broadcast %cst_13 : f32 to vector<32x240xf32>
      %46 = arith.maximumf %44, %45 : vector<32x240xf32>
      %47 = vector.extract_strided_slice %46 {offsets = [0, 0], sizes = [32, 223], strides = [1, 1]} : vector<32x240xf32> to vector<32x223xf32>
      %48 = vector.extract_strided_slice %46 {offsets = [0, 1], sizes = [32, 223], strides = [1, 1]} : vector<32x240xf32> to vector<32x223xf32>
      %49 = arith.maximumf %47, %48 : vector<32x223xf32>
      %50 = vector.extract_strided_slice %46 {offsets = [0, 16], sizes = [32, 223], strides = [1, 1]} : vector<32x240xf32> to vector<32x223xf32>
      %51 = vector.extract_strided_slice %46 {offsets = [0, 17], sizes = [32, 223], strides = [1, 1]} : vector<32x240xf32> to vector<32x223xf32>
      %52 = arith.maximumf %50, %51 : vector<32x223xf32>
      %53 = arith.maximumf %49, %52 : vector<32x223xf32>
      %c0_14 = arith.constant 0 : index
      %c0_15 = arith.constant 0 : index
      %54 = vector.load %arg7[%c0_14, %c0_15] : memref<223x49xf32, #tpu.memory_space<vmem>>, vector<223x49xf32>
      %cst_16 = arith.constant dense<0.000000e+00> : vector<32x49xf32>
      %55 = tpu.matmul %53, %54, %cst_16 {dimension_numbers = #tpu.dot_dimension_numbers<[1], [0], [0], [1], [0, 0, 1, 1], [], []>} : vector<32x223xf32>, vector<223x49xf32>, vector<32x49xf32> -> vector<32x49xf32>
      %56 = vector.shape_cast %55 : vector<32x49xf32> to vector<1x32x49xf32>
      %57 = arith.truncf %56 : vector<1x32x49xf32> to vector<1x32x49xbf16>
      %58 = arith.index_cast %arg9 : i32 to index
      %c0_17 = arith.constant 0 : index
      %c0_18 = arith.constant 0 : index
      %59 = vector.load %arg8[%58, %c0_17, %c0_18] : memref<8x32x49xbf16, #tpu.memory_space<vmem>>, vector<1x32x49xbf16>
      tpu.vector_store %arg8[%58, %c0_17, %c0_18], %57 {strides = array<i32>} : memref<8x32x49xbf16, #tpu.memory_space<vmem>>, vector<1x32x49xbf16>,
    }
    %c8_i32_0 = arith.constant 8 : i32
    return
  }
  func.func @transform_0(%arg0: i32) -> (i32, i32) {
    %c0_i32 = arith.constant 0 : i32
    %c0_i32_0 = arith.constant 0 : i32
    return %arg0, %c0_i32 : i32, i32
  }
  func.func @transform_1(%arg0: i32) -> (i32, i32) {
    %c0_i32 = arith.constant 0 : i32
    %c0_i32_0 = arith.constant 0 : i32
    %c0_i32_1 = arith.constant 0 : i32
    return %c0_i32, %c0_i32_0 : i32, i32
  }
  func.func @transform_2(%arg0: i32) -> (i32, i32) {
    %c0_i32 = arith.constant 0 : i32
    %c0_i32_0 = arith.constant 0 : i32
    %c0_i32_1 = arith.constant 0 : i32
    return %c0_i32, %c0_i32_0 : i32, i32
  }
  func.func @transform_3(%arg0: i32) -> (i32, i32) {
    %c0_i32 = arith.constant 0 : i32
    %c0_i32_0 = arith.constant 0 : i32
    %c0_i32_1 = arith.constant 0 : i32
    return %c0_i32, %c0_i32_0 : i32, i32
  }
  func.func @transform_4(%arg0: i32) -> (i32, i32) {
    %c0_i32 = arith.constant 0 : i32
    %c0_i32_0 = arith.constant 0 : i32
    %c0_i32_1 = arith.constant 0 : i32
    return %c0_i32, %c0_i32_0 : i32, i32
  }
  func.func @transform_5(%arg0: i32) -> (i32, i32) {
    %c0_i32 = arith.constant 0 : i32
    %c0_i32_0 = arith.constant 0 : i32
    %c0_i32_1 = arith.constant 0 : i32
    return %c0_i32, %c0_i32_0 : i32, i32
  }
  func.func @transform_6(%arg0: i32) -> (i32, i32) {
    %c0_i32 = arith.constant 0 : i32
    %c0_i32_0 = arith.constant 0 : i32
    %c0_i32_1 = arith.constant 0 : i32
    return %c0_i32, %c0_i32_0 : i32, i32
  }
  func.func @transform_7(%arg0: i32) -> (i32, i32, i32) {
    %c0_i32 = arith.constant 0 : i32
    %c0_i32_0 = arith.constant 0 : i32
    %c0_i32_1 = arith.constant 0 : i32
    return %arg0, %c0_i32, %c0_i32_0 : i32, i32, i32
  }
}

module attributes {stable_mosaic.version = 11 : i64} {
  func.func @_fc_kernel(%arg0: i32, %arg1: memref<16x1568xbf16, #tpu.memory_space<vmem>>, %arg2: memref<1568x256xbf16, #tpu.memory_space<vmem>>, %arg3: memref<1x256xf32, #tpu.memory_space<vmem>>, %arg4: memref<256x128xbf16, #tpu.memory_space<vmem>>, %arg5: memref<1x128xf32, #tpu.memory_space<vmem>>, %arg6: memref<128x2xbf16, #tpu.memory_space<vmem>>, %arg7: memref<1x2xf32, #tpu.memory_space<vmem>>, %arg8: memref<16x2xf32, #tpu.memory_space<vmem>>) attributes {dimension_semantics = [#tpu.dimension_semantics<parallel>], iteration_bounds = array<i64: 1>, scalar_prefetch = 0 : i64, scratch_operands = 0 : i64, tpu.core_type = #tpu.core_type<tc>, window_params = [{transform_indices = @transform_0, window_bounds = array<i64: 16, 1568>}, {pipeline_mode = #tpu.pipeline_mode<synchronous>, transform_indices = @transform_1, window_bounds = array<i64: 1568, 256>}, {pipeline_mode = #tpu.pipeline_mode<synchronous>, transform_indices = @transform_2, window_bounds = array<i64: 1, 256>}, {pipeline_mode = #tpu.pipeline_mode<synchronous>, transform_indices = @transform_3, window_bounds = array<i64: 256, 128>}, {pipeline_mode = #tpu.pipeline_mode<synchronous>, transform_indices = @transform_4, window_bounds = array<i64: 1, 128>}, {pipeline_mode = #tpu.pipeline_mode<synchronous>, transform_indices = @transform_5, window_bounds = array<i64: 128, 2>}, {pipeline_mode = #tpu.pipeline_mode<synchronous>, transform_indices = @transform_6, window_bounds = array<i64: 1, 2>}, {transform_indices = @transform_7, window_bounds = array<i64: 16, 2>}]} {
    %c0 = arith.constant 0 : index
    %c0_0 = arith.constant 0 : index
    %0 = vector.load %arg1[%c0, %c0_0] : memref<16x1568xbf16, #tpu.memory_space<vmem>>, vector<16x1568xbf16>
    %c0_1 = arith.constant 0 : index
    %c0_2 = arith.constant 0 : index
    %1 = vector.load %arg2[%c0_1, %c0_2] : memref<1568x256xbf16, #tpu.memory_space<vmem>>, vector<1568x256xbf16>
    %cst = arith.constant dense<0.000000e+00> : vector<16x256xf32>
    %2 = tpu.matmul %0, %1, %cst {dimension_numbers = #tpu.dot_dimension_numbers<[1], [0], [0], [1], [0, 0, 1, 1], [], []>} : vector<16x1568xbf16>, vector<1568x256xbf16>, vector<16x256xf32> -> vector<16x256xf32>
    %c0_3 = arith.constant 0 : index
    %c0_4 = arith.constant 0 : index
    %3 = vector.load %arg3[%c0_3, %c0_4] : memref<1x256xf32, #tpu.memory_space<vmem>>, vector<1x256xf32>
    %4 = vector.broadcast %3 : vector<1x256xf32> to vector<16x256xf32>
    %5 = arith.addf %2, %4 : vector<16x256xf32>
    %cst_5 = arith.constant 0.000000e+00 : f32
    %6 = vector.broadcast %cst_5 : f32 to vector<16x256xf32>
    %7 = arith.maximumf %5, %6 : vector<16x256xf32>
    %8 = arith.truncf %7 : vector<16x256xf32> to vector<16x256xbf16>
    %c0_6 = arith.constant 0 : index
    %c0_7 = arith.constant 0 : index
    %9 = vector.load %arg4[%c0_6, %c0_7] : memref<256x128xbf16, #tpu.memory_space<vmem>>, vector<256x128xbf16>
    %cst_8 = arith.constant dense<0.000000e+00> : vector<16x128xf32>
    %10 = tpu.matmul %8, %9, %cst_8 {dimension_numbers = #tpu.dot_dimension_numbers<[1], [0], [0], [1], [0, 0, 1, 1], [], []>} : vector<16x256xbf16>, vector<256x128xbf16>, vector<16x128xf32> -> vector<16x128xf32>
    %c0_9 = arith.constant 0 : index
    %c0_10 = arith.constant 0 : index
    %11 = vector.load %arg5[%c0_9, %c0_10] : memref<1x128xf32, #tpu.memory_space<vmem>>, vector<1x128xf32>
    %12 = vector.broadcast %11 : vector<1x128xf32> to vector<16x128xf32>
    %13 = arith.addf %10, %12 : vector<16x128xf32>
    %cst_11 = arith.constant 0.000000e+00 : f32
    %14 = vector.broadcast %cst_11 : f32 to vector<16x128xf32>
    %15 = arith.maximumf %13, %14 : vector<16x128xf32>
    %16 = arith.truncf %15 : vector<16x128xf32> to vector<16x128xbf16>
    %c0_12 = arith.constant 0 : index
    %c0_13 = arith.constant 0 : index
    %17 = vector.load %arg6[%c0_12, %c0_13] : memref<128x2xbf16, #tpu.memory_space<vmem>>, vector<128x2xbf16>
    %cst_14 = arith.constant dense<0.000000e+00> : vector<16x2xf32>
    %18 = tpu.matmul %16, %17, %cst_14 {dimension_numbers = #tpu.dot_dimension_numbers<[1], [0], [0], [1], [0, 0, 1, 1], [], []>} : vector<16x128xbf16>, vector<128x2xbf16>, vector<16x2xf32> -> vector<16x2xf32>
    %c0_15 = arith.constant 0 : index
    %c0_16 = arith.constant 0 : index
    %19 = vector.load %arg7[%c0_15, %c0_16] : memref<1x2xf32, #tpu.memory_space<vmem>>, vector<1x2xf32>
    %20 = vector.broadcast %19 : vector<1x2xf32> to vector<16x2xf32>
    %21 = arith.addf %18, %20 : vector<16x2xf32>
    %cst_17 = arith.constant dense<0xFF800000> : vector<16xf32>
    %22 = vector.multi_reduction <maximumf>, %21, %cst_17 [1] : vector<16x2xf32> to vector<16xf32>
    %23 = vector.shape_cast %22 : vector<16xf32> to vector<16x1xf32>
    %24 = vector.broadcast %23 : vector<16x1xf32> to vector<16x2xf32>
    %25 = arith.subf %21, %24 : vector<16x2xf32>
    %26 = math.exp %25 : vector<16x2xf32>
    %cst_18 = arith.constant dense<0.000000e+00> : vector<16xf32>
    %27 = vector.multi_reduction <add>, %26, %cst_18 [1] : vector<16x2xf32> to vector<16xf32>
    %28 = vector.shape_cast %27 : vector<16xf32> to vector<16x1xf32>
    %29 = vector.broadcast %28 : vector<16x1xf32> to vector<16x2xf32>
    %30 = arith.divf %26, %29 : vector<16x2xf32>
    %c0_19 = arith.constant 0 : index
    %c0_20 = arith.constant 0 : index
    %31 = vector.load %arg8[%c0_19, %c0_20] : memref<16x2xf32, #tpu.memory_space<vmem>>, vector<16x2xf32>
    tpu.vector_store %arg8[%c0_19, %c0_20], %30 {strides = array<i32>} : memref<16x2xf32, #tpu.memory_space<vmem>>, vector<16x2xf32>,
    return
  }
  func.func @transform_0(%arg0: i32) -> (i32, i32) {
    %c0_i32 = arith.constant 0 : i32
    %c0_i32_0 = arith.constant 0 : i32
    return %arg0, %c0_i32 : i32, i32
  }
  func.func @transform_1(%arg0: i32) -> (i32, i32) {
    %c0_i32 = arith.constant 0 : i32
    %c0_i32_0 = arith.constant 0 : i32
    %c0_i32_1 = arith.constant 0 : i32
    return %c0_i32, %c0_i32_0 : i32, i32
  }
  func.func @transform_2(%arg0: i32) -> (i32, i32) {
    %c0_i32 = arith.constant 0 : i32
    %c0_i32_0 = arith.constant 0 : i32
    %c0_i32_1 = arith.constant 0 : i32
    return %c0_i32, %c0_i32_0 : i32, i32
  }
  func.func @transform_3(%arg0: i32) -> (i32, i32) {
    %c0_i32 = arith.constant 0 : i32
    %c0_i32_0 = arith.constant 0 : i32
    %c0_i32_1 = arith.constant 0 : i32
    return %c0_i32, %c0_i32_0 : i32, i32
  }
  func.func @transform_4(%arg0: i32) -> (i32, i32) {
    %c0_i32 = arith.constant 0 : i32
    %c0_i32_0 = arith.constant 0 : i32
    %c0_i32_1 = arith.constant 0 : i32
    return %c0_i32, %c0_i32_0 : i32, i32
  }
  func.func @transform_5(%arg0: i32) -> (i32, i32) {
    %c0_i32 = arith.constant 0 : i32
    %c0_i32_0 = arith.constant 0 : i32
    %c0_i32_1 = arith.constant 0 : i32
    return %c0_i32, %c0_i32_0 : i32, i32
  }
  func.func @transform_6(%arg0: i32) -> (i32, i32) {
    %c0_i32 = arith.constant 0 : i32
    %c0_i32_0 = arith.constant 0 : i32
    %c0_i32_1 = arith.constant 0 : i32
    return %c0_i32, %c0_i32_0 : i32, i32
  }
  func.func @transform_7(%arg0: i32) -> (i32, i32) {
    %c0_i32 = arith.constant 0 : i32
    %c0_i32_0 = arith.constant 0 : i32
    return %arg0, %c0_i32 : i32, i32
  }
}

</mosaic_0001>

<llo_original>
// kernel: deep_cnn_forward.2
$region0: #{deep_cnn_forward.2}
  #allocation0 [shape = 'u32[]', space=smem, size = 0x4, offset = 0x4, fixed_abs, tag = 'smem constant byte address 0x4 - core index']
  #allocation1 [shape = 'u32[72,128]{1,0:T(1,128)}', space=vmem, size = 0x9000, scoped, tag = 'internal scratch']
  %s0 = inlined_call_operand.vmem [shape: f32[16,930], index: 0, kind: input, shape index: {}]
  %s1 = inlined_call_operand.vmem [shape: f32[16,4], index: 1, kind: input, shape index: {}]
  %s2 = inlined_call_operand.vmem [shape: f32[16,1], index: 2, kind: input, shape index: {}]
  %s3 = inlined_call_operand.vmem [shape: bf16[870,272], index: 3, kind: input, shape index: {}]
  %s4 = inlined_call_operand.vmem [shape: f32[32,64], index: 4, kind: input, shape index: {}]
  %s5 = inlined_call_operand.vmem [shape: f32[32,1], index: 5, kind: input, shape index: {}]
  %s6 = inlined_call_operand.vmem [shape: f32[223,49], index: 6, kind: input, shape index: {}]
  %s7 = inlined_call_operand.vmem [shape: bf16[16,32,49], index: 7, kind: output, shape index: {}]
  %s8 = sld [smem:[#allocation0]]
  $region68: #{deep_cnn_forward.2} parent=0
    _
  %s10 = ssub.s32 1, %s8
  %s11 = scalar_select 0, %s10, %s8
  loop: start=0, step=1, limit=4
  $region2: #{deep_cnn_forward.2} parent=0 // loop_pre_header
    _
  $region3: #{deep_cnn_forward.2} parent=0 // loop_header
    %s13 = sphi 0, %s17
    %p14 = scmp.ge.s32.totalorder %s13, 4
    %s23 = sphi 0, %s25
    %s26 = sphi 0, %s23
    %s27 = sphi 0, %s26
    %s43 = sphi 0, %s27
    %s47 = sphi 0, %s47
    %s49 = sphi 0, %s47
    %s50 = sphi 0, %s49
    %s64 = sphi 0, %s50
    %s68 = sphi 0, %s68
    %s70 = sphi 0, %s68
    %s71 = sphi 0, %s70
    %s85 = sphi 0, %s71
    %s89 = sphi 0, %s89
    %s91 = sphi 0, %s89
    %s92 = sphi 0, %s91
    %s106 = sphi 0, %s92
    %s110 = sphi 0, %s110
    %s112 = sphi 0, %s110
    %s113 = sphi 0, %s112
    %s127 = sphi 0, %s113
    %s131 = sphi 0, %s131
    %s133 = sphi 0, %s131
    %s134 = sphi 0, %s133
    %s148 = sphi 0, %s134
    %s152 = sphi 0, %s152
    %s154 = sphi 0, %s152
    %s155 = sphi 0, %s154
    %s169 = sphi 0, %s155
    %s175 = sphi 0, %s177
    %s178 = sphi 0, %s175
    %s179 = sphi 0, %s178
    %s195 = sphi 0, %s179
  $region4: #{deep_cnn_forward.2} parent=0 // loop_header_branch
    %16 = sbr.rel (%p14) target = $region8
  $region5: #{deep_cnn_forward.2} parent=0 // loop_body
    %s18 = ssub.s32 %s13, 1
    %s19 = ssub.s32 %s13, 2
    %s20 = sadd.s32 %s13, 1
    %s21 = ssub.s32 %s13, %s20
    %p22 = scmp.eq.s32.totalorder %s21, 0
    %s24 = sadd.s32 %s23, 1
    %s25 = scalar_select %p22, %s23, %s24
    %p28 = pneg %p22
    %p29 = scmp.eq.s32.totalorder %s13, 1
    %p30 = por %p28, %p29
    %p31 = scmp.ne.s32.totalorder %s23, %s26
    %p32 = scmp.eq.s32.totalorder %s13, 0
    %p33 = por %p31, %p32
    %p34 = scmp.ne.s32.totalorder %s23, %s26
    %p35 = scmp.eq.s32.totalorder %s18, 1
    %p36 = por %p34, %p35
    %p37 = scmp.ne.s32.totalorder %s26, %s27
    %p38 = scmp.eq.s32.totalorder %s18, 0
    %p39 = por %p37, %p38
    %p40 = scmp.ne.s32.totalorder %s26, %s27
    %p41 = scmp.eq.s32.totalorder %s19, 1
    %p42 = por %p40, %p41
    %p44 = scmp.ne.s32.totalorder %s27, %s43
    %p45 = scmp.eq.s32.totalorder %s19, 0
    %p46 = por %p44, %p45
    %s48 = sadd.s32 %s47, 1
    %p51 = scmp.eq.s32.totalorder %s13, 1
    %p52 = scmp.ne.s32.totalorder %s47, %s49
    %p53 = scmp.eq.s32.totalorder %s13, 0
    %p54 = por %p52, %p53
    %p55 = scmp.ne.s32.totalorder %s47, %s49
    %p56 = scmp.eq.s32.totalorder %s18, 1
    %p57 = por %p55, %p56
    %p58 = scmp.ne.s32.totalorder %s49, %s50
    %p59 = scmp.eq.s32.totalorder %s18, 0
    %p60 = por %p58, %p59
    %p61 = scmp.ne.s32.totalorder %s49, %s50
    %p62 = scmp.eq.s32.totalorder %s19, 1
    %p63 = por %p61, %p62
    %p65 = scmp.ne.s32.totalorder %s50, %s64
    %p66 = scmp.eq.s32.totalorder %s19, 0
    %p67 = por %p65, %p66
    %s69 = sadd.s32 %s68, 1
    %p72 = scmp.eq.s32.totalorder %s13, 1
    %p73 = scmp.ne.s32.totalorder %s68, %s70
    %p74 = scmp.eq.s32.totalorder %s13, 0
    %p75 = por %p73, %p74
    %p76 = scmp.ne.s32.totalorder %s68, %s70
    %p77 = scmp.eq.s32.totalorder %s18, 1
    %p78 = por %p76, %p77
    %p79 = scmp.ne.s32.totalorder %s70, %s71
    %p80 = scmp.eq.s32.totalorder %s18, 0
    %p81 = por %p79, %p80
    %p82 = scmp.ne.s32.totalorder %s70, %s71
    %p83 = scmp.eq.s32.totalorder %s19, 1
    %p84 = por %p82, %p83
    %p86 = scmp.ne.s32.totalorder %s71, %s85
    %p87 = scmp.eq.s32.totalorder %s19, 0
    %p88 = por %p86, %p87
    %s90 = sadd.s32 %s89, 1
    %p93 = scmp.eq.s32.totalorder %s13, 1
    %p94 = scmp.ne.s32.totalorder %s89, %s91
    %p95 = scmp.eq.s32.totalorder %s13, 0
    %p96 = por %p94, %p95
    %p97 = scmp.ne.s32.totalorder %s89, %s91
    %p98 = scmp.eq.s32.totalorder %s18, 1
    %p99 = por %p97, %p98
    %p100 = scmp.ne.s32.totalorder %s91, %s92
    %p101 = scmp.eq.s32.totalorder %s18, 0
    %p102 = por %p100, %p101
    %p103 = scmp.ne.s32.totalorder %s91, %s92
    %p104 = scmp.eq.s32.totalorder %s19, 1
    %p105 = por %p103, %p104
    %p107 = scmp.ne.s32.totalorder %s92, %s106
    %p108 = scmp.eq.s32.totalorder %s19, 0
    %p109 = por %p107, %p108
    %s111 = sadd.s32 %s110, 1
    %p114 = scmp.eq.s32.totalorder %s13, 1
    %p115 = scmp.ne.s32.totalorder %s110, %s112
    %p116 = scmp.eq.s32.totalorder %s13, 0
    %p117 = por %p115, %p116
    %p118 = scmp.ne.s32.totalorder %s110, %s112
    %p119 = scmp.eq.s32.totalorder %s18, 1
    %p120 = por %p118, %p119
    %p121 = scmp.ne.s32.totalorder %s112, %s113
    %p122 = scmp.eq.s32.totalorder %s18, 0
    %p123 = por %p121, %p122
    %p124 = scmp.ne.s32.totalorder %s112, %s113
    %p125 = scmp.eq.s32.totalorder %s19, 1
    %p126 = por %p124, %p125
    %p128 = scmp.ne.s32.totalorder %s113, %s127
    %p129 = scmp.eq.s32.totalorder %s19, 0
    %p130 = por %p128, %p129
    %s132 = sadd.s32 %s131, 1
    %p135 = scmp.eq.s32.totalorder %s13, 1
    %p136 = scmp.ne.s32.totalorder %s131, %s133
    %p137 = scmp.eq.s32.totalorder %s13, 0
    %p138 = por %p136, %p137
    %p139 = scmp.ne.s32.totalorder %s131, %s133
    %p140 = scmp.eq.s32.totalorder %s18, 1
    %p141 = por %p139, %p140
    %p142 = scmp.ne.s32.totalorder %s133, %s134
    %p143 = scmp.eq.s32.totalorder %s18, 0
    %p144 = por %p142, %p143
    %p145 = scmp.ne.s32.totalorder %s133, %s134
    %p146 = scmp.eq.s32.totalorder %s19, 1
    %p147 = por %p145, %p146
    %p149 = scmp.ne.s32.totalorder %s134, %s148
    %p150 = scmp.eq.s32.totalorder %s19, 0
    %p151 = por %p149, %p150
    %s153 = sadd.s32 %s152, 1
    %p156 = scmp.eq.s32.totalorder %s13, 1
    %p157 = scmp.ne.s32.totalorder %s152, %s154
    %p158 = scmp.eq.s32.totalorder %s13, 0
    %p159 = por %p157, %p158
    %p160 = scmp.ne.s32.totalorder %s152, %s154
    %p161 = scmp.eq.s32.totalorder %s18, 1
    %p162 = por %p160, %p161
    %p163 = scmp.ne.s32.totalorder %s154, %s155
    %p164 = scmp.eq.s32.totalorder %s18, 0
    %p165 = por %p163, %p164
    %p166 = scmp.ne.s32.totalorder %s154, %s155
    %p167 = scmp.eq.s32.totalorder %s19, 1
    %p168 = por %p166, %p167
    %p170 = scmp.ne.s32.totalorder %s155, %s169
    %p171 = scmp.eq.s32.totalorder %s19, 0
    %p172 = por %p170, %p171
    %s173 = ssub.s32 %s13, %s20
    %p174 = scmp.eq.s32.totalorder %s173, 0
    %s176 = sadd.s32 %s175, 1
    %s177 = scalar_select %p174, %s175, %s176
    %p180 = pneg %p174
    %p181 = scmp.eq.s32.totalorder %s13, 1
    %p182 = por %p180, %p181
    %p183 = scmp.ne.s32.totalorder %s175, %s178
    %p184 = scmp.eq.s32.totalorder %s13, 0
    %p185 = por %p183, %p184
    %p186 = scmp.ne.s32.totalorder %s175, %s178
    %p187 = scmp.eq.s32.totalorder %s18, 1
    %p188 = por %p186, %p187
    %p189 = scmp.ne.s32.totalorder %s178, %s179
    %p190 = scmp.eq.s32.totalorder %s18, 0
    %p191 = por %p189, %p190
    %p192 = scmp.ne.s32.totalorder %s178, %s179
    %p193 = scmp.eq.s32.totalorder %s19, 1
    %p194 = por %p192, %p193
    %p196 = scmp.ne.s32.totalorder %s179, %s195
    %p197 = scmp.eq.s32.totalorder %s19, 0
    %p198 = por %p196, %p197
    %p199 = scmp.le.s32.totalorder 1, %s13
    %p200 = scmp.lt.s32.totalorder %s13, 3
    %p201 = pnand %p199, %p200
    %p202 = pneg %p201
    // Predicated region
    $region9: #{deep_cnn_forward.2} parent=5 // pred_check
      _
    $region10: #{deep_cnn_forward.2} parent=5 // pred_check_branch
      %204 = sbr.rel (%p201) target = $region12
    $region11: #{deep_cnn_forward.2} parent=5 // pred_region
      %s205 = ssub.s32 %s13, 1
      // Predicated region
      $region13: #{deep_cnn_forward.2} parent=11 // pred_check
        %p206 = pneg %p60
      $region14: #{deep_cnn_forward.2} parent=11 // pred_check_branch
        %208 = sbr.rel (%p206) target = $region16
      $region15: #{deep_cnn_forward.2} parent=11 // pred_region
        _
      $region16: #{deep_cnn_forward.2} parent=11 // pred_fallthru
        _
      // Predicated region
      $region17: #{deep_cnn_forward.2} parent=11 // pred_check
        %p209 = pneg %p81
      $region18: #{deep_cnn_forward.2} parent=11 // pred_check_branch
        %211 = sbr.rel (%p209) target = $region20
      $region19: #{deep_cnn_forward.2} parent=11 // pred_region
        _
      $region20: #{deep_cnn_forward.2} parent=11 // pred_fallthru
        _
      // Predicated region
      $region21: #{deep_cnn_forward.2} parent=11 // pred_check
        %p212 = pneg %p102
      $region22: #{deep_cnn_forward.2} parent=11 // pred_check_branch
        %214 = sbr.rel (%p212) target = $region24
      $region23: #{deep_cnn_forward.2} parent=11 // pred_region
        _
      $region24: #{deep_cnn_forward.2} parent=11 // pred_fallthru
        _
      // Predicated region
      $region25: #{deep_cnn_forward.2} parent=11 // pred_check
        %p215 = pneg %p123
      $region26: #{deep_cnn_forward.2} parent=11 // pred_check_branch
        %217 = sbr.rel (%p215) target = $region28
      $region27: #{deep_cnn_forward.2} parent=11 // pred_region
        _
      $region28: #{deep_cnn_forward.2} parent=11 // pred_fallthru
        _
      // Predicated region
      $region29: #{deep_cnn_forward.2} parent=11 // pred_check
        %p218 = pneg %p144
      $region30: #{deep_cnn_forward.2} parent=11 // pred_check_branch
        %220 = sbr.rel (%p218) target = $region32
      $region31: #{deep_cnn_forward.2} parent=11 // pred_region
        _
      $region32: #{deep_cnn_forward.2} parent=11 // pred_fallthru
        _
      // Predicated region
      $region33: #{deep_cnn_forward.2} parent=11 // pred_check
        %p221 = pneg %p165
      $region34: #{deep_cnn_forward.2} parent=11 // pred_check_branch
        %223 = sbr.rel (%p221) target = $region36
      $region35: #{deep_cnn_forward.2} parent=11 // pred_region
        _
      $region36: #{deep_cnn_forward.2} parent=11 // pred_fallthru
        _
    $region12: #{deep_cnn_forward.2} parent=5 // pred_fallthru
      _
    %p224 = scmp.lt.s32.totalorder %s13, 2
    // Predicated region
    $region37: #{deep_cnn_forward.2} parent=5 // pred_check
      %p225 = pneg %p224
    $region38: #{deep_cnn_forward.2} parent=5 // pred_check_branch
      %227 = sbr.rel (%p225) target = $region40
    $region39: #{deep_cnn_forward.2} parent=5 // pred_region
      // Predicated region
      $region41: #{deep_cnn_forward.2} parent=39 // pred_check
        %p228 = pneg %p33
      $region42: #{deep_cnn_forward.2} parent=39 // pred_check_branch
        %230 = sbr.rel (%p228) target = $region44
      $region43: #{deep_cnn_forward.2} parent=39 // pred_region
        %p231 = scmp.lt.s32.totalorder %s13, 1
        %s232 = scalar_select %p231, %s13, 1
        %s233 = smul.addr %s232, 8
        %s234 = smul.addr %s233, 8
        %s235 = scalar_lea.vmem %s0, %s234
      $region44: #{deep_cnn_forward.2} parent=39 // pred_fallthru
        _
    $region40: #{deep_cnn_forward.2} parent=5 // pred_fallthru
      _
    %p236 = scmp.le.s32.totalorder 1, %s13
    %p237 = scmp.lt.s32.totalorder %s13, 3
    %p238 = pnand %p236, %p237
    %p239 = pneg %p238
    // Predicated region
    $region45: #{deep_cnn_forward.2} parent=5 // pred_check
      _
    $region46: #{deep_cnn_forward.2} parent=5 // pred_check_branch
      %241 = sbr.rel (%p238) target = $region48
    $region47: #{deep_cnn_forward.2} parent=5 // pred_region
      %s242 = ssub.s32 %s13, 1
      %p243 = scmp.lt.s32.totalorder %s18, 1
      %s244 = scalar_select %p243, %s18, 1
      %s245 = smul.addr %s244, 8
      %s246 = smul.addr %s245, 8
      %s247 = scalar_lea.vmem %s0, %s246
      %p248 = pneg %p39
      %p249 = pneg %p36
      %p250 = pneg %p60
      %p251 = pneg %p57
      %p252 = pneg %p81
      %p253 = pneg %p78
      %p254 = pneg %p102
      %p255 = pneg %p99
      %p256 = pneg %p123
      %p257 = pneg %p120
      %p258 = pneg %p144
      %p259 = pneg %p141
      %p260 = pneg %p165
      %p261 = pneg %p162
      %p262 = pneg %p191
      %p263 = pneg %p188
      %s264 = smul.u32 8, %s18
      %p265 = scmp.lt.s32.totalorder %s264, 15
      %s266 = scalar_select %p265, %s264, 15
      %s267 = smul.addr %s266, 4
      %s268 = smul.addr %s267, 4
      %s269 = scalar_lea.vmem %s7, %s268
      %p270 = scmp.lt.s32.totalorder %s18, 1
      %s271 = scalar_select %p270, %s18, 1
      %s272 = smul.addr %s271, 8
      %s273 = smul.addr %s272, 8
      %s274 = scalar_lea.vmem %s0, %s273
      %s275 = smul.u32 8, %s18
      %p276 = scmp.lt.s32.totalorder %s275, 15
      %s277 = scalar_select %p276, %s275, 15
      %s278 = smul.addr %s277, 4
      %s279 = smul.addr %s278, 4
      %s280 = scalar_lea.vmem %s7, %s279
      %s281 = smul.u32 8, %s18
      loop: start=0, step=1, limit=8
      $region49: #{deep_cnn_forward.2} parent=47 // loop_pre_header
        _
      $region50: #{deep_cnn_forward.2} parent=47 // loop_header
        %s284 = sphi 0, %s288
        %p285 = scmp.ge.s32.totalorder %s284, 8
      $region51: #{deep_cnn_forward.2} parent=47 // loop_header_branch
        %287 = sbr.rel (%p285) target = $region55
      $region52: #{deep_cnn_forward.2} parent=47 // loop_body
        %s289 = sshra.s32 %s284, 3
        %s290 = sand.u32 %s284, 7
        %s291 = sshra.s32 %s284, 3
        %s292 = sand.u32 %s284, 7
        %s293 = smul.u32 %s289, 8
        %s294 = smul.u32 %s293, 8
        %s295 = sadd.s32 %s294, %s292
        %s296 = scalar_lea.vmem %s274, %s295
        %v297 = vld [vmem:[%s296] ss:$8 sm:$0xf]
        %v298 = vld [vmem:[%s296] ss:$8 sm:$0xf0]
        %v299 = vor.u32 %v297, %v298
        %v300 = vld [vmem:[%s1] sm:$0xff]
        %v301 = vld [vmem:[%s1 + $0x8] sm:$0xff]
        %303 = vset.pattern.permute.xlu0 0
        %304 = vperm.xlu0 %303, %v300
        %v305 = vpop.permute.xlu0 %304
        %308 = vset.pattern.permute.xlu0 0
        %309 = vperm.xlu0 %308, %v301
        %v310 = vpop.permute.xlu0 %309
        %v313 = vperm.slane %v299, 0
        %v314 = vperm.slane %v299, 1
        %v315 = vperm.slane %v299, 2
        %v316 = vperm.slane %v299, 3
        %v317 = vperm.slane %v299, 4
        %v318 = vperm.slane %v299, 5
        %v319 = vperm.slane %v299, 6
        %v327 = vmul.f32 %v305, %v313
        %v328 = vmul.f32 %v305, %v314
        %v329 = vmul.f32 %v305, %v315
        %v330 = vmul.f32 %v305, %v316
        %v331 = vmul.f32 %v305, %v317
        %v332 = vmul.f32 %v305, %v318
        %v333 = vmul.f32 %v305, %v319
        %v334 = vmul.f32 %v310, %v313
        %v335 = vmul.f32 %v310, %v314
        %v336 = vmul.f32 %v310, %v315
        %v337 = vmul.f32 %v310, %v316
        %v338 = vmul.f32 %v310, %v317
        %v339 = vmul.f32 %v310, %v318
        %v340 = vmul.f32 %v310, %v319
        %341 = vset.pattern.permute.xlu0 1
        %342 = vperm.xlu0 %341, %v300
        %v343 = vpop.permute.xlu0 %342
        %345 = vset.pattern.permute.xlu0 1
        %346 = vperm.xlu0 %345, %v301
        %v347 = vpop.permute.xlu0 %346
        %v349 = vmul.f32 %v343, %v313
        %v350 = vmul.f32 %v343, %v314
        %v351 = vmul.f32 %v343, %v315
        %v352 = vmul.f32 %v343, %v316
        %v353 = vmul.f32 %v343, %v317
        %v354 = vmul.f32 %v343, %v318
        %v355 = vmul.f32 %v343, %v319
        %v356 = vmul.f32 %v347, %v313
        %v357 = vmul.f32 %v347, %v314
        %v358 = vmul.f32 %v347, %v315
        %v359 = vmul.f32 %v347, %v316
        %v360 = vmul.f32 %v347, %v317
        %v361 = vmul.f32 %v347, %v318
        %v362 = vmul.f32 %v347, %v319
        %377 = vrot.lane.b32.xlu0 %v349, 127
        %v378 = vpop.permute.xlu0 %377
        %379 = vrot.lane.b32.xlu0 %v350, 127
        %v380 = vpop.permute.xlu0 %379
        %381 = vrot.lane.b32.xlu0 %v351, 127
        %v382 = vpop.permute.xlu0 %381
        %383 = vrot.lane.b32.xlu0 %v352, 127
        %v384 = vpop.permute.xlu0 %383
        %385 = vrot.lane.b32.xlu0 %v353, 127
        %v386 = vpop.permute.xlu0 %385
        %387 = vrot.lane.b32.xlu0 %v354, 127
        %v388 = vpop.permute.xlu0 %387
        %389 = vrot.lane.b32.xlu0 %v355, 127
        %v390 = vpop.permute.xlu0 %389
        %391 = vrot.lane.b32.xlu0 %v356, 127
        %v392 = vpop.permute.xlu0 %391
        %393 = vrot.lane.b32.xlu0 %v357, 127
        %v394 = vpop.permute.xlu0 %393
        %395 = vrot.lane.b32.xlu0 %v358, 127
        %v396 = vpop.permute.xlu0 %395
        %397 = vrot.lane.b32.xlu0 %v359, 127
        %v398 = vpop.permute.xlu0 %397
        %399 = vrot.lane.b32.xlu0 %v360, 127
        %v400 = vpop.permute.xlu0 %399
        %401 = vrot.lane.b32.xlu0 %v361, 127
        %v402 = vpop.permute.xlu0 %401
        %403 = vrot.lane.b32.xlu0 %v362, 127
        %v404 = vpop.permute.xlu0 %403
        %vm405 = vcmask 1039360
        %v406 = vsel %vm405, %v378, %v380
        %v407 = vsel %vm405, %v380, %v382
        %v408 = vsel %vm405, %v382, %v384
        %v409 = vsel %vm405, %v384, %v386
        %v410 = vsel %vm405, %v386, %v388
        %v411 = vsel %vm405, %v388, %v390
        %v412 = vsel %vm405, %v392, %v394
        %v413 = vsel %vm405, %v394, %v396
        %v414 = vsel %vm405, %v396, %v398
        %v415 = vsel %vm405, %v398, %v400
        %v416 = vsel %vm405, %v400, %v402
        %v417 = vsel %vm405, %v402, %v404
        %v432 = vadd.f32 %v327, %v406
        %v433 = vadd.f32 %v328, %v407
        %v434 = vadd.f32 %v329, %v408
        %v435 = vadd.f32 %v330, %v409
        %v436 = vadd.f32 %v331, %v410
        %v437 = vadd.f32 %v332, %v411
        %v438 = vadd.f32 %v333, %v390
        %v439 = vadd.f32 %v334, %v412
        %v440 = vadd.f32 %v335, %v413
        %v441 = vadd.f32 %v336, %v414
        %v442 = vadd.f32 %v337, %v415
        %v443 = vadd.f32 %v338, %v416
        %v444 = vadd.f32 %v339, %v417
        %v445 = vadd.f32 %v340, %v404
        %446 = vset.pattern.permute.xlu0 2
        %447 = vperm.xlu0 %446, %v300
        %v448 = vpop.permute.xlu0 %447
        %450 = vset.pattern.permute.xlu0 2
        %451 = vperm.xlu0 %450, %v301
        %v452 = vpop.permute.xlu0 %451
        %v454 = vperm.slane %v299, 7
        %v456 = vmul.f32 %v448, %v313
        %v457 = vmul.f32 %v448, %v314
        %v458 = vmul.f32 %v448, %v315
        %v459 = vmul.f32 %v448, %v316
        %v460 = vmul.f32 %v448, %v317
        %v461 = vmul.f32 %v448, %v318
        %v462 = vmul.f32 %v448, %v319
        %v463 = vmul.f32 %v448, %v454
        %v464 = vmul.f32 %v452, %v313
        %v465 = vmul.f32 %v452, %v314
        %v466 = vmul.f32 %v452, %v315
        %v467 = vmul.f32 %v452, %v316
        %v468 = vmul.f32 %v452, %v317
        %v469 = vmul.f32 %v452, %v318
        %v470 = vmul.f32 %v452, %v319
        %v471 = vmul.f32 %v452, %v454
        %488 = vrot.lane.b32.xlu0 %v456, 98
        %v489 = vpop.permute.xlu0 %488
        %490 = vrot.lane.b32.xlu0 %v457, 98
        %v491 = vpop.permute.xlu0 %490
        %492 = vrot.lane.b32.xlu0 %v458, 98
        %v493 = vpop.permute.xlu0 %492
        %494 = vrot.lane.b32.xlu0 %v459, 98
        %v495 = vpop.permute.xlu0 %494
        %496 = vrot.lane.b32.xlu0 %v460, 98
        %v497 = vpop.permute.xlu0 %496
        %498 = vrot.lane.b32.xlu0 %v461, 98
        %v499 = vpop.permute.xlu0 %498
        %500 = vrot.lane.b32.xlu0 %v462, 98
        %v501 = vpop.permute.xlu0 %500
        %502 = vrot.lane.b32.xlu0 %v463, 98
        %v503 = vpop.permute.xlu0 %502
        %504 = vrot.lane.b32.xlu0 %v464, 98
        %v505 = vpop.permute.xlu0 %504
        %506 = vrot.lane.b32.xlu0 %v465, 98
        %v507 = vpop.permute.xlu0 %506
        %508 = vrot.lane.b32.xlu0 %v466, 98
        %v509 = vpop.permute.xlu0 %508
        %510 = vrot.lane.b32.xlu0 %v467, 98
        %v511 = vpop.permute.xlu0 %510
        %512 = vrot.lane.b32.xlu0 %v468, 98
        %v513 = vpop.permute.xlu0 %512
        %514 = vrot.lane.b32.xlu0 %v469, 98
        %v515 = vpop.permute.xlu0 %514
        %516 = vrot.lane.b32.xlu0 %v470, 98
        %v517 = vpop.permute.xlu0 %516
        %518 = vrot.lane.b32.xlu0 %v471, 98
        %v519 = vpop.permute.xlu0 %518
        %vm520 = vcmask 801792
        %v521 = vsel %vm520, %v489, %v491
        %v522 = vsel %vm520, %v491, %v493
        %v523 = vsel %vm520, %v493, %v495
        %v524 = vsel %vm520, %v495, %v497
        %v525 = vsel %vm520, %v497, %v499
        %v526 = vsel %vm520, %v499, %v501
        %v527 = vsel %vm520, %v501, %v503
        %v528 = vsel %vm520, %v505, %v507
        %v529 = vsel %vm520, %v507, %v509
        %v530 = vsel %vm520, %v509, %v511
        %v531 = vsel %vm520, %v511, %v513
        %v532 = vsel %vm520, %v513, %v515
        %v533 = vsel %vm520, %v515, %v517
        %v534 = vsel %vm520, %v517, %v519
        %v549 = vadd.f32 %v432, %v521
        %v550 = vadd.f32 %v433, %v522
        %v551 = vadd.f32 %v434, %v523
        %v552 = vadd.f32 %v435, %v524
        %v553 = vadd.f32 %v436, %v525
        %v554 = vadd.f32 %v437, %v526
        %v555 = vadd.f32 %v438, %v527
        %v556 = vadd.f32 %v439, %v528
        %v557 = vadd.f32 %v440, %v529
        %v558 = vadd.f32 %v441, %v530
        %v559 = vadd.f32 %v442, %v531
        %v560 = vadd.f32 %v443, %v532
        %v561 = vadd.f32 %v444, %v533
        %v562 = vadd.f32 %v445, %v534
        %563 = vset.pattern.permute.xlu0 3
        %564 = vperm.xlu0 %563, %v300
        %v565 = vpop.permute.xlu0 %564
        %567 = vset.pattern.permute.xlu0 3
        %568 = vperm.xlu0 %567, %v301
        %v569 = vpop.permute.xlu0 %568
        %v571 = vmul.f32 %v565, %v313
        %v572 = vmul.f32 %v565, %v314
        %v573 = vmul.f32 %v565, %v315
        %v574 = vmul.f32 %v565, %v316
        %v575 = vmul.f32 %v565, %v317
        %v576 = vmul.f32 %v565, %v318
        %v577 = vmul.f32 %v565, %v319
        %v578 = vmul.f32 %v565, %v454
        %v579 = vmul.f32 %v569, %v313
        %v580 = vmul.f32 %v569, %v314
        %v581 = vmul.f32 %v569, %v315
        %v582 = vmul.f32 %v569, %v316
        %v583 = vmul.f32 %v569, %v317
        %v584 = vmul.f32 %v569, %v318
        %v585 = vmul.f32 %v569, %v319
        %v586 = vmul.f32 %v569, %v454
        %603 = vrot.lane.b32.xlu0 %v571, 97
        %v604 = vpop.permute.xlu0 %603
        %605 = vrot.lane.b32.xlu0 %v572, 97
        %v606 = vpop.permute.xlu0 %605
        %607 = vrot.lane.b32.xlu0 %v573, 97
        %v608 = vpop.permute.xlu0 %607
        %609 = vrot.lane.b32.xlu0 %v574, 97
        %v610 = vpop.permute.xlu0 %609
        %611 = vrot.lane.b32.xlu0 %v575, 97
        %v612 = vpop.permute.xlu0 %611
        %613 = vrot.lane.b32.xlu0 %v576, 97
        %v614 = vpop.permute.xlu0 %613
        %615 = vrot.lane.b32.xlu0 %v577, 97
        %v616 = vpop.permute.xlu0 %615
        %617 = vrot.lane.b32.xlu0 %v578, 97
        %v618 = vpop.permute.xlu0 %617
        %619 = vrot.lane.b32.xlu0 %v579, 97
        %v620 = vpop.permute.xlu0 %619
        %621 = vrot.lane.b32.xlu0 %v580, 97
        %v622 = vpop.permute.xlu0 %621
        %623 = vrot.lane.b32.xlu0 %v581, 97
        %v624 = vpop.permute.xlu0 %623
        %625 = vrot.lane.b32.xlu0 %v582, 97
        %v626 = vpop.permute.xlu0 %625
        %627 = vrot.lane.b32.xlu0 %v583, 97
        %v628 = vpop.permute.xlu0 %627
        %629 = vrot.lane.b32.xlu0 %v584, 97
        %v630 = vpop.permute.xlu0 %629
        %631 = vrot.lane.b32.xlu0 %v585, 97
        %v632 = vpop.permute.xlu0 %631
        %633 = vrot.lane.b32.xlu0 %v586, 97
        %v634 = vpop.permute.xlu0 %633
        %vm635 = vcmask 793600
        %v636 = vsel %vm635, %v604, %v606
        %v637 = vsel %vm635, %v606, %v608
        %v638 = vsel %vm635, %v608, %v610
        %v639 = vsel %vm635, %v610, %v612
        %v640 = vsel %vm635, %v612, %v614
        %v641 = vsel %vm635, %v614, %v616
        %v642 = vsel %vm635, %v616, %v618
        %v643 = vsel %vm635, %v620, %v622
        %v644 = vsel %vm635, %v622, %v624
        %v645 = vsel %vm635, %v624, %v626
        %v646 = vsel %vm635, %v626, %v628
        %v647 = vsel %vm635, %v628, %v630
        %v648 = vsel %vm635, %v630, %v632
        %v649 = vsel %vm635, %v632, %v634
        %v664 = vadd.f32 %v549, %v636
        %v665 = vadd.f32 %v550, %v637
        %v666 = vadd.f32 %v551, %v638
        %v667 = vadd.f32 %v552, %v639
        %v668 = vadd.f32 %v553, %v640
        %v669 = vadd.f32 %v554, %v641
        %v670 = vadd.f32 %v555, %v642
        %v671 = vadd.f32 %v556, %v643
        %v672 = vadd.f32 %v557, %v644
        %v673 = vadd.f32 %v558, %v645
        %v674 = vadd.f32 %v559, %v646
        %v675 = vadd.f32 %v560, %v647
        %v676 = vadd.f32 %v561, %v648
        %v677 = vadd.f32 %v562, %v649
        %v678 = vld [vmem:[%s2] sm:$0xff]
        %v679 = vld [vmem:[%s2 + $0x8] sm:$0xff]
        %681 = vset.pattern.permute.xlu0 0
        %682 = vperm.xlu0 %681, %v678
        %v683 = vpop.permute.xlu0 %682
        %686 = vset.pattern.permute.xlu0 0
        %687 = vperm.xlu0 %686, %v679
        %v688 = vpop.permute.xlu0 %687
        %v690 = vadd.f32 %v664, %v683
        %v691 = vadd.f32 %v665, %v683
        %v692 = vadd.f32 %v666, %v683
        %v693 = vadd.f32 %v667, %v683
        %v694 = vadd.f32 %v668, %v683
        %v695 = vadd.f32 %v669, %v683
        %v696 = vadd.f32 %v670, %v683
        %v697 = vadd.f32 %v671, %v688
        %v698 = vadd.f32 %v672, %v688
        %v699 = vadd.f32 %v673, %v688
        %v700 = vadd.f32 %v674, %v688
        %v701 = vadd.f32 %v675, %v688
        %v702 = vadd.f32 %v676, %v688
        %v703 = vadd.f32 %v677, %v688
        %v704 = vmax.f32 %v690, 0.0
        %v705 = vmax.f32 %v691, 0.0
        %v706 = vmax.f32 %v692, 0.0
        %v707 = vmax.f32 %v693, 0.0
        %v708 = vmax.f32 %v694, 0.0
        %v709 = vmax.f32 %v695, 0.0
        %v710 = vmax.f32 %v696, 0.0
        %v711 = vmax.f32 %v697, 0.0
        %v712 = vmax.f32 %v698, 0.0
        %v713 = vmax.f32 %v699, 0.0
        %v714 = vmax.f32 %v700, 0.0
        %v715 = vmax.f32 %v701, 0.0
        %v716 = vmax.f32 %v702, 0.0
        %v717 = vmax.f32 %v703, 0.0
        %v718 = vpack.c.bf16 %v711, %v704
        %v719 = vpack.c.bf16 %v712, %v705
        %v720 = vpack.c.bf16 %v713, %v706
        %v721 = vpack.c.bf16 %v714, %v707
        %v722 = vpack.c.bf16 %v715, %v708
        %v723 = vpack.c.bf16 %v716, %v709
        %v724 = vpack.c.bf16 %v717, %v710
        %v725 = vld [vmem:[%s3] sm:$0xff]
        %v726 = vld [vmem:[%s3 + $0x8] sm:$0xf]
        %v727 = vld [vmem:[%s3 + $0xc] sm:$0xff]
        %v728 = vld [vmem:[%s3 + $0x14] sm:$0xf]
        %v729 = vld [vmem:[%s3 + $0x18] sm:$0xff]
        %v730 = vld [vmem:[%s3 + $0x20] sm:$0xf]
        %v731 = vld [vmem:[%s3 + $0x24] sm:$0xff]
        %v732 = vld [vmem:[%s3 + $0x2c] sm:$0xf]
        %v733 = vld [vmem:[%s3 + $0x30] sm:$0xff]
        %v734 = vld [vmem:[%s3 + $0x38] sm:$0xf]
        %v735 = vld [vmem:[%s3 + $0x3c] sm:$0xff]
        %v736 = vld [vmem:[%s3 + $0x44] sm:$0xf]
        %v737 = vld [vmem:[%s3 + $0x48] sm:$0xff]
        %v738 = vld [vmem:[%s3 + $0x50] sm:$0xf]
        %v739 = vld [vmem:[%s3 + $0x54] sm:$0xff]
        %v740 = vld [vmem:[%s3 + $0x5c] sm:$0xf]
        %v741 = vld [vmem:[%s3 + $0x60] sm:$0xff]
        %v742 = vld [vmem:[%s3 + $0x68] sm:$0xf]
        %v743 = vld [vmem:[%s3 + $0x6c] sm:$0xff]
        %v744 = vld [vmem:[%s3 + $0x74] sm:$0xf]
        %v745 = vld [vmem:[%s3 + $0x78] sm:$0xff]
        %v746 = vld [vmem:[%s3 + $0x80] sm:$0xf]
        %v747 = vld [vmem:[%s3 + $0x84] sm:$0xff]
        %v748 = vld [vmem:[%s3 + $0x8c] sm:$0xf]
        %v749 = vld [vmem:[%s3 + $0x90] sm:$0xff]
        %v750 = vld [vmem:[%s3 + $0x98] sm:$0xf]
        %v751 = vld [vmem:[%s3 + $0x9c] sm:$0xff]
        %v752 = vld [vmem:[%s3 + $0xa4] sm:$0xf]
        %v753 = vld [vmem:[%s3 + $0xa8] sm:$0xff]
        %v754 = vld [vmem:[%s3 + $0xb0] sm:$0xf]
        %v755 = vld [vmem:[%s3 + $0xb4] sm:$0xff]
        %v756 = vld [vmem:[%s3 + $0xbc] sm:$0xf]
        %v757 = vld [vmem:[%s3 + $0xc0] sm:$0xff]
        %v758 = vld [vmem:[%s3 + $0xc8] sm:$0xf]
        %v759 = vld [vmem:[%s3 + $0xcc] sm:$0xff]
        %v760 = vld [vmem:[%s3 + $0xd4] sm:$0xf]
        %v761 = vld [vmem:[%s3 + $0xd8] sm:$0xff]
        %v762 = vld [vmem:[%s3 + $0xe0] sm:$0xf]
        %v763 = vld [vmem:[%s3 + $0xe4] sm:$0xff]
        %v764 = vld [vmem:[%s3 + $0xec] sm:$0xf]
        %v765 = vld [vmem:[%s3 + $0xf0] sm:$0xff]
        %v766 = vld [vmem:[%s3 + $0xf8] sm:$0xf]
        %v767 = vld [vmem:[%s3 + $0xfc] sm:$0xff]
        %v768 = vld [vmem:[%s3 + $0x104] sm:$0xf]
        %v769 = vld [vmem:[%s3 + $0x108] sm:$0xff]
        %v770 = vld [vmem:[%s3 + $0x110] sm:$0xf]
        %v771 = vld [vmem:[%s3 + $0x114] sm:$0xff]
        %v772 = vld [vmem:[%s3 + $0x11c] sm:$0xf]
        %v773 = vld [vmem:[%s3 + $0x120] sm:$0xff]
        %v774 = vld [vmem:[%s3 + $0x128] sm:$0xf]
        %v775 = vld [vmem:[%s3 + $0x12c] sm:$0xff]
        %v776 = vld [vmem:[%s3 + $0x134] sm:$0xf]
        %v777 = vld [vmem:[%s3 + $0x138] sm:$0xff]
        %v778 = vld [vmem:[%s3 + $0x140] sm:$0xf]
        %v779 = vld [vmem:[%s3 + $0x144] sm:$0xff]
        %v780 = vld [vmem:[%s3 + $0x14c] sm:$0xf]
        %v781 = vld [vmem:[%s3 + $0x150] sm:$0xff]
        %v782 = vld [vmem:[%s3 + $0x158] sm:$0xf]
        %v783 = vld [vmem:[%s3 + $0x15c] sm:$0xff]
        %v784 = vld [vmem:[%s3 + $0x164] sm:$0xf]
        %v785 = vld [vmem:[%s3 + $0x168] sm:$0xff]
        %v786 = vld [vmem:[%s3 + $0x170] sm:$0xf]
        %v787 = vld [vmem:[%s3 + $0x174] sm:$0xff]
        %v788 = vld [vmem:[%s3 + $0x17c] sm:$0xf]
        %v789 = vld [vmem:[%s3 + $0x180] sm:$0xff]
        %v790 = vld [vmem:[%s3 + $0x188] sm:$0xf]
        %v791 = vld [vmem:[%s3 + $0x18c] sm:$0xff]
        %v792 = vld [vmem:[%s3 + $0x194] sm:$0xf]
        %v793 = vld [vmem:[%s3 + $0x198] sm:$0xff]
        %v794 = vld [vmem:[%s3 + $0x1a0] sm:$0xf]
        %v795 = vld [vmem:[%s3 + $0x1a4] sm:$0xff]
        %v796 = vld [vmem:[%s3 + $0x1ac] sm:$0xf]
        %v797 = vld [vmem:[%s3 + $0x1b0] sm:$0xff]
        %v798 = vld [vmem:[%s3 + $0x1b8] sm:$0xf]
        %v799 = vld [vmem:[%s3 + $0x1bc] sm:$0xff]
        %v800 = vld [vmem:[%s3 + $0x1c4] sm:$0xf]
        %v801 = vld [vmem:[%s3 + $0x1c8] sm:$0xff]
        %v802 = vld [vmem:[%s3 + $0x1d0] sm:$0xf]
        %v803 = vld [vmem:[%s3 + $0x1d4] sm:$0xff]
        %v804 = vld [vmem:[%s3 + $0x1dc] sm:$0xf]
        %v805 = vld [vmem:[%s3 + $0x1e0] sm:$0xff]
        %v806 = vld [vmem:[%s3 + $0x1e8] sm:$0xf]
        %v807 = vld [vmem:[%s3 + $0x1ec] sm:$0xff]
        %v808 = vld [vmem:[%s3 + $0x1f4] sm:$0xf]
        %v809 = vld [vmem:[%s3 + $0x1f8] sm:$0xff]
        %v810 = vld [vmem:[%s3 + $0x200] sm:$0xf]
        %v811 = vld [vmem:[%s3 + $0x204] sm:$0xff]
        %v812 = vld [vmem:[%s3 + $0x20c] sm:$0xf]
        %v813 = vld [vmem:[%s3 + $0x210] sm:$0xff]
        %v814 = vld [vmem:[%s3 + $0x218] sm:$0xf]
        %v815 = vld [vmem:[%s3 + $0x21c] sm:$0xff]
        %v816 = vld [vmem:[%s3 + $0x224] sm:$0xf]
        %v817 = vld [vmem:[%s3 + $0x228] sm:$0xff]
        %v818 = vld [vmem:[%s3 + $0x230] sm:$0xf]
        %v819 = vld [vmem:[%s3 + $0x234] sm:$0xff]
        %v820 = vld [vmem:[%s3 + $0x23c] sm:$0xf]
        %v821 = vld [vmem:[%s3 + $0x240] sm:$0xff]
        %v822 = vld [vmem:[%s3 + $0x248] sm:$0xf]
        %v823 = vld [vmem:[%s3 + $0x24c] sm:$0xff]
        %v824 = vld [vmem:[%s3 + $0x254] sm:$0xf]
        %v825 = vld [vmem:[%s3 + $0x258] sm:$0xff]
        %v826 = vld [vmem:[%s3 + $0x260] sm:$0xf]
        %v827 = vld [vmem:[%s3 + $0x264] sm:$0xff]
        %v828 = vld [vmem:[%s3 + $0x26c] sm:$0xf]
        %v829 = vld [vmem:[%s3 + $0x270] sm:$0xff]
        %v830 = vld [vmem:[%s3 + $0x278] sm:$0xf]
        %v831 = vld [vmem:[%s3 + $0x27c] sm:$0xff]
        %v832 = vld [vmem:[%s3 + $0x284] sm:$0xf]
        %v833 = vld [vmem:[%s3 + $0x288] sm:$0xff]
        %v834 = vld [vmem:[%s3 + $0x290] sm:$0xf]
        %v835 = vld [vmem:[%s3 + $0x294] sm:$0xff]
        %v836 = vld [vmem:[%s3 + $0x29c] sm:$0xf]
        %v837 = vld [vmem:[%s3 + $0x2a0] sm:$0xff]
        %v838 = vld [vmem:[%s3 + $0x2a8] sm:$0xf]
        %v839 = vld [vmem:[%s3 + $0x2ac] sm:$0xff]
        %v840 = vld [vmem:[%s3 + $0x2b4] sm:$0xf]
        %v841 = vld [vmem:[%s3 + $0x2b8] sm:$0xff]
        %v842 = vld [vmem:[%s3 + $0x2c0] sm:$0xf]
        %v843 = vld [vmem:[%s3 + $0x2c4] sm:$0xff]
        %v844 = vld [vmem:[%s3 + $0x2cc] sm:$0xf]
        %v845 = vld [vmem:[%s3 + $0x2d0] sm:$0xff]
        %v846 = vld [vmem:[%s3 + $0x2d8] sm:$0xf]
        %v847 = vld [vmem:[%s3 + $0x2dc] sm:$0xff]
        %v848 = vld [vmem:[%s3 + $0x2e4] sm:$0xf]
        %v849 = vld [vmem:[%s3 + $0x2e8] sm:$0xff]
        %v850 = vld [vmem:[%s3 + $0x2f0] sm:$0xf]
        %v851 = vld [vmem:[%s3 + $0x2f4] sm:$0xff]
        %v852 = vld [vmem:[%s3 + $0x2fc] sm:$0xf]
        %v853 = vld [vmem:[%s3 + $0x300] sm:$0xff]
        %v854 = vld [vmem:[%s3 + $0x308] sm:$0xf]
        %v855 = vld [vmem:[%s3 + $0x30c] sm:$0xff]
        %v856 = vld [vmem:[%s3 + $0x314] sm:$0xf]
        %v857 = vld [vmem:[%s3 + $0x318] sm:$0xff]
        %v858 = vld [vmem:[%s3 + $0x320] sm:$0xf]
        %v859 = vld [vmem:[%s3 + $0x324] sm:$0xff]
        %v860 = vld [vmem:[%s3 + $0x32c] sm:$0xf]
        %v861 = vld [vmem:[%s3 + $0x330] sm:$0xff]
        %v862 = vld [vmem:[%s3 + $0x338] sm:$0xf]
        %v863 = vld [vmem:[%s3 + $0x33c] sm:$0xff]
        %v864 = vld [vmem:[%s3 + $0x344] sm:$0xf]
        %v865 = vld [vmem:[%s3 + $0x348] sm:$0xff]
        %v866 = vld [vmem:[%s3 + $0x350] sm:$0xf]
        %v867 = vld [vmem:[%s3 + $0x354] sm:$0xff]
        %v868 = vld [vmem:[%s3 + $0x35c] sm:$0xf]
        %v869 = vld [vmem:[%s3 + $0x360] sm:$0xff]
        %v870 = vld [vmem:[%s3 + $0x368] sm:$0xf]
        %v871 = vld [vmem:[%s3 + $0x36c] sm:$0xff]
        %v872 = vld [vmem:[%s3 + $0x374] sm:$0xf]
        %v873 = vld [vmem:[%s3 + $0x378] sm:$0xff]
        %v874 = vld [vmem:[%s3 + $0x380] sm:$0xf]
        %v875 = vld [vmem:[%s3 + $0x384] sm:$0xff]
        %v876 = vld [vmem:[%s3 + $0x38c] sm:$0xf]
        %v877 = vld [vmem:[%s3 + $0x390] sm:$0xff]
        %v878 = vld [vmem:[%s3 + $0x398] sm:$0xf]
        %v879 = vld [vmem:[%s3 + $0x39c] sm:$0xff]
        %v880 = vld [vmem:[%s3 + $0x3a4] sm:$0xf]
        %v881 = vld [vmem:[%s3 + $0x3a8] sm:$0xff]
        %v882 = vld [vmem:[%s3 + $0x3b0] sm:$0xf]
        %v883 = vld [vmem:[%s3 + $0x3b4] sm:$0xff]
        %v884 = vld [vmem:[%s3 + $0x3bc] sm:$0xf]
        %v885 = vld [vmem:[%s3 + $0x3c0] sm:$0xff]
        %v886 = vld [vmem:[%s3 + $0x3c8] sm:$0xf]
        %v887 = vld [vmem:[%s3 + $0x3cc] sm:$0xff]
        %v888 = vld [vmem:[%s3 + $0x3d4] sm:$0xf]
        %v889 = vld [vmem:[%s3 + $0x3d8] sm:$0xff]
        %v890 = vld [vmem:[%s3 + $0x3e0] sm:$0xf]
        %v891 = vld [vmem:[%s3 + $0x3e4] sm:$0xff]
        %v892 = vld [vmem:[%s3 + $0x3ec] sm:$0xf]
        %v893 = vld [vmem:[%s3 + $0x3f0] sm:$0xff]
        %v894 = vld [vmem:[%s3 + $0x3f8] sm:$0xf]
        %v895 = vld [vmem:[%s3 + $0x3fc] sm:$0xff]
        %v896 = vld [vmem:[%s3 + $0x404] sm:$0xf]
        %v897 = vld [vmem:[%s3 + $0x408] sm:$0xff]
        %v898 = vld [vmem:[%s3 + $0x410] sm:$0xf]
        %v899 = vld [vmem:[%s3 + $0x414] sm:$0xff]
        %v900 = vld [vmem:[%s3 + $0x41c] sm:$0xf]
        %v901 = vld [vmem:[%s3 + $0x420] sm:$0xff]
        %v902 = vld [vmem:[%s3 + $0x428] sm:$0xf]
        %v903 = vld [vmem:[%s3 + $0x42c] sm:$0xff]
        %v904 = vld [vmem:[%s3 + $0x434] sm:$0xf]
        %v905 = vld [vmem:[%s3 + $0x438] sm:$0xff]
        %v906 = vld [vmem:[%s3 + $0x440] sm:$0xf]
        %v907 = vld [vmem:[%s3 + $0x444] sm:$0xff]
        %v908 = vld [vmem:[%s3 + $0x44c] sm:$0xf]
        %v909 = vld [vmem:[%s3 + $0x450] sm:$0xff]
        %v910 = vld [vmem:[%s3 + $0x458] sm:$0xf]
        %v911 = vld [vmem:[%s3 + $0x45c] sm:$0xff]
        %v912 = vld [vmem:[%s3 + $0x464] sm:$0xf]
        %v913 = vld [vmem:[%s3 + $0x468] sm:$0xff]
        %v914 = vld [vmem:[%s3 + $0x470] sm:$0xf]
        %v915 = vld [vmem:[%s3 + $0x474] sm:$0xff]
        %v916 = vld [vmem:[%s3 + $0x47c] sm:$0xf]
        %v917 = vld [vmem:[%s3 + $0x480] sm:$0xff]
        %v918 = vld [vmem:[%s3 + $0x488] sm:$0xf]
        %v919 = vld [vmem:[%s3 + $0x48c] sm:$0xff]
        %v920 = vld [vmem:[%s3 + $0x494] sm:$0xf]
        %v921 = vld [vmem:[%s3 + $0x498] sm:$0xff]
        %v922 = vld [vmem:[%s3 + $0x4a0] sm:$0xf]
        %v923 = vld [vmem:[%s3 + $0x4a4] sm:$0xff]
        %v924 = vld [vmem:[%s3 + $0x4ac] sm:$0xf]
        %v925 = vld [vmem:[%s3 + $0x4b0] sm:$0xff]
        %v926 = vld [vmem:[%s3 + $0x4b8] sm:$0xf]
        %v927 = vld [vmem:[%s3 + $0x4bc] sm:$0xff]
        %v928 = vld [vmem:[%s3 + $0x4c4] sm:$0xf]
        %v929 = vld [vmem:[%s3 + $0x4c8] sm:$0xff]
        %v930 = vld [vmem:[%s3 + $0x4d0] sm:$0xf]
        %v931 = vld [vmem:[%s3 + $0x4d4] sm:$0xff]
        %v932 = vld [vmem:[%s3 + $0x4dc] sm:$0xf]
        %v933 = vld [vmem:[%s3 + $0x4e0] sm:$0xff]
        %v934 = vld [vmem:[%s3 + $0x4e8] sm:$0xf]
        %v935 = vld [vmem:[%s3 + $0x4ec] sm:$0xff]
        %v936 = vld [vmem:[%s3 + $0x4f4] sm:$0xf]
        %v937 = vld [vmem:[%s3 + $0x4f8] sm:$0xff]
        %v938 = vld [vmem:[%s3 + $0x500] sm:$0xf]
        %v939 = vld [vmem:[%s3 + $0x504] sm:$0xff]
        %v940 = vld [vmem:[%s3 + $0x50c] sm:$0xf]
        %v941 = vld [vmem:[%s3 + $0x510] sm:$0x77]
        %v942 = vld [vmem:[%s3 + $0x518] sm:$0x7]
        %v1161 = vunpack.c.l.b16 %v725
        %v1162 = vunpack.c.h.b16 %v725
        %v1163 = vunpack.c.l.b16 %v726
        %v1164 = vunpack.c.l.b16 %v727
        %v1165 = vunpack.c.h.b16 %v727
        %v1166 = vunpack.c.l.b16 %v728
        %v1167 = vunpack.c.l.b16 %v729
        %v1168 = vunpack.c.h.b16 %v729
        %v1169 = vunpack.c.l.b16 %v730
        %v1170 = vunpack.c.l.b16 %v731
        %v1171 = vunpack.c.h.b16 %v731
        %v1172 = vunpack.c.l.b16 %v732
        %v1173 = vunpack.c.l.b16 %v733
        %v1174 = vunpack.c.h.b16 %v733
        %v1175 = vunpack.c.l.b16 %v734
        %v1176 = vunpack.c.l.b16 %v735
        %v1177 = vunpack.c.h.b16 %v735
        %v1178 = vunpack.c.l.b16 %v736
        %v1179 = vunpack.c.l.b16 %v737
        %v1180 = vunpack.c.h.b16 %v737
        %v1181 = vunpack.c.l.b16 %v738
        %v1182 = vunpack.c.l.b16 %v739
        %v1183 = vunpack.c.h.b16 %v739
        %v1184 = vunpack.c.l.b16 %v740
        %v1185 = vunpack.c.l.b16 %v741
        %v1186 = vunpack.c.h.b16 %v741
        %v1187 = vunpack.c.l.b16 %v742
        %v1188 = vunpack.c.l.b16 %v743
        %v1189 = vunpack.c.h.b16 %v743
        %v1190 = vunpack.c.l.b16 %v744
        %v1191 = vunpack.c.l.b16 %v745
        %v1192 = vunpack.c.h.b16 %v745
        %v1193 = vunpack.c.l.b16 %v746
        %v1194 = vunpack.c.l.b16 %v747
        %v1195 = vunpack.c.h.b16 %v747
        %v1196 = vunpack.c.l.b16 %v748
        %v1197 = vunpack.c.l.b16 %v749
        %v1198 = vunpack.c.h.b16 %v749
        %v1199 = vunpack.c.l.b16 %v750
        %v1200 = vunpack.c.l.b16 %v751
        %v1201 = vunpack.c.h.b16 %v751
        %v1202 = vunpack.c.l.b16 %v752
        %v1203 = vunpack.c.l.b16 %v753
        %v1204 = vunpack.c.h.b16 %v753
        %v1205 = vunpack.c.l.b16 %v754
        %v1206 = vunpack.c.l.b16 %v755
        %v1207 = vunpack.c.h.b16 %v755
        %v1208 = vunpack.c.l.b16 %v756
        %v1209 = vunpack.c.l.b16 %v757
        %v1210 = vunpack.c.h.b16 %v757
        %v1211 = vunpack.c.l.b16 %v758
        %v1212 = vunpack.c.l.b16 %v759
        %v1213 = vunpack.c.h.b16 %v759
        %v1214 = vunpack.c.l.b16 %v760
        %v1215 = vunpack.c.l.b16 %v761
        %v1216 = vunpack.c.h.b16 %v761
        %v1217 = vunpack.c.l.b16 %v762
        %v1218 = vunpack.c.l.b16 %v763
        %v1219 = vunpack.c.h.b16 %v763
        %v1220 = vunpack.c.l.b16 %v764
        %v1221 = vunpack.c.l.b16 %v765
        %v1222 = vunpack.c.h.b16 %v765
        %v1223 = vunpack.c.l.b16 %v766
        %v1224 = vunpack.c.l.b16 %v767
        %v1225 = vunpack.c.h.b16 %v767
        %v1226 = vunpack.c.l.b16 %v768
        %v1227 = vunpack.c.l.b16 %v769
        %v1228 = vunpack.c.h.b16 %v769
        %v1229 = vunpack.c.l.b16 %v770
        %v1230 = vunpack.c.l.b16 %v771
        %v1231 = vunpack.c.h.b16 %v771
        %v1232 = vunpack.c.l.b16 %v772
        %v1233 = vunpack.c.l.b16 %v773
        %v1234 = vunpack.c.h.b16 %v773
        %v1235 = vunpack.c.l.b16 %v774
        %v1236 = vunpack.c.l.b16 %v775
        %v1237 = vunpack.c.h.b16 %v775
        %v1238 = vunpack.c.l.b16 %v776
        %v1239 = vunpack.c.l.b16 %v777
        %v1240 = vunpack.c.h.b16 %v777
        %v1241 = vunpack.c.l.b16 %v778
        %v1242 = vunpack.c.l.b16 %v779
        %v1243 = vunpack.c.h.b16 %v779
        %v1244 = vunpack.c.l.b16 %v780
        %v1245 = vunpack.c.l.b16 %v781
        %v1246 = vunpack.c.h.b16 %v781
        %v1247 = vunpack.c.l.b16 %v782
        %v1248 = vunpack.c.l.b16 %v783
        %v1249 = vunpack.c.h.b16 %v783
        %v1250 = vunpack.c.l.b16 %v784
        %v1251 = vunpack.c.l.b16 %v785
        %v1252 = vunpack.c.h.b16 %v785
        %v1253 = vunpack.c.l.b16 %v786
        %v1254 = vunpack.c.l.b16 %v787
        %v1255 = vunpack.c.h.b16 %v787
        %v1256 = vunpack.c.l.b16 %v788
        %v1257 = vunpack.c.l.b16 %v789
        %v1258 = vunpack.c.h.b16 %v789
        %v1259 = vunpack.c.l.b16 %v790
        %v1260 = vunpack.c.l.b16 %v791
        %v1261 = vunpack.c.h.b16 %v791
        %v1262 = vunpack.c.l.b16 %v792
        %v1263 = vunpack.c.l.b16 %v793
        %v1264 = vunpack.c.h.b16 %v793
        %v1265 = vunpack.c.l.b16 %v794
        %v1266 = vunpack.c.l.b16 %v795
        %v1267 = vunpack.c.h.b16 %v795
        %v1268 = vunpack.c.l.b16 %v796
        %v1269 = vunpack.c.l.b16 %v797
        %v1270 = vunpack.c.h.b16 %v797
        %v1271 = vunpack.c.l.b16 %v798
        %v1272 = vunpack.c.l.b16 %v799
        %v1273 = vunpack.c.h.b16 %v799
        %v1274 = vunpack.c.l.b16 %v800
        %v1275 = vunpack.c.l.b16 %v801
        %v1276 = vunpack.c.h.b16 %v801
        %v1277 = vunpack.c.l.b16 %v802
        %v1278 = vunpack.c.l.b16 %v803
        %v1279 = vunpack.c.h.b16 %v803
        %v1280 = vunpack.c.l.b16 %v804
        %v1281 = vunpack.c.l.b16 %v805
        %v1282 = vunpack.c.h.b16 %v805
        %v1283 = vunpack.c.l.b16 %v806
        %v1284 = vunpack.c.l.b16 %v807
        %v1285 = vunpack.c.h.b16 %v807
        %v1286 = vunpack.c.l.b16 %v808
        %v1287 = vunpack.c.l.b16 %v809
        %v1288 = vunpack.c.h.b16 %v809
        %v1289 = vunpack.c.l.b16 %v810
        %v1290 = vunpack.c.l.b16 %v811
        %v1291 = vunpack.c.h.b16 %v811
        %v1292 = vunpack.c.l.b16 %v812
        %v1293 = vunpack.c.l.b16 %v813
        %v1294 = vunpack.c.h.b16 %v813
        %v1295 = vunpack.c.l.b16 %v814
        %v1296 = vunpack.c.l.b16 %v815
        %v1297 = vunpack.c.h.b16 %v815
        %v1298 = vunpack.c.l.b16 %v816
        %v1299 = vunpack.c.l.b16 %v817
        %v1300 = vunpack.c.h.b16 %v817
        %v1301 = vunpack.c.l.b16 %v818
        %v1302 = vunpack.c.l.b16 %v819
        %v1303 = vunpack.c.h.b16 %v819
        %v1304 = vunpack.c.l.b16 %v820
        %v1305 = vunpack.c.l.b16 %v821
        %v1306 = vunpack.c.h.b16 %v821
        %v1307 = vunpack.c.l.b16 %v822
        %v1308 = vunpack.c.l.b16 %v823
        %v1309 = vunpack.c.h.b16 %v823
        %v1310 = vunpack.c.l.b16 %v824
        %v1311 = vunpack.c.l.b16 %v825
        %v1312 = vunpack.c.h.b16 %v825
        %v1313 = vunpack.c.l.b16 %v826
        %v1314 = vunpack.c.l.b16 %v827
        %v1315 = vunpack.c.h.b16 %v827
        %v1316 = vunpack.c.l.b16 %v828
        %v1317 = vunpack.c.l.b16 %v829
        %v1318 = vunpack.c.h.b16 %v829
        %v1319 = vunpack.c.l.b16 %v830
        %v1320 = vunpack.c.l.b16 %v831
        %v1321 = vunpack.c.h.b16 %v831
        %v1322 = vunpack.c.l.b16 %v832
        %v1323 = vunpack.c.l.b16 %v833
        %v1324 = vunpack.c.h.b16 %v833
        %v1325 = vunpack.c.l.b16 %v834
        %v1326 = vunpack.c.l.b16 %v835
        %v1327 = vunpack.c.h.b16 %v835
        %v1328 = vunpack.c.l.b16 %v836
        %v1329 = vunpack.c.l.b16 %v837
        %v1330 = vunpack.c.h.b16 %v837
        %v1331 = vunpack.c.l.b16 %v838
        %v1332 = vunpack.c.l.b16 %v839
        %v1333 = vunpack.c.h.b16 %v839
        %v1334 = vunpack.c.l.b16 %v840
        %v1335 = vunpack.c.l.b16 %v841
        %v1336 = vunpack.c.h.b16 %v841
        %v1337 = vunpack.c.l.b16 %v842
        %v1338 = vunpack.c.l.b16 %v843
        %v1339 = vunpack.c.h.b16 %v843
        %v1340 = vunpack.c.l.b16 %v844
        %v1341 = vunpack.c.l.b16 %v845
        %v1342 = vunpack.c.h.b16 %v845
        %v1343 = vunpack.c.l.b16 %v846
        %v1344 = vunpack.c.l.b16 %v847
        %v1345 = vunpack.c.h.b16 %v847
        %v1346 = vunpack.c.l.b16 %v848
        %v1347 = vunpack.c.l.b16 %v849
        %v1348 = vunpack.c.h.b16 %v849
        %v1349 = vunpack.c.l.b16 %v850
        %v1350 = vunpack.c.l.b16 %v851
        %v1351 = vunpack.c.h.b16 %v851
        %v1352 = vunpack.c.l.b16 %v852
        %v1353 = vunpack.c.l.b16 %v853
        %v1354 = vunpack.c.h.b16 %v853
        %v1355 = vunpack.c.l.b16 %v854
        %v1356 = vunpack.c.l.b16 %v855
        %v1357 = vunpack.c.h.b16 %v855
        %v1358 = vunpack.c.l.b16 %v856
        %v1359 = vunpack.c.l.b16 %v857
        %v1360 = vunpack.c.h.b16 %v857
        %v1361 = vunpack.c.l.b16 %v858
        %v1362 = vunpack.c.l.b16 %v859
        %v1363 = vunpack.c.h.b16 %v859
        %v1364 = vunpack.c.l.b16 %v860
        %v1365 = vunpack.c.l.b16 %v861
        %v1366 = vunpack.c.h.b16 %v861
        %v1367 = vunpack.c.l.b16 %v862
        %v1368 = vunpack.c.l.b16 %v863
        %v1369 = vunpack.c.h.b16 %v863
        %v1370 = vunpack.c.l.b16 %v864
        %v1371 = vunpack.c.l.b16 %v865
        %v1372 = vunpack.c.h.b16 %v865
        %v1373 = vunpack.c.l.b16 %v866
        %v1374 = vunpack.c.l.b16 %v867
        %v1375 = vunpack.c.h.b16 %v867
        %v1376 = vunpack.c.l.b16 %v868
        %v1377 = vunpack.c.l.b16 %v869
        %v1378 = vunpack.c.h.b16 %v869
        %v1379 = vunpack.c.l.b16 %v870
        %v1380 = vunpack.c.l.b16 %v871
        %v1381 = vunpack.c.h.b16 %v871
        %v1382 = vunpack.c.l.b16 %v872
        %v1383 = vunpack.c.l.b16 %v873
        %v1384 = vunpack.c.h.b16 %v873
        %v1385 = vunpack.c.l.b16 %v874
        %v1386 = vunpack.c.l.b16 %v875
        %v1387 = vunpack.c.h.b16 %v875
        %v1388 = vunpack.c.l.b16 %v876
        %v1389 = vunpack.c.l.b16 %v877
        %v1390 = vunpack.c.h.b16 %v877
        %v1391 = vunpack.c.l.b16 %v878
        %v1392 = vunpack.c.l.b16 %v879
        %v1393 = vunpack.c.h.b16 %v879
        %v1394 = vunpack.c.l.b16 %v880
        %v1395 = vunpack.c.l.b16 %v881
        %v1396 = vunpack.c.h.b16 %v881
        %v1397 = vunpack.c.l.b16 %v882
        %v1398 = vunpack.c.l.b16 %v883
        %v1399 = vunpack.c.h.b16 %v883
        %v1400 = vunpack.c.l.b16 %v884
        %v1401 = vunpack.c.l.b16 %v885
        %v1402 = vunpack.c.h.b16 %v885
        %v1403 = vunpack.c.l.b16 %v886
        %v1404 = vunpack.c.l.b16 %v887
        %v1405 = vunpack.c.h.b16 %v887
        %v1406 = vunpack.c.l.b16 %v888
        %v1407 = vunpack.c.l.b16 %v889
        %v1408 = vunpack.c.h.b16 %v889
        %v1409 = vunpack.c.l.b16 %v890
        %v1410 = vunpack.c.l.b16 %v891
        %v1411 = vunpack.c.h.b16 %v891
        %v1412 = vunpack.c.l.b16 %v892
        %v1413 = vunpack.c.l.b16 %v893
        %v1414 = vunpack.c.h.b16 %v893
        %v1415 = vunpack.c.l.b16 %v894
        %v1416 = vunpack.c.l.b16 %v895
        %v1417 = vunpack.c.h.b16 %v895
        %v1418 = vunpack.c.l.b16 %v896
        %v1419 = vunpack.c.l.b16 %v897
        %v1420 = vunpack.c.h.b16 %v897
        %v1421 = vunpack.c.l.b16 %v898
        %v1422 = vunpack.c.l.b16 %v899
        %v1423 = vunpack.c.h.b16 %v899
        %v1424 = vunpack.c.l.b16 %v900
        %v1425 = vunpack.c.l.b16 %v901
        %v1426 = vunpack.c.h.b16 %v901
        %v1427 = vunpack.c.l.b16 %v902
        %v1428 = vunpack.c.l.b16 %v903
        %v1429 = vunpack.c.h.b16 %v903
        %v1430 = vunpack.c.l.b16 %v904
        %v1431 = vunpack.c.l.b16 %v905
        %v1432 = vunpack.c.h.b16 %v905
        %v1433 = vunpack.c.l.b16 %v906
        %v1434 = vunpack.c.l.b16 %v907
        %v1435 = vunpack.c.h.b16 %v907
        %v1436 = vunpack.c.l.b16 %v908
        %v1437 = vunpack.c.l.b16 %v909
        %v1438 = vunpack.c.h.b16 %v909
        %v1439 = vunpack.c.l.b16 %v910
        %v1440 = vunpack.c.l.b16 %v911
        %v1441 = vunpack.c.h.b16 %v911
        %v1442 = vunpack.c.l.b16 %v912
        %v1443 = vunpack.c.l.b16 %v913
        %v1444 = vunpack.c.h.b16 %v913
        %v1445 = vunpack.c.l.b16 %v914
        %v1446 = vunpack.c.l.b16 %v915
        %v1447 = vunpack.c.h.b16 %v915
        %v1448 = vunpack.c.l.b16 %v916
        %v1449 = vunpack.c.l.b16 %v917
        %v1450 = vunpack.c.h.b16 %v917
        %v1451 = vunpack.c.l.b16 %v918
        %v1452 = vunpack.c.l.b16 %v919
        %v1453 = vunpack.c.h.b16 %v919
        %v1454 = vunpack.c.l.b16 %v920
        %v1455 = vunpack.c.l.b16 %v921
        %v1456 = vunpack.c.h.b16 %v921
        %v1457 = vunpack.c.l.b16 %v922
        %v1458 = vunpack.c.l.b16 %v923
        %v1459 = vunpack.c.h.b16 %v923
        %v1460 = vunpack.c.l.b16 %v924
        %v1461 = vunpack.c.l.b16 %v925
        %v1462 = vunpack.c.h.b16 %v925
        %v1463 = vunpack.c.l.b16 %v926
        %v1464 = vunpack.c.l.b16 %v927
        %v1465 = vunpack.c.h.b16 %v927
        %v1466 = vunpack.c.l.b16 %v928
        %v1467 = vunpack.c.l.b16 %v929
        %v1468 = vunpack.c.h.b16 %v929
        %v1469 = vunpack.c.l.b16 %v930
        %v1470 = vunpack.c.l.b16 %v931
        %v1471 = vunpack.c.h.b16 %v931
        %v1472 = vunpack.c.l.b16 %v932
        %v1473 = vunpack.c.l.b16 %v933
        %v1474 = vunpack.c.h.b16 %v933
        %v1475 = vunpack.c.l.b16 %v934
        %v1476 = vunpack.c.l.b16 %v935
        %v1477 = vunpack.c.h.b16 %v935
        %v1478 = vunpack.c.l.b16 %v936
        %v1479 = vunpack.c.l.b16 %v937
        %v1480 = vunpack.c.h.b16 %v937
        %v1481 = vunpack.c.l.b16 %v938
        %v1482 = vunpack.c.l.b16 %v939
        %v1483 = vunpack.c.h.b16 %v939
        %v1484 = vunpack.c.l.b16 %v940
        %v1485 = vunpack.c.l.b16 %v941
        %v1486 = vunpack.c.h.b16 %v941
        %v1487 = vunpack.c.l.b16 %v942
        %v1488 = vpack.c.b16 %v1164, %v1161
        %v1489 = vpack.c.b16 %v1165, %v1162
        %v1490 = vpack.c.b16 %v1166, %v1163
        %v1491 = vpack.c.b16 %v1170, %v1167
        %v1492 = vpack.c.b16 %v1171, %v1168
        %v1493 = vpack.c.b16 %v1172, %v1169
        %v1494 = vpack.c.b16 %v1176, %v1173
        %v1495 = vpack.c.b16 %v1177, %v1174
        %v1496 = vpack.c.b16 %v1178, %v1175
        %v1497 = vpack.c.b16 %v1182, %v1179
        %v1498 = vpack.c.b16 %v1183, %v1180
        %v1499 = vpack.c.b16 %v1184, %v1181
        %v1500 = vpack.c.b16 %v1188, %v1185
        %v1501 = vpack.c.b16 %v1189, %v1186
        %v1502 = vpack.c.b16 %v1190, %v1187
        %v1503 = vpack.c.b16 %v1194, %v1191
        %v1504 = vpack.c.b16 %v1195, %v1192
        %v1505 = vpack.c.b16 %v1196, %v1193
        %v1506 = vpack.c.b16 %v1200, %v1197
        %v1507 = vpack.c.b16 %v1201, %v1198
        %v1508 = vpack.c.b16 %v1202, %v1199
        %v1509 = vpack.c.b16 %v1206, %v1203
        %v1510 = vpack.c.b16 %v1207, %v1204
        %v1511 = vpack.c.b16 %v1208, %v1205
        %v1512 = vpack.c.b16 %v1212, %v1209
        %v1513 = vpack.c.b16 %v1213, %v1210
        %v1514 = vpack.c.b16 %v1214, %v1211
        %v1515 = vpack.c.b16 %v1218, %v1215
        %v1516 = vpack.c.b16 %v1219, %v1216
        %v1517 = vpack.c.b16 %v1220, %v1217
        %v1518 = vpack.c.b16 %v1224, %v1221
        %v1519 = vpack.c.b16 %v1225, %v1222
        %v1520 = vpack.c.b16 %v1226, %v1223
        %v1521 = vpack.c.b16 %v1230, %v1227
        %v1522 = vpack.c.b16 %v1231, %v1228
        %v1523 = vpack.c.b16 %v1232, %v1229
        %v1524 = vpack.c.b16 %v1236, %v1233
        %v1525 = vpack.c.b16 %v1237, %v1234
        %v1526 = vpack.c.b16 %v1238, %v1235
        %v1527 = vpack.c.b16 %v1242, %v1239
        %v1528 = vpack.c.b16 %v1243, %v1240
        %v1529 = vpack.c.b16 %v1244, %v1241
        %v1530 = vpack.c.b16 %v1248, %v1245
        %v1531 = vpack.c.b16 %v1249, %v1246
        %v1532 = vpack.c.b16 %v1250, %v1247
        %v1533 = vpack.c.b16 %v1254, %v1251
        %v1534 = vpack.c.b16 %v1255, %v1252
        %v1535 = vpack.c.b16 %v1256, %v1253
        %v1536 = vpack.c.b16 %v1260, %v1257
        %v1537 = vpack.c.b16 %v1261, %v1258
        %v1538 = vpack.c.b16 %v1262, %v1259
        %v1539 = vpack.c.b16 %v1266, %v1263
        %v1540 = vpack.c.b16 %v1267, %v1264
        %v1541 = vpack.c.b16 %v1268, %v1265
        %v1542 = vpack.c.b16 %v1272, %v1269
        %v1543 = vpack.c.b16 %v1273, %v1270
        %v1544 = vpack.c.b16 %v1274, %v1271
        %v1545 = vpack.c.b16 %v1278, %v1275
        %v1546 = vpack.c.b16 %v1279, %v1276
        %v1547 = vpack.c.b16 %v1280, %v1277
        %v1548 = vpack.c.b16 %v1284, %v1281
        %v1549 = vpack.c.b16 %v1285, %v1282
        %v1550 = vpack.c.b16 %v1286, %v1283
        %v1551 = vpack.c.b16 %v1290, %v1287
        %v1552 = vpack.c.b16 %v1291, %v1288
        %v1553 = vpack.c.b16 %v1292, %v1289
        %v1554 = vpack.c.b16 %v1296, %v1293
        %v1555 = vpack.c.b16 %v1297, %v1294
        %v1556 = vpack.c.b16 %v1298, %v1295
        %v1557 = vpack.c.b16 %v1302, %v1299
        %v1558 = vpack.c.b16 %v1303, %v1300
        %v1559 = vpack.c.b16 %v1304, %v1301
        %v1560 = vpack.c.b16 %v1308, %v1305
        %v1561 = vpack.c.b16 %v1309, %v1306
        %v1562 = vpack.c.b16 %v1310, %v1307
        %v1563 = vpack.c.b16 %v1314, %v1311
        %v1564 = vpack.c.b16 %v1315, %v1312
        %v1565 = vpack.c.b16 %v1316, %v1313
        %v1566 = vpack.c.b16 %v1320, %v1317
        %v1567 = vpack.c.b16 %v1321, %v1318
        %v1568 = vpack.c.b16 %v1322, %v1319
        %v1569 = vpack.c.b16 %v1326, %v1323
        %v1570 = vpack.c.b16 %v1327, %v1324
        %v1571 = vpack.c.b16 %v1328, %v1325
        %v1572 = vpack.c.b16 %v1332, %v1329
        %v1573 = vpack.c.b16 %v1333, %v1330
        %v1574 = vpack.c.b16 %v1334, %v1331
        %v1575 = vpack.c.b16 %v1338, %v1335
        %v1576 = vpack.c.b16 %v1339, %v1336
        %v1577 = vpack.c.b16 %v1340, %v1337
        %v1578 = vpack.c.b16 %v1344, %v1341
        %v1579 = vpack.c.b16 %v1345, %v1342
        %v1580 = vpack.c.b16 %v1346, %v1343
        %v1581 = vpack.c.b16 %v1350, %v1347
        %v1582 = vpack.c.b16 %v1351, %v1348
        %v1583 = vpack.c.b16 %v1352, %v1349
        %v1584 = vpack.c.b16 %v1356, %v1353
        %v1585 = vpack.c.b16 %v1357, %v1354
        %v1586 = vpack.c.b16 %v1358, %v1355
        %v1587 = vpack.c.b16 %v1362, %v1359
        %v1588 = vpack.c.b16 %v1363, %v1360
        %v1589 = vpack.c.b16 %v1364, %v1361
        %v1590 = vpack.c.b16 %v1368, %v1365
        %v1591 = vpack.c.b16 %v1369, %v1366
        %v1592 = vpack.c.b16 %v1370, %v1367
        %v1593 = vpack.c.b16 %v1374, %v1371
        %v1594 = vpack.c.b16 %v1375, %v1372
        %v1595 = vpack.c.b16 %v1376, %v1373
        %v1596 = vpack.c.b16 %v1380, %v1377
        %v1597 = vpack.c.b16 %v1381, %v1378
        %v1598 = vpack.c.b16 %v1382, %v1379
        %v1599 = vpack.c.b16 %v1386, %v1383
        %v1600 = vpack.c.b16 %v1387, %v1384
        %v1601 = vpack.c.b16 %v1388, %v1385
        %v1602 = vpack.c.b16 %v1392, %v1389
        %v1603 = vpack.c.b16 %v1393, %v1390
        %v1604 = vpack.c.b16 %v1394, %v1391
        %v1605 = vpack.c.b16 %v1398, %v1395
        %v1606 = vpack.c.b16 %v1399, %v1396
        %v1607 = vpack.c.b16 %v1400, %v1397
        %v1608 = vpack.c.b16 %v1404, %v1401
        %v1609 = vpack.c.b16 %v1405, %v1402
        %v1610 = vpack.c.b16 %v1406, %v1403
        %v1611 = vpack.c.b16 %v1410, %v1407
        %v1612 = vpack.c.b16 %v1411, %v1408
        %v1613 = vpack.c.b16 %v1412, %v1409
        %v1614 = vpack.c.b16 %v1416, %v1413
        %v1615 = vpack.c.b16 %v1417, %v1414
        %v1616 = vpack.c.b16 %v1418, %v1415
        %v1617 = vpack.c.b16 %v1422, %v1419
        %v1618 = vpack.c.b16 %v1423, %v1420
        %v1619 = vpack.c.b16 %v1424, %v1421
        %v1620 = vpack.c.b16 %v1428, %v1425
        %v1621 = vpack.c.b16 %v1429, %v1426
        %v1622 = vpack.c.b16 %v1430, %v1427
        %v1623 = vpack.c.b16 %v1434, %v1431
        %v1624 = vpack.c.b16 %v1435, %v1432
        %v1625 = vpack.c.b16 %v1436, %v1433
        %v1626 = vpack.c.b16 %v1440, %v1437
        %v1627 = vpack.c.b16 %v1441, %v1438
        %v1628 = vpack.c.b16 %v1442, %v1439
        %v1629 = vpack.c.b16 %v1446, %v1443
        %v1630 = vpack.c.b16 %v1447, %v1444
        %v1631 = vpack.c.b16 %v1448, %v1445
        %v1632 = vpack.c.b16 %v1452, %v1449
        %v1633 = vpack.c.b16 %v1453, %v1450
        %v1634 = vpack.c.b16 %v1454, %v1451
        %v1635 = vpack.c.b16 %v1458, %v1455
        %v1636 = vpack.c.b16 %v1459, %v1456
        %v1637 = vpack.c.b16 %v1460, %v1457
        %v1638 = vpack.c.b16 %v1464, %v1461
        %v1639 = vpack.c.b16 %v1465, %v1462
        %v1640 = vpack.c.b16 %v1466, %v1463
        %v1641 = vpack.c.b16 %v1470, %v1467
        %v1642 = vpack.c.b16 %v1471, %v1468
        %v1643 = vpack.c.b16 %v1472, %v1469
        %v1644 = vpack.c.b16 %v1476, %v1473
        %v1645 = vpack.c.b16 %v1477, %v1474
        %v1646 = vpack.c.b16 %v1478, %v1475
        %v1647 = vpack.c.b16 %v1482, %v1479
        %v1648 = vpack.c.b16 %v1483, %v1480
        %v1649 = vpack.c.b16 %v1484, %v1481
        %v1650 = vpack.c.b16 %v1485, %v1485
        %v1651 = vpack.c.b16 %v1486, %v1486
        %v1652 = vpack.c.b16 %v1487, %v1487
        %vm1815 = vcmask 834560
        %v1817 = vsel %vm1815, %v724, 0
        %vm1819 = vcmask 1042432
        %v1821 = vsel %vm1819, %v1650, 0
        %v1824 = vsel %vm1819, %v1651, 0
        %v1827 = vsel %vm1819, %v1652, 0
        %1829 = vmatpush.bf16.msra.mxu0 %v1509
        %1830 = vmatpush.bf16.msra.mxu0 %v1506
        %1831 = vmatpush.bf16.msra.mxu0 %v1503
        %1832 = vmatpush.bf16.msra.mxu0 %v1500
        %1833 = vmatpush.bf16.msra.mxu0 %v1497
        %1834 = vmatpush.bf16.msra.mxu0 %v1494
        %1835 = vmatpush.bf16.msra.mxu0 %v1491
        %1836 = vmatpush.bf16.msra.mxu0 %v1488
        %1837 = vmatmul.bf16.gmra.mxu0 %v718
        %v1838 = vpop.f32.mrf.mxu0
        %v1839 = vadd.f32 0.0, %v1838
        %v1840 = vpop.f32.mrf.mxu0
        %v1841 = vadd.f32 0.0, %v1840
        %1842 = vdwg.mxu0
        %1843 = vmatpush.bf16.msra.mxu0 %v1533
        %1844 = vmatpush.bf16.msra.mxu0 %v1530
        %1845 = vmatpush.bf16.msra.mxu0 %v1527
        %1846 = vmatpush.bf16.msra.mxu0 %v1524
        %1847 = vmatpush.bf16.msra.mxu0 %v1521
        %1848 = vmatpush.bf16.msra.mxu0 %v1518
        %1849 = vmatpush.bf16.msra.mxu0 %v1515
        %1850 = vmatpush.bf16.msra.mxu0 %v1512
        %1851 = vmatmul.bf16.gmra.mxu0 %v719
        %v1852 = vpop.f32.mrf.mxu0
        %v1853 = vadd.f32 %v1839, %v1852
        %v1854 = vpop.f32.mrf.mxu0
        %v1855 = vadd.f32 %v1841, %v1854
        %1856 = vdwg.mxu0
        %1857 = vmatpush.bf16.msra.mxu0 %v1557
        %1858 = vmatpush.bf16.msra.mxu0 %v1554
        %1859 = vmatpush.bf16.msra.mxu0 %v1551
        %1860 = vmatpush.bf16.msra.mxu0 %v1548
        %1861 = vmatpush.bf16.msra.mxu0 %v1545
        %1862 = vmatpush.bf16.msra.mxu0 %v1542
        %1863 = vmatpush.bf16.msra.mxu0 %v1539
        %1864 = vmatpush.bf16.msra.mxu0 %v1536
        %1865 = vmatmul.bf16.gmra.mxu0 %v720
        %v1866 = vpop.f32.mrf.mxu0
        %v1867 = vadd.f32 %v1853, %v1866
        %v1868 = vpop.f32.mrf.mxu0
        %v1869 = vadd.f32 %v1855, %v1868
        %1870 = vdwg.mxu0
        %1871 = vmatpush.bf16.msra.mxu0 %v1581
        %1872 = vmatpush.bf16.msra.mxu0 %v1578
        %1873 = vmatpush.bf16.msra.mxu0 %v1575
        %1874 = vmatpush.bf16.msra.mxu0 %v1572
        %1875 = vmatpush.bf16.msra.mxu0 %v1569
        %1876 = vmatpush.bf16.msra.mxu0 %v1566
        %1877 = vmatpush.bf16.msra.mxu0 %v1563
        %1878 = vmatpush.bf16.msra.mxu0 %v1560
        %1879 = vmatmul.bf16.gmra.mxu0 %v721
        %v1880 = vpop.f32.mrf.mxu0
        %v1881 = vadd.f32 %v1867, %v1880
        %v1882 = vpop.f32.mrf.mxu0
        %v1883 = vadd.f32 %v1869, %v1882
        %1884 = vdwg.mxu0
        %1885 = vmatpush.bf16.msra.mxu0 %v1605
        %1886 = vmatpush.bf16.msra.mxu0 %v1602
        %1887 = vmatpush.bf16.msra.mxu0 %v1599
        %1888 = vmatpush.bf16.msra.mxu0 %v1596
        %1889 = vmatpush.bf16.msra.mxu0 %v1593
        %1890 = vmatpush.bf16.msra.mxu0 %v1590
        %1891 = vmatpush.bf16.msra.mxu0 %v1587
        %1892 = vmatpush.bf16.msra.mxu0 %v1584
        %1893 = vmatmul.bf16.gmra.mxu0 %v722
        %v1894 = vpop.f32.mrf.mxu0
        %v1895 = vadd.f32 %v1881, %v1894
        %v1896 = vpop.f32.mrf.mxu0
        %v1897 = vadd.f32 %v1883, %v1896
        %1898 = vdwg.mxu0
        %1899 = vmatpush.bf16.msra.mxu0 %v1629
        %1900 = vmatpush.bf16.msra.mxu0 %v1626
        %1901 = vmatpush.bf16.msra.mxu0 %v1623
        %1902 = vmatpush.bf16.msra.mxu0 %v1620
        %1903 = vmatpush.bf16.msra.mxu0 %v1617
        %1904 = vmatpush.bf16.msra.mxu0 %v1614
        %1905 = vmatpush.bf16.msra.mxu0 %v1611
        %1906 = vmatpush.bf16.msra.mxu0 %v1608
        %1907 = vmatmul.bf16.gmra.mxu0 %v723
        %v1908 = vpop.f32.mrf.mxu0
        %v1909 = vadd.f32 %v1895, %v1908
        %v1910 = vpop.f32.mrf.mxu0
        %v1911 = vadd.f32 %v1897, %v1910
        %1912 = vdwg.mxu0
        %1913 = vmatpush.bf16.msra.mxu0 0
        %1914 = vmatpush.bf16.msra.mxu0 %v1821
        %1915 = vmatpush.bf16.msra.mxu0 %v1647
        %1916 = vmatpush.bf16.msra.mxu0 %v1644
        %1917 = vmatpush.bf16.msra.mxu0 %v1641
        %1918 = vmatpush.bf16.msra.mxu0 %v1638
        %1919 = vmatpush.bf16.msra.mxu0 %v1635
        %1920 = vmatpush.bf16.msra.mxu0 %v1632
        %1921 = vmatmul.bf16.gmra.mxu0 %v1817
        %v1922 = vpop.f32.mrf.mxu0
        %v1923 = vadd.f32 %v1909, %v1922
        %v1924 = vpop.f32.mrf.mxu0
        %v1925 = vadd.f32 %v1911, %v1924
        %1926 = vdwg.mxu0
        %1927 = vmatpush.bf16.msra.mxu0 %v1510
        %1928 = vmatpush.bf16.msra.mxu0 %v1507
        %1929 = vmatpush.bf16.msra.mxu0 %v1504
        %1930 = vmatpush.bf16.msra.mxu0 %v1501
        %1931 = vmatpush.bf16.msra.mxu0 %v1498
        %1932 = vmatpush.bf16.msra.mxu0 %v1495
        %1933 = vmatpush.bf16.msra.mxu0 %v1492
        %1934 = vmatpush.bf16.msra.mxu0 %v1489
        %1935 = vmatmul.bf16.gmra.mxu0 %v718
        %v1936 = vpop.f32.mrf.mxu0
        %v1937 = vadd.f32 0.0, %v1936
        %v1938 = vpop.f32.mrf.mxu0
        %v1939 = vadd.f32 0.0, %v1938
        %1940 = vdwg.mxu0
        %1941 = vmatpush.bf16.msra.mxu0 %v1534
        %1942 = vmatpush.bf16.msra.mxu0 %v1531
        %1943 = vmatpush.bf16.msra.mxu0 %v1528
        %1944 = vmatpush.bf16.msra.mxu0 %v1525
        %1945 = vmatpush.bf16.msra.mxu0 %v1522
        %1946 = vmatpush.bf16.msra.mxu0 %v1519
        %1947 = vmatpush.bf16.msra.mxu0 %v1516
        %1948 = vmatpush.bf16.msra.mxu0 %v1513
        %1949 = vmatmul.bf16.gmra.mxu0 %v719
        %v1950 = vpop.f32.mrf.mxu0
        %v1951 = vadd.f32 %v1937, %v1950
        %v1952 = vpop.f32.mrf.mxu0
        %v1953 = vadd.f32 %v1939, %v1952
        %1954 = vdwg.mxu0
        %1955 = vmatpush.bf16.msra.mxu0 %v1558
        %1956 = vmatpush.bf16.msra.mxu0 %v1555
        %1957 = vmatpush.bf16.msra.mxu0 %v1552
        %1958 = vmatpush.bf16.msra.mxu0 %v1549
        %1959 = vmatpush.bf16.msra.mxu0 %v1546
        %1960 = vmatpush.bf16.msra.mxu0 %v1543
        %1961 = vmatpush.bf16.msra.mxu0 %v1540
        %1962 = vmatpush.bf16.msra.mxu0 %v1537
        %1963 = vmatmul.bf16.gmra.mxu0 %v720
        %v1964 = vpop.f32.mrf.mxu0
        %v1965 = vadd.f32 %v1951, %v1964
        %v1966 = vpop.f32.mrf.mxu0
        %v1967 = vadd.f32 %v1953, %v1966
        %1968 = vdwg.mxu0
        %1969 = vmatpush.bf16.msra.mxu0 %v1582
        %1970 = vmatpush.bf16.msra.mxu0 %v1579
        %1971 = vmatpush.bf16.msra.mxu0 %v1576
        %1972 = vmatpush.bf16.msra.mxu0 %v1573
        %1973 = vmatpush.bf16.msra.mxu0 %v1570
        %1974 = vmatpush.bf16.msra.mxu0 %v1567
        %1975 = vmatpush.bf16.msra.mxu0 %v1564
        %1976 = vmatpush.bf16.msra.mxu0 %v1561
        %1977 = vmatmul.bf16.gmra.mxu0 %v721
        %v1978 = vpop.f32.mrf.mxu0
        %v1979 = vadd.f32 %v1965, %v1978
        %v1980 = vpop.f32.mrf.mxu0
        %v1981 = vadd.f32 %v1967, %v1980
        %1982 = vdwg.mxu0
        %1983 = vmatpush.bf16.msra.mxu0 %v1606
        %1984 = vmatpush.bf16.msra.mxu0 %v1603
        %1985 = vmatpush.bf16.msra.mxu0 %v1600
        %1986 = vmatpush.bf16.msra.mxu0 %v1597
        %1987 = vmatpush.bf16.msra.mxu0 %v1594
        %1988 = vmatpush.bf16.msra.mxu0 %v1591
        %1989 = vmatpush.bf16.msra.mxu0 %v1588
        %1990 = vmatpush.bf16.msra.mxu0 %v1585
        %1991 = vmatmul.bf16.gmra.mxu0 %v722
        %v1992 = vpop.f32.mrf.mxu0
        %v1993 = vadd.f32 %v1979, %v1992
        %v1994 = vpop.f32.mrf.mxu0
        %v1995 = vadd.f32 %v1981, %v1994
        %1996 = vdwg.mxu0
        %1997 = vmatpush.bf16.msra.mxu0 %v1630
        %1998 = vmatpush.bf16.msra.mxu0 %v1627
        %1999 = vmatpush.bf16.msra.mxu0 %v1624
        %2000 = vmatpush.bf16.msra.mxu0 %v1621
        %2001 = vmatpush.bf16.msra.mxu0 %v1618
        %2002 = vmatpush.bf16.msra.mxu0 %v1615
        %2003 = vmatpush.bf16.msra.mxu0 %v1612
        %2004 = vmatpush.bf16.msra.mxu0 %v1609
        %2005 = vmatmul.bf16.gmra.mxu0 %v723
        %v2006 = vpop.f32.mrf.mxu0
        %v2007 = vadd.f32 %v1993, %v2006
        %v2008 = vpop.f32.mrf.mxu0
        %v2009 = vadd.f32 %v1995, %v2008
        %2010 = vdwg.mxu0
        %2011 = vmatpush.bf16.msra.mxu0 0
        %2012 = vmatpush.bf16.msra.mxu0 %v1824
        %2013 = vmatpush.bf16.msra.mxu0 %v1648
        %2014 = vmatpush.bf16.msra.mxu0 %v1645
        %2015 = vmatpush.bf16.msra.mxu0 %v1642
        %2016 = vmatpush.bf16.msra.mxu0 %v1639
        %2017 = vmatpush.bf16.msra.mxu0 %v1636
        %2018 = vmatpush.bf16.msra.mxu0 %v1633
        %2019 = vmatmul.bf16.gmra.mxu0 %v1817
        %v2020 = vpop.f32.mrf.mxu0
        %v2021 = vadd.f32 %v2007, %v2020
        %v2022 = vpop.f32.mrf.mxu0
        %v2023 = vadd.f32 %v2009, %v2022
        %2024 = vdwg.mxu0
        %2025 = vmatpush.bf16.msra.mxu0 %v1511
        %2026 = vmatpush.bf16.msra.mxu0 %v1508
        %2027 = vmatpush.bf16.msra.mxu0 %v1505
        %2028 = vmatpush.bf16.msra.mxu0 %v1502
        %2029 = vmatpush.bf16.msra.mxu0 %v1499
        %2030 = vmatpush.bf16.msra.mxu0 %v1496
        %2031 = vmatpush.bf16.msra.mxu0 %v1493
        %2032 = vmatpush.bf16.msra.mxu0 %v1490
        %2033 = vmatmul.bf16.gmra.mxu0 %v718
        %v2034 = vpop.f32.mrf.mxu0
        %v2035 = vadd.f32 0.0, %v2034
        %v2036 = vpop.f32.mrf.mxu0
        %v2037 = vadd.f32 0.0, %v2036
        %2038 = vdwg.mxu0
        %2039 = vmatpush.bf16.msra.mxu0 %v1535
        %2040 = vmatpush.bf16.msra.mxu0 %v1532
        %2041 = vmatpush.bf16.msra.mxu0 %v1529
        %2042 = vmatpush.bf16.msra.mxu0 %v1526
        %2043 = vmatpush.bf16.msra.mxu0 %v1523
        %2044 = vmatpush.bf16.msra.mxu0 %v1520
        %2045 = vmatpush.bf16.msra.mxu0 %v1517
        %2046 = vmatpush.bf16.msra.mxu0 %v1514
        %2047 = vmatmul.bf16.gmra.mxu0 %v719
        %v2048 = vpop.f32.mrf.mxu0
        %v2049 = vadd.f32 %v2035, %v2048
        %v2050 = vpop.f32.mrf.mxu0
        %v2051 = vadd.f32 %v2037, %v2050
        %2052 = vdwg.mxu0
        %2053 = vmatpush.bf16.msra.mxu0 %v1559
        %2054 = vmatpush.bf16.msra.mxu0 %v1556
        %2055 = vmatpush.bf16.msra.mxu0 %v1553
        %2056 = vmatpush.bf16.msra.mxu0 %v1550
        %2057 = vmatpush.bf16.msra.mxu0 %v1547
        %2058 = vmatpush.bf16.msra.mxu0 %v1544
        %2059 = vmatpush.bf16.msra.mxu0 %v1541
        %2060 = vmatpush.bf16.msra.mxu0 %v1538
        %2061 = vmatmul.bf16.gmra.mxu0 %v720
        %v2062 = vpop.f32.mrf.mxu0
        %v2063 = vadd.f32 %v2049, %v2062
        %v2064 = vpop.f32.mrf.mxu0
        %v2065 = vadd.f32 %v2051, %v2064
        %2066 = vdwg.mxu0
        %2067 = vmatpush.bf16.msra.mxu0 %v1583
        %2068 = vmatpush.bf16.msra.mxu0 %v1580
        %2069 = vmatpush.bf16.msra.mxu0 %v1577
        %2070 = vmatpush.bf16.msra.mxu0 %v1574
        %2071 = vmatpush.bf16.msra.mxu0 %v1571
        %2072 = vmatpush.bf16.msra.mxu0 %v1568
        %2073 = vmatpush.bf16.msra.mxu0 %v1565
        %2074 = vmatpush.bf16.msra.mxu0 %v1562
        %2075 = vmatmul.bf16.gmra.mxu0 %v721
        %v2076 = vpop.f32.mrf.mxu0
        %v2077 = vadd.f32 %v2063, %v2076
        %v2078 = vpop.f32.mrf.mxu0
        %v2079 = vadd.f32 %v2065, %v2078
        %2080 = vdwg.mxu0
        %2081 = vmatpush.bf16.msra.mxu0 %v1607
        %2082 = vmatpush.bf16.msra.mxu0 %v1604
        %2083 = vmatpush.bf16.msra.mxu0 %v1601
        %2084 = vmatpush.bf16.msra.mxu0 %v1598
        %2085 = vmatpush.bf16.msra.mxu0 %v1595
        %2086 = vmatpush.bf16.msra.mxu0 %v1592
        %2087 = vmatpush.bf16.msra.mxu0 %v1589
        %2088 = vmatpush.bf16.msra.mxu0 %v1586
        %2089 = vmatmul.bf16.gmra.mxu0 %v722
        %v2090 = vpop.f32.mrf.mxu0
        %v2091 = vadd.f32 %v2077, %v2090
        %v2092 = vpop.f32.mrf.mxu0
        %v2093 = vadd.f32 %v2079, %v2092
        %2094 = vdwg.mxu0
        %2095 = vmatpush.bf16.msra.mxu0 %v1631
        %2096 = vmatpush.bf16.msra.mxu0 %v1628
        %2097 = vmatpush.bf16.msra.mxu0 %v1625
        %2098 = vmatpush.bf16.msra.mxu0 %v1622
        %2099 = vmatpush.bf16.msra.mxu0 %v1619
        %2100 = vmatpush.bf16.msra.mxu0 %v1616
        %2101 = vmatpush.bf16.msra.mxu0 %v1613
        %2102 = vmatpush.bf16.msra.mxu0 %v1610
        %2103 = vmatmul.bf16.gmra.mxu0 %v723
        %v2104 = vpop.f32.mrf.mxu0
        %v2105 = vadd.f32 %v2091, %v2104
        %v2106 = vpop.f32.mrf.mxu0
        %v2107 = vadd.f32 %v2093, %v2106
        %2108 = vdwg.mxu0
        %2109 = vmatpush.bf16.msra.mxu0 0
        %2110 = vmatpush.bf16.msra.mxu0 %v1827
        %2111 = vmatpush.bf16.msra.mxu0 %v1649
        %2112 = vmatpush.bf16.msra.mxu0 %v1646
        %2113 = vmatpush.bf16.msra.mxu0 %v1643
        %2114 = vmatpush.bf16.msra.mxu0 %v1640
        %2115 = vmatpush.bf16.msra.mxu0 %v1637
        %2116 = vmatpush.bf16.msra.mxu0 %v1634
        %2117 = vmatmul.bf16.gmra.mxu0 %v1817
        %v2118 = vpop.f32.mrf.mxu0
        %v2119 = vadd.f32 %v2105, %v2118
        %v2120 = vpop.f32.mrf.mxu0
        %v2121 = vadd.f32 %v2107, %v2120
        %2122 = vdwg.mxu0
        %2127 = vrot.lane.b32.xlu0 %v1923, 127
        %v2128 = vpop.permute.xlu0 %2127
        %2129 = vrot.lane.b32.xlu0 %v2021, 127
        %v2130 = vpop.permute.xlu0 %2129
        %2131 = vrot.lane.b32.xlu0 %v1925, 127
        %v2132 = vpop.permute.xlu0 %2131
        %2133 = vrot.lane.b32.xlu0 %v2023, 127
        %v2134 = vpop.permute.xlu0 %2133
        %v2135 = vsel %vm405, %v2128, %v2130
        %v2136 = vsel %vm405, %v2132, %v2134
        %2141 = vrot.lane.b32.xlu0 %v1923, 112
        %v2142 = vpop.permute.xlu0 %2141
        %2143 = vrot.lane.b32.xlu0 %v2021, 112
        %v2144 = vpop.permute.xlu0 %2143
        %2145 = vrot.lane.b32.xlu0 %v1925, 112
        %v2146 = vpop.permute.xlu0 %2145
        %2147 = vrot.lane.b32.xlu0 %v2023, 112
        %v2148 = vpop.permute.xlu0 %2147
        %vm2149 = vcmask 916480
        %v2150 = vsel %vm2149, %v2142, %v2144
        %v2151 = vsel %vm2149, %v2146, %v2148
        %2158 = vrot.lane.b32.xlu0 %v1923, 111
        %v2159 = vpop.permute.xlu0 %2158
        %2160 = vrot.lane.b32.xlu0 %v2021, 111
        %v2161 = vpop.permute.xlu0 %2160
        %2162 = vrot.lane.b32.xlu0 %v2119, 111
        %v2163 = vpop.permute.xlu0 %2162
        %2164 = vrot.lane.b32.xlu0 %v1925, 111
        %v2165 = vpop.permute.xlu0 %2164
        %2166 = vrot.lane.b32.xlu0 %v2023, 111
        %v2167 = vpop.permute.xlu0 %2166
        %2168 = vrot.lane.b32.xlu0 %v2121, 111
        %v2169 = vpop.permute.xlu0 %2168
        %vm2170 = vcmask 908288
        %v2171 = vsel %vm2170, %v2159, %v2161
        %v2172 = vsel %vm2170, %v2161, %v2163
        %v2173 = vsel %vm2170, %v2165, %v2167
        %v2174 = vsel %vm2170, %v2167, %v2169
        %v2179 = vld [vmem:[%s4] sm:$0xff]
        %v2180 = vld [vmem:[%s4 + $0x8] sm:$0xff]
        %v2181 = vld [vmem:[%s4 + $0x10] sm:$0xff]
        %v2182 = vld [vmem:[%s4 + $0x18] sm:$0xff]
        %v2183 = vld [vmem:[%s5] sm:$0xff]
        %v2184 = vld [vmem:[%s5 + $0x8] sm:$0xff]
        %v2185 = vld [vmem:[%s5 + $0x10] sm:$0xff]
        %v2186 = vld [vmem:[%s5 + $0x18] sm:$0xff]
        %2188 = vset.pattern.permute.xlu0 0
        %2189 = vperm.xlu0 %2188, %v2183
        %v2190 = vpop.permute.xlu0 %2189
        %2193 = vset.pattern.permute.xlu0 0
        %2194 = vperm.xlu0 %2193, %v2184
        %v2195 = vpop.permute.xlu0 %2194
        %2198 = vset.pattern.permute.xlu0 0
        %2199 = vperm.xlu0 %2198, %v2185
        %v2200 = vpop.permute.xlu0 %2199
        %2203 = vset.pattern.permute.xlu0 0
        %2204 = vperm.xlu0 %2203, %v2186
        %v2205 = vpop.permute.xlu0 %2204
        %vm2207 = vcmask 523264
        %v2209 = vsel %vm2207, %v2179, 0
        %v2212 = vsel %vm2207, %v2180, 0
        %v2215 = vsel %vm2207, %v2181, 0
        %v2218 = vsel %vm2207, %v2182, 0
        %2220 = vmatpush.msra.mxu0 0.0
        %2221 = vmatpush.msra.mxu0 0.0
        %2222 = vmatpush.msra.mxu0 0.0
        %2223 = vmatpush.msra.mxu0 0.0
        %2224 = vmatpush.msra.mxu0 0.0
        %2225 = vmatpush.msra.mxu0 0.0
        %2226 = vmatpush.msra.mxu0 0.0
        %2227 = vmatpush.msra.mxu0 0.0
        %2228 = vmatpush.msra.mxu0 %v2173
        %2229 = vmatpush.msra.mxu0 %v2171
        %2230 = vmatpush.msra.mxu0 %v2151
        %2231 = vmatpush.msra.mxu0 %v2150
        %2232 = vmatpush.msra.mxu0 %v2136
        %2233 = vmatpush.msra.mxu0 %v2135
        %2234 = vmatpush.msra.mxu0 %v1925
        %2235 = vmatpush.msra.mxu0 %v1923
        %2236 = vmatmul.f32.gmra.mxu0 %v2209
        %v2237 = vpop.f32.mrf.mxu0
        %v2238 = vadd.f32 %v2190, %v2237
        %2239 = vmatmul.f32.gmra.mxu0 %v2212
        %v2240 = vpop.f32.mrf.mxu0
        %v2241 = vadd.f32 %v2195, %v2240
        %2242 = vmatmul.f32.gmra.mxu0 %v2215
        %v2243 = vpop.f32.mrf.mxu0
        %v2244 = vadd.f32 %v2200, %v2243
        %2245 = vmatmul.f32.gmra.mxu0 %v2218
        %v2246 = vpop.f32.mrf.mxu0
        %v2247 = vadd.f32 %v2205, %v2246
        %2248 = vdwg.mxu0
        %2249 = vmatpush.msra.mxu0 0.0
        %2250 = vmatpush.msra.mxu0 0.0
        %2251 = vmatpush.msra.mxu0 0.0
        %2252 = vmatpush.msra.mxu0 0.0
        %2253 = vmatpush.msra.mxu0 0.0
        %2254 = vmatpush.msra.mxu0 0.0
        %2255 = vmatpush.msra.mxu0 0.0
        %2256 = vmatpush.msra.mxu0 0.0
        %2257 = vmatpush.msra.mxu0 %v2174
        %2258 = vmatpush.msra.mxu0 %v2172
        %2259 = vmatpush.msra.mxu0 %v2148
        %2260 = vmatpush.msra.mxu0 %v2144
        %2261 = vmatpush.msra.mxu0 %v2134
        %2262 = vmatpush.msra.mxu0 %v2130
        %2263 = vmatpush.msra.mxu0 %v2023
        %2264 = vmatpush.msra.mxu0 %v2021
        %2265 = vmatmul.f32.gmra.mxu0 %v2209
        %v2266 = vpop.f32.mrf.mxu0
        %v2267 = vadd.f32 %v2190, %v2266
        %2268 = vmatmul.f32.gmra.mxu0 %v2212
        %v2269 = vpop.f32.mrf.mxu0
        %v2270 = vadd.f32 %v2195, %v2269
        %2271 = vmatmul.f32.gmra.mxu0 %v2215
        %v2272 = vpop.f32.mrf.mxu0
        %v2273 = vadd.f32 %v2200, %v2272
        %2274 = vmatmul.f32.gmra.mxu0 %v2218
        %v2275 = vpop.f32.mrf.mxu0
        %v2276 = vadd.f32 %v2205, %v2275
        %2277 = vdwg.mxu0
        %v2278 = vmax.f32 %v2238, 0.0
        %v2279 = vmax.f32 %v2267, 0.0
        %v2280 = vmax.f32 %v2241, 0.0
        %v2281 = vmax.f32 %v2270, 0.0
        %v2282 = vmax.f32 %v2244, 0.0
        %v2283 = vmax.f32 %v2273, 0.0
        %v2284 = vmax.f32 %v2247, 0.0
        %v2285 = vmax.f32 %v2276, 0.0
        %2294 = vrot.lane.b32.xlu0 %v2278, 127
        %v2295 = vpop.permute.xlu0 %2294
        %2296 = vrot.lane.b32.xlu0 %v2279, 127
        %v2297 = vpop.permute.xlu0 %2296
        %2298 = vrot.lane.b32.xlu0 %v2280, 127
        %v2299 = vpop.permute.xlu0 %2298
        %2300 = vrot.lane.b32.xlu0 %v2281, 127
        %v2301 = vpop.permute.xlu0 %2300
        %2302 = vrot.lane.b32.xlu0 %v2282, 127
        %v2303 = vpop.permute.xlu0 %2302
        %2304 = vrot.lane.b32.xlu0 %v2283, 127
        %v2305 = vpop.permute.xlu0 %2304
        %2306 = vrot.lane.b32.xlu0 %v2284, 127
        %v2307 = vpop.permute.xlu0 %2306
        %2308 = vrot.lane.b32.xlu0 %v2285, 127
        %v2309 = vpop.permute.xlu0 %2308
        %v2310 = vsel %vm405, %v2295, %v2297
        %v2311 = vsel %vm405, %v2299, %v2301
        %v2312 = vsel %vm405, %v2303, %v2305
        %v2313 = vsel %vm405, %v2307, %v2309
        %v2322 = vmax.f32 %v2278, %v2310
        %v2323 = vmax.f32 %v2279, %v2297
        %v2324 = vmax.f32 %v2280, %v2311
        %v2325 = vmax.f32 %v2281, %v2301
        %v2326 = vmax.f32 %v2282, %v2312
        %v2327 = vmax.f32 %v2283, %v2305
        %v2328 = vmax.f32 %v2284, %v2313
        %v2329 = vmax.f32 %v2285, %v2309
        %2338 = vrot.lane.b32.xlu0 %v2322, 112
        %v2339 = vpop.permute.xlu0 %2338
        %2340 = vrot.lane.b32.xlu0 %v2323, 112
        %v2341 = vpop.permute.xlu0 %2340
        %2342 = vrot.lane.b32.xlu0 %v2324, 112
        %v2343 = vpop.permute.xlu0 %2342
        %2344 = vrot.lane.b32.xlu0 %v2325, 112
        %v2345 = vpop.permute.xlu0 %2344
        %2346 = vrot.lane.b32.xlu0 %v2326, 112
        %v2347 = vpop.permute.xlu0 %2346
        %2348 = vrot.lane.b32.xlu0 %v2327, 112
        %v2349 = vpop.permute.xlu0 %2348
        %2350 = vrot.lane.b32.xlu0 %v2328, 112
        %v2351 = vpop.permute.xlu0 %2350
        %2352 = vrot.lane.b32.xlu0 %v2329, 112
        %v2353 = vpop.permute.xlu0 %2352
        %v2354 = vsel %vm2149, %v2339, %v2341
        %v2355 = vsel %vm2149, %v2343, %v2345
        %v2356 = vsel %vm2149, %v2347, %v2349
        %v2357 = vsel %vm2149, %v2351, %v2353
        %v2366 = vmax.f32 %v2322, %v2354
        %v2367 = vmax.f32 %v2323, %v2341
        %v2368 = vmax.f32 %v2324, %v2355
        %v2369 = vmax.f32 %v2325, %v2345
        %v2370 = vmax.f32 %v2326, %v2356
        %v2371 = vmax.f32 %v2327, %v2349
        %v2372 = vmax.f32 %v2328, %v2357
        %v2373 = vmax.f32 %v2329, %v2353
        %v2374 = vld [vmem:[%s6] sm:$0xff]
        %v2375 = vld [vmem:[%s6 + $0x8] sm:$0xff]
        %v2376 = vld [vmem:[%s6 + $0x10] sm:$0xff]
        %v2377 = vld [vmem:[%s6 + $0x18] sm:$0xff]
        %v2378 = vld [vmem:[%s6 + $0x20] sm:$0xff]
        %v2379 = vld [vmem:[%s6 + $0x28] sm:$0xff]
        %v2380 = vld [vmem:[%s6 + $0x30] sm:$0xff]
        %v2381 = vld [vmem:[%s6 + $0x38] sm:$0xff]
        %v2382 = vld [vmem:[%s6 + $0x40] sm:$0xff]
        %v2383 = vld [vmem:[%s6 + $0x48] sm:$0xff]
        %v2384 = vld [vmem:[%s6 + $0x50] sm:$0xff]
        %v2385 = vld [vmem:[%s6 + $0x58] sm:$0xff]
        %v2386 = vld [vmem:[%s6 + $0x60] sm:$0xff]
        %v2387 = vld [vmem:[%s6 + $0x68] sm:$0xff]
        %v2388 = vld [vmem:[%s6 + $0x70] sm:$0xff]
        %v2389 = vld [vmem:[%s6 + $0x78] sm:$0xff]
        %v2390 = vld [vmem:[%s6 + $0x80] sm:$0xff]
        %v2391 = vld [vmem:[%s6 + $0x88] sm:$0xff]
        %v2392 = vld [vmem:[%s6 + $0x90] sm:$0xff]
        %v2393 = vld [vmem:[%s6 + $0x98] sm:$0xff]
        %v2394 = vld [vmem:[%s6 + $0xa0] sm:$0xff]
        %v2395 = vld [vmem:[%s6 + $0xa8] sm:$0xff]
        %v2396 = vld [vmem:[%s6 + $0xb0] sm:$0xff]
        %v2397 = vld [vmem:[%s6 + $0xb8] sm:$0xff]
        %v2398 = vld [vmem:[%s6 + $0xc0] sm:$0xff]
        %v2399 = vld [vmem:[%s6 + $0xc8] sm:$0xff]
        %v2400 = vld [vmem:[%s6 + $0xd0] sm:$0xff]
        %v2401 = vld [vmem:[%s6 + $0xd8] sm:$0x7f]
        %vm2402 = vcmask 777216
        %v2404 = vsel %vm2402, %v2367, 0
        %v2407 = vsel %vm2402, %v2369, 0
        %v2410 = vsel %vm2402, %v2371, 0
        %v2413 = vsel %vm2402, %v2373, 0
        %vm2415 = vcmask 1046528
        %v2417 = vsel %vm2415, %v2401, 0
        %2419 = vmatpush.msra.mxu0 %v2389
        %2420 = vmatpush.msra.mxu0 %v2388
        %2421 = vmatpush.msra.mxu0 %v2387
        %2422 = vmatpush.msra.mxu0 %v2386
        %2423 = vmatpush.msra.mxu0 %v2385
        %2424 = vmatpush.msra.mxu0 %v2384
        %2425 = vmatpush.msra.mxu0 %v2383
        %2426 = vmatpush.msra.mxu0 %v2382
        %2427 = vmatpush.msra.mxu0 %v2381
        %2428 = vmatpush.msra.mxu0 %v2380
        %2429 = vmatpush.msra.mxu0 %v2379
        %2430 = vmatpush.msra.mxu0 %v2378
        %2431 = vmatpush.msra.mxu0 %v2377
        %2432 = vmatpush.msra.mxu0 %v2376
        %2433 = vmatpush.msra.mxu0 %v2375
        %2434 = vmatpush.msra.mxu0 %v2374
        %2435 = vmatmul.f32.gmra.mxu0 %v2366
        %v2436 = vpop.f32.mrf.mxu0
        %v2437 = vadd.f32 0.0, %v2436
        %2438 = vmatmul.f32.gmra.mxu0 %v2368
        %v2439 = vpop.f32.mrf.mxu0
        %v2440 = vadd.f32 0.0, %v2439
        %2441 = vmatmul.f32.gmra.mxu0 %v2370
        %v2442 = vpop.f32.mrf.mxu0
        %v2443 = vadd.f32 0.0, %v2442
        %2444 = vmatmul.f32.gmra.mxu0 %v2372
        %v2445 = vpop.f32.mrf.mxu0
        %v2446 = vadd.f32 0.0, %v2445
        %2447 = vdwg.mxu0
        %2448 = vmatpush.msra.mxu0 0.0
        %2449 = vmatpush.msra.mxu0 0.0
        %2450 = vmatpush.msra.mxu0 0.0
        %2451 = vmatpush.msra.mxu0 0.0
        %2452 = vmatpush.msra.mxu0 %v2417
        %2453 = vmatpush.msra.mxu0 %v2400
        %2454 = vmatpush.msra.mxu0 %v2399
        %2455 = vmatpush.msra.mxu0 %v2398
        %2456 = vmatpush.msra.mxu0 %v2397
        %2457 = vmatpush.msra.mxu0 %v2396
        %2458 = vmatpush.msra.mxu0 %v2395
        %2459 = vmatpush.msra.mxu0 %v2394
        %2460 = vmatpush.msra.mxu0 %v2393
        %2461 = vmatpush.msra.mxu0 %v2392
        %2462 = vmatpush.msra.mxu0 %v2391
        %2463 = vmatpush.msra.mxu0 %v2390
        %2464 = vmatmul.f32.gmra.mxu0 %v2404
        %v2465 = vpop.f32.mrf.mxu0
        %v2466 = vadd.f32 %v2437, %v2465
        %2467 = vmatmul.f32.gmra.mxu0 %v2407
        %v2468 = vpop.f32.mrf.mxu0
        %v2469 = vadd.f32 %v2440, %v2468
        %2470 = vmatmul.f32.gmra.mxu0 %v2410
        %v2471 = vpop.f32.mrf.mxu0
        %v2472 = vadd.f32 %v2443, %v2471
        %2473 = vmatmul.f32.gmra.mxu0 %v2413
        %v2474 = vpop.f32.mrf.mxu0
        %v2475 = vadd.f32 %v2446, %v2474
        %2476 = vdwg.mxu0
        %v2477 = vpack.c.bf16 %v2466, %v2466
        %v2478 = vpack.c.bf16 %v2469, %v2469
        %v2479 = vpack.c.bf16 %v2472, %v2472
        %v2480 = vpack.c.bf16 %v2475, %v2475
        %s2481 = smul.u32 %s284, 4
        %s2482 = smul.addr %s2481, 4
        %s2483 = scalar_lea.vmem %s280, %s2482
        %vm2484 = vcmask 396288
        %2485 = vst.msk [vmem:[%s2483] sm:$0xf] %vm2484, %v2477
        %2486 = vst.msk [vmem:[%s2483 + $0x4] sm:$0xf] %vm2484, %v2478
        %2487 = vst.msk [vmem:[%s2483 + $0x8] sm:$0xf] %vm2484, %v2479
        %2488 = vst.msk [vmem:[%s2483 + $0xc] sm:$0xf] %vm2484, %v2480
      $region53: #{deep_cnn_forward.2} parent=47 // loop_footer
        %s288 = sadd.s32 1, %s284
      $region54: #{deep_cnn_forward.2} parent=47 // loop_footer_branch
        %283 = sbr.rel target = $region50
      $region55: #{deep_cnn_forward.2} parent=47 // loop_exit
        _
      %s2489 = smul.u32 8, %s18
      %p2490 = scmp.lt.s32.totalorder %s2489, 15
      %s2491 = scalar_select %p2490, %s2489, 15
      %s2492 = smul.addr %s2491, 4
      %s2493 = smul.addr %s2492, 4
      %s2494 = scalar_lea.vmem %s7, %s2493
      // Predicated region
      $region56: #{deep_cnn_forward.2} parent=47 // pred_check
        %p2495 = pneg %p188
      $region57: #{deep_cnn_forward.2} parent=47 // pred_check_branch
        %2497 = sbr.rel (%p2495) target = $region59
      $region58: #{deep_cnn_forward.2} parent=47 // pred_region
        %s2498 = smul.u32 8, %s18
      $region59: #{deep_cnn_forward.2} parent=47 // pred_fallthru
        _
    $region48: #{deep_cnn_forward.2} parent=5 // pred_fallthru
      _
    %p2499 = scmp.le.s32.totalorder 2, %s13
    // Predicated region
    $region60: #{deep_cnn_forward.2} parent=5 // pred_check
      %p2500 = pneg %p2499
    $region61: #{deep_cnn_forward.2} parent=5 // pred_check_branch
      %2502 = sbr.rel (%p2500) target = $region63
    $region62: #{deep_cnn_forward.2} parent=5 // pred_region
      %s2503 = ssub.s32 %s13, 2
      // Predicated region
      $region64: #{deep_cnn_forward.2} parent=62 // pred_check
        %p2504 = pneg %p194
      $region65: #{deep_cnn_forward.2} parent=62 // pred_check_branch
        %2506 = sbr.rel (%p2504) target = $region67
      $region66: #{deep_cnn_forward.2} parent=62 // pred_region
        %s2507 = smul.u32 8, %s19
        %p2508 = scmp.lt.s32.totalorder %s2507, 15
        %s2509 = scalar_select %p2508, %s2507, 15
        %s2510 = smul.addr %s2509, 4
        %s2511 = smul.addr %s2510, 4
        %s2512 = scalar_lea.vmem %s7, %s2511
      $region67: #{deep_cnn_forward.2} parent=62 // pred_fallthru
        _
    $region63: #{deep_cnn_forward.2} parent=5 // pred_fallthru
      _
  $region6: #{deep_cnn_forward.2} parent=0 // loop_footer
    %s17 = sadd.s32 1, %s13
  $region7: #{deep_cnn_forward.2} parent=0 // loop_footer_branch
    %12 = sbr.rel target = $region3
  $region8: #{deep_cnn_forward.2} parent=0 // loop_exit
    _

// kernel: deep_cnn_forward.3
$region0: #{deep_cnn_forward.3}
  #allocation0 [shape = 'u32[]', space=smem, size = 0x4, offset = 0x4, fixed_abs, tag = 'smem constant byte address 0x4 - core index']
  #allocation1 [shape = 'u32[72,128]{1,0:T(1,128)}', space=vmem, size = 0x9000, scoped, tag = 'internal scratch']
  %s0 = inlined_call_operand.vmem [shape: bf16[16,1568], index: 0, kind: input, shape index: {}]
  %s1 = inlined_call_operand.vmem [shape: bf16[1568,256], index: 1, kind: input, shape index: {}]
  %s2 = inlined_call_operand.vmem [shape: f32[1,256], index: 2, kind: input, shape index: {}]
  %s3 = inlined_call_operand.vmem [shape: bf16[256,128], index: 3, kind: input, shape index: {}]
  %s4 = inlined_call_operand.vmem [shape: f32[1,128], index: 4, kind: input, shape index: {}]
  %s5 = inlined_call_operand.vmem [shape: bf16[128,2], index: 5, kind: input, shape index: {}]
  %s6 = inlined_call_operand.vmem [shape: f32[1,2], index: 6, kind: input, shape index: {}]
  %s7 = inlined_call_operand.vmem [shape: f32[16,2], index: 7, kind: output, shape index: {}]
  %s8 = sld [smem:[#allocation0]]
  $region38: #{deep_cnn_forward.3} parent=0
    _
  %s10 = ssub.s32 1, %s8
  %s11 = scalar_select 0, %s10, %s8
  // Predicated region
  $region2: #{deep_cnn_forward.3} parent=0 // pred_check
    _
  $region3: #{deep_cnn_forward.3} parent=0 // pred_check_branch
    %13 = sbr.rel (0) target = $region5
  $region4: #{deep_cnn_forward.3} parent=0 // pred_region
    _
  $region5: #{deep_cnn_forward.3} parent=0 // pred_fallthru
    _
  // Predicated region
  $region6: #{deep_cnn_forward.3} parent=0 // pred_check
    _
  $region7: #{deep_cnn_forward.3} parent=0 // pred_check_branch
    %15 = sbr.rel (0) target = $region9
  $region8: #{deep_cnn_forward.3} parent=0 // pred_region
    _
  $region9: #{deep_cnn_forward.3} parent=0 // pred_fallthru
    _
  // Predicated region
  $region10: #{deep_cnn_forward.3} parent=0 // pred_check
    _
  $region11: #{deep_cnn_forward.3} parent=0 // pred_check_branch
    %17 = sbr.rel (0) target = $region13
  $region12: #{deep_cnn_forward.3} parent=0 // pred_region
    _
  $region13: #{deep_cnn_forward.3} parent=0 // pred_fallthru
    _
  // Predicated region
  $region14: #{deep_cnn_forward.3} parent=0 // pred_check
    _
  $region15: #{deep_cnn_forward.3} parent=0 // pred_check_branch
    %19 = sbr.rel (0) target = $region17
  $region16: #{deep_cnn_forward.3} parent=0 // pred_region
    _
  $region17: #{deep_cnn_forward.3} parent=0 // pred_fallthru
    _
  // Predicated region
  $region18: #{deep_cnn_forward.3} parent=0 // pred_check
    _
  $region19: #{deep_cnn_forward.3} parent=0 // pred_check_branch
    %21 = sbr.rel (0) target = $region21
  $region20: #{deep_cnn_forward.3} parent=0 // pred_region
    _
  $region21: #{deep_cnn_forward.3} parent=0 // pred_fallthru
    _
  // Predicated region
  $region22: #{deep_cnn_forward.3} parent=0 // pred_check
    _
  $region23: #{deep_cnn_forward.3} parent=0 // pred_check_branch
    %23 = sbr.rel (0) target = $region25
  $region24: #{deep_cnn_forward.3} parent=0 // pred_region
    _
  $region25: #{deep_cnn_forward.3} parent=0 // pred_fallthru
    _
  // Predicated region
  $region26: #{deep_cnn_forward.3} parent=0 // pred_check
    _
  $region27: #{deep_cnn_forward.3} parent=0 // pred_check_branch
    %25 = sbr.rel (0) target = $region29
  $region28: #{deep_cnn_forward.3} parent=0 // pred_region
    _
  $region29: #{deep_cnn_forward.3} parent=0 // pred_fallthru
    _
  %v27 = vld [vmem:[%s0] sm:$0xff]
  %v28 = vld [vmem:[%s0 + $0x8] sm:$0xff]
  %v29 = vld [vmem:[%s0 + $0x10] sm:$0xff]
  %v30 = vld [vmem:[%s0 + $0x18] sm:$0xff]
  %v31 = vld [vmem:[%s0 + $0x20] sm:$0xff]
  %v32 = vld [vmem:[%s0 + $0x28] sm:$0xff]
  %v33 = vld [vmem:[%s0 + $0x30] sm:$0xf]
  %v34 = vld [vmem:[%s0 + $0x34] sm:$0xff]
  %v35 = vld [vmem:[%s0 + $0x3c] sm:$0xff]
  %v36 = vld [vmem:[%s0 + $0x44] sm:$0xff]
  %v37 = vld [vmem:[%s0 + $0x4c] sm:$0xff]
  %v38 = vld [vmem:[%s0 + $0x54] sm:$0xff]
  %v39 = vld [vmem:[%s0 + $0x5c] sm:$0xff]
  %v40 = vld [vmem:[%s0 + $0x64] sm:$0xf]
  %v41 = vld [vmem:[%s1] sm:$0xff]
  %v42 = vld [vmem:[%s1 + $0x8] sm:$0xff]
  %v43 = vld [vmem:[%s1 + $0x10] sm:$0xff]
  %v44 = vld [vmem:[%s1 + $0x18] sm:$0xff]
  %v45 = vld [vmem:[%s1 + $0x20] sm:$0xff]
  %v46 = vld [vmem:[%s1 + $0x28] sm:$0xff]
  %v47 = vld [vmem:[%s1 + $0x30] sm:$0xff]
  %v48 = vld [vmem:[%s1 + $0x38] sm:$0xff]
  %v49 = vld [vmem:[%s1 + $0x40] sm:$0xff]
  %v50 = vld [vmem:[%s1 + $0x48] sm:$0xff]
  %v51 = vld [vmem:[%s1 + $0x50] sm:$0xff]
  %v52 = vld [vmem:[%s1 + $0x58] sm:$0xff]
  %v53 = vld [vmem:[%s1 + $0x60] sm:$0xff]
  %v54 = vld [vmem:[%s1 + $0x68] sm:$0xff]
  %v55 = vld [vmem:[%s1 + $0x70] sm:$0xff]
  %v56 = vld [vmem:[%s1 + $0x78] sm:$0xff]
  %v57 = vld [vmem:[%s1 + $0x80] sm:$0xff]
  %v58 = vld [vmem:[%s1 + $0x88] sm:$0xff]
  %v59 = vld [vmem:[%s1 + $0x90] sm:$0xff]
  %v60 = vld [vmem:[%s1 + $0x98] sm:$0xff]
  %v61 = vld [vmem:[%s1 + $0xa0] sm:$0xff]
  %v62 = vld [vmem:[%s1 + $0xa8] sm:$0xff]
  %v63 = vld [vmem:[%s1 + $0xb0] sm:$0xff]
  %v64 = vld [vmem:[%s1 + $0xb8] sm:$0xff]
  %v65 = vld [vmem:[%s1 + $0xc0] sm:$0xff]
  %v66 = vld [vmem:[%s1 + $0xc8] sm:$0xff]
  %v67 = vld [vmem:[%s1 + $0xd0] sm:$0xff]
  %v68 = vld [vmem:[%s1 + $0xd8] sm:$0xff]
  %v69 = vld [vmem:[%s1 + $0xe0] sm:$0xff]
  %v70 = vld [vmem:[%s1 + $0xe8] sm:$0xff]
  %v71 = vld [vmem:[%s1 + $0xf0] sm:$0xff]
  %v72 = vld [vmem:[%s1 + $0xf8] sm:$0xff]
  %v73 = vld [vmem:[%s1 + $0x100] sm:$0xff]
  %v74 = vld [vmem:[%s1 + $0x108] sm:$0xff]
  %v75 = vld [vmem:[%s1 + $0x110] sm:$0xff]
  %v76 = vld [vmem:[%s1 + $0x118] sm:$0xff]
  %v77 = vld [vmem:[%s1 + $0x120] sm:$0xff]
  %v78 = vld [vmem:[%s1 + $0x128] sm:$0xff]
  %v79 = vld [vmem:[%s1 + $0x130] sm:$0xff]
  %v80 = vld [vmem:[%s1 + $0x138] sm:$0xff]
  %v81 = vld [vmem:[%s1 + $0x140] sm:$0xff]
  %v82 = vld [vmem:[%s1 + $0x148] sm:$0xff]
  %v83 = vld [vmem:[%s1 + $0x150] sm:$0xff]
  %v84 = vld [vmem:[%s1 + $0x158] sm:$0xff]
  %v85 = vld [vmem:[%s1 + $0x160] sm:$0xff]
  %v86 = vld [vmem:[%s1 + $0x168] sm:$0xff]
  %v87 = vld [vmem:[%s1 + $0x170] sm:$0xff]
  %v88 = vld [vmem:[%s1 + $0x178] sm:$0xff]
  %v89 = vld [vmem:[%s1 + $0x180] sm:$0xff]
  %v90 = vld [vmem:[%s1 + $0x188] sm:$0xff]
  %v91 = vld [vmem:[%s1 + $0x190] sm:$0xff]
  %v92 = vld [vmem:[%s1 + $0x198] sm:$0xff]
  %v93 = vld [vmem:[%s1 + $0x1a0] sm:$0xff]
  %v94 = vld [vmem:[%s1 + $0x1a8] sm:$0xff]
  %v95 = vld [vmem:[%s1 + $0x1b0] sm:$0xff]
  %v96 = vld [vmem:[%s1 + $0x1b8] sm:$0xff]
  %v97 = vld [vmem:[%s1 + $0x1c0] sm:$0xff]
  %v98 = vld [vmem:[%s1 + $0x1c8] sm:$0xff]
  %v99 = vld [vmem:[%s1 + $0x1d0] sm:$0xff]
  %v100 = vld [vmem:[%s1 + $0x1d8] sm:$0xff]
  %v101 = vld [vmem:[%s1 + $0x1e0] sm:$0xff]
  %v102 = vld [vmem:[%s1 + $0x1e8] sm:$0xff]
  %v103 = vld [vmem:[%s1 + $0x1f0] sm:$0xff]
  %v104 = vld [vmem:[%s1 + $0x1f8] sm:$0xff]
  %v105 = vld [vmem:[%s1 + $0x200] sm:$0xff]
  %v106 = vld [vmem:[%s1 + $0x208] sm:$0xff]
  %v107 = vld [vmem:[%s1 + $0x210] sm:$0xff]
  %v108 = vld [vmem:[%s1 + $0x218] sm:$0xff]
  %v109 = vld [vmem:[%s1 + $0x220] sm:$0xff]
  %v110 = vld [vmem:[%s1 + $0x228] sm:$0xff]
  %v111 = vld [vmem:[%s1 + $0x230] sm:$0xff]
  %v112 = vld [vmem:[%s1 + $0x238] sm:$0xff]
  %v113 = vld [vmem:[%s1 + $0x240] sm:$0xff]
  %v114 = vld [vmem:[%s1 + $0x248] sm:$0xff]
  %v115 = vld [vmem:[%s1 + $0x250] sm:$0xff]
  %v116 = vld [vmem:[%s1 + $0x258] sm:$0xff]
  %v117 = vld [vmem:[%s1 + $0x260] sm:$0xff]
  %v118 = vld [vmem:[%s1 + $0x268] sm:$0xff]
  %v119 = vld [vmem:[%s1 + $0x270] sm:$0xff]
  %v120 = vld [vmem:[%s1 + $0x278] sm:$0xff]
  %v121 = vld [vmem:[%s1 + $0x280] sm:$0xff]
  %v122 = vld [vmem:[%s1 + $0x288] sm:$0xff]
  %v123 = vld [vmem:[%s1 + $0x290] sm:$0xff]
  %v124 = vld [vmem:[%s1 + $0x298] sm:$0xff]
  %v125 = vld [vmem:[%s1 + $0x2a0] sm:$0xff]
  %v126 = vld [vmem:[%s1 + $0x2a8] sm:$0xff]
  %v127 = vld [vmem:[%s1 + $0x2b0] sm:$0xff]
  %v128 = vld [vmem:[%s1 + $0x2b8] sm:$0xff]
  %v129 = vld [vmem:[%s1 + $0x2c0] sm:$0xff]
  %v130 = vld [vmem:[%s1 + $0x2c8] sm:$0xff]
  %v131 = vld [vmem:[%s1 + $0x2d0] sm:$0xff]
  %v132 = vld [vmem:[%s1 + $0x2d8] sm:$0xff]
  %v133 = vld [vmem:[%s1 + $0x2e0] sm:$0xff]
  %v134 = vld [vmem:[%s1 + $0x2e8] sm:$0xff]
  %v135 = vld [vmem:[%s1 + $0x2f0] sm:$0xff]
  %v136 = vld [vmem:[%s1 + $0x2f8] sm:$0xff]
  %v137 = vld [vmem:[%s1 + $0x300] sm:$0xff]
  %v138 = vld [vmem:[%s1 + $0x308] sm:$0xff]
  %v139 = vld [vmem:[%s1 + $0x310] sm:$0xff]
  %v140 = vld [vmem:[%s1 + $0x318] sm:$0xff]
  %v141 = vld [vmem:[%s1 + $0x320] sm:$0xff]
  %v142 = vld [vmem:[%s1 + $0x328] sm:$0xff]
  %v143 = vld [vmem:[%s1 + $0x330] sm:$0xff]
  %v144 = vld [vmem:[%s1 + $0x338] sm:$0xff]
  %v145 = vld [vmem:[%s1 + $0x340] sm:$0xff]
  %v146 = vld [vmem:[%s1 + $0x348] sm:$0xff]
  %v147 = vld [vmem:[%s1 + $0x350] sm:$0xff]
  %v148 = vld [vmem:[%s1 + $0x358] sm:$0xff]
  %v149 = vld [vmem:[%s1 + $0x360] sm:$0xff]
  %v150 = vld [vmem:[%s1 + $0x368] sm:$0xff]
  %v151 = vld [vmem:[%s1 + $0x370] sm:$0xff]
  %v152 = vld [vmem:[%s1 + $0x378] sm:$0xff]
  %v153 = vld [vmem:[%s1 + $0x380] sm:$0xff]
  %v154 = vld [vmem:[%s1 + $0x388] sm:$0xff]
  %v155 = vld [vmem:[%s1 + $0x390] sm:$0xff]
  %v156 = vld [vmem:[%s1 + $0x398] sm:$0xff]
  %v157 = vld [vmem:[%s1 + $0x3a0] sm:$0xff]
  %v158 = vld [vmem:[%s1 + $0x3a8] sm:$0xff]
  %v159 = vld [vmem:[%s1 + $0x3b0] sm:$0xff]
  %v160 = vld [vmem:[%s1 + $0x3b8] sm:$0xff]
  %v161 = vld [vmem:[%s1 + $0x3c0] sm:$0xff]
  %v162 = vld [vmem:[%s1 + $0x3c8] sm:$0xff]
  %v163 = vld [vmem:[%s1 + $0x3d0] sm:$0xff]
  %v164 = vld [vmem:[%s1 + $0x3d8] sm:$0xff]
  %v165 = vld [vmem:[%s1 + $0x3e0] sm:$0xff]
  %v166 = vld [vmem:[%s1 + $0x3e8] sm:$0xff]
  %v167 = vld [vmem:[%s1 + $0x3f0] sm:$0xff]
  %v168 = vld [vmem:[%s1 + $0x3f8] sm:$0xff]
  %v169 = vld [vmem:[%s1 + $0x400] sm:$0xff]
  %v170 = vld [vmem:[%s1 + $0x408] sm:$0xff]
  %v171 = vld [vmem:[%s1 + $0x410] sm:$0xff]
  %v172 = vld [vmem:[%s1 + $0x418] sm:$0xff]
  %v173 = vld [vmem:[%s1 + $0x420] sm:$0xff]
  %v174 = vld [vmem:[%s1 + $0x428] sm:$0xff]
  %v175 = vld [vmem:[%s1 + $0x430] sm:$0xff]
  %v176 = vld [vmem:[%s1 + $0x438] sm:$0xff]
  %v177 = vld [vmem:[%s1 + $0x440] sm:$0xff]
  %v178 = vld [vmem:[%s1 + $0x448] sm:$0xff]
  %v179 = vld [vmem:[%s1 + $0x450] sm:$0xff]
  %v180 = vld [vmem:[%s1 + $0x458] sm:$0xff]
  %v181 = vld [vmem:[%s1 + $0x460] sm:$0xff]
  %v182 = vld [vmem:[%s1 + $0x468] sm:$0xff]
  %v183 = vld [vmem:[%s1 + $0x470] sm:$0xff]
  %v184 = vld [vmem:[%s1 + $0x478] sm:$0xff]
  %v185 = vld [vmem:[%s1 + $0x480] sm:$0xff]
  %v186 = vld [vmem:[%s1 + $0x488] sm:$0xff]
  %v187 = vld [vmem:[%s1 + $0x490] sm:$0xff]
  %v188 = vld [vmem:[%s1 + $0x498] sm:$0xff]
  %v189 = vld [vmem:[%s1 + $0x4a0] sm:$0xff]
  %v190 = vld [vmem:[%s1 + $0x4a8] sm:$0xff]
  %v191 = vld [vmem:[%s1 + $0x4b0] sm:$0xff]
  %v192 = vld [vmem:[%s1 + $0x4b8] sm:$0xff]
  %v193 = vld [vmem:[%s1 + $0x4c0] sm:$0xff]
  %v194 = vld [vmem:[%s1 + $0x4c8] sm:$0xff]
  %v195 = vld [vmem:[%s1 + $0x4d0] sm:$0xff]
  %v196 = vld [vmem:[%s1 + $0x4d8] sm:$0xff]
  %v197 = vld [vmem:[%s1 + $0x4e0] sm:$0xff]
  %v198 = vld [vmem:[%s1 + $0x4e8] sm:$0xff]
  %v199 = vld [vmem:[%s1 + $0x4f0] sm:$0xff]
  %v200 = vld [vmem:[%s1 + $0x4f8] sm:$0xff]
  %v201 = vld [vmem:[%s1 + $0x500] sm:$0xff]
  %v202 = vld [vmem:[%s1 + $0x508] sm:$0xff]
  %v203 = vld [vmem:[%s1 + $0x510] sm:$0xff]
  %v204 = vld [vmem:[%s1 + $0x518] sm:$0xff]
  %v205 = vld [vmem:[%s1 + $0x520] sm:$0xff]
  %v206 = vld [vmem:[%s1 + $0x528] sm:$0xff]
  %v207 = vld [vmem:[%s1 + $0x530] sm:$0xff]
  %v208 = vld [vmem:[%s1 + $0x538] sm:$0xff]
  %v209 = vld [vmem:[%s1 + $0x540] sm:$0xff]
  %v210 = vld [vmem:[%s1 + $0x548] sm:$0xff]
  %v211 = vld [vmem:[%s1 + $0x550] sm:$0xff]
  %v212 = vld [vmem:[%s1 + $0x558] sm:$0xff]
  %v213 = vld [vmem:[%s1 + $0x560] sm:$0xff]
  %v214 = vld [vmem:[%s1 + $0x568] sm:$0xff]
  %v215 = vld [vmem:[%s1 + $0x570] sm:$0xff]
  %v216 = vld [vmem:[%s1 + $0x578] sm:$0xff]
  %v217 = vld [vmem:[%s1 + $0x580] sm:$0xff]
  %v218 = vld [vmem:[%s1 + $0x588] sm:$0xff]
  %v219 = vld [vmem:[%s1 + $0x590] sm:$0xff]
  %v220 = vld [vmem:[%s1 + $0x598] sm:$0xff]
  %v221 = vld [vmem:[%s1 + $0x5a0] sm:$0xff]
  %v222 = vld [vmem:[%s1 + $0x5a8] sm:$0xff]
  %v223 = vld [vmem:[%s1 + $0x5b0] sm:$0xff]
  %v224 = vld [vmem:[%s1 + $0x5b8] sm:$0xff]
  %v225 = vld [vmem:[%s1 + $0x5c0] sm:$0xff]
  %v226 = vld [vmem:[%s1 + $0x5c8] sm:$0xff]
  %v227 = vld [vmem:[%s1 + $0x5d0] sm:$0xff]
  %v228 = vld [vmem:[%s1 + $0x5d8] sm:$0xff]
  %v229 = vld [vmem:[%s1 + $0x5e0] sm:$0xff]
  %v230 = vld [vmem:[%s1 + $0x5e8] sm:$0xff]
  %v231 = vld [vmem:[%s1 + $0x5f0] sm:$0xff]
  %v232 = vld [vmem:[%s1 + $0x5f8] sm:$0xff]
  %v233 = vld [vmem:[%s1 + $0x600] sm:$0xff]
  %v234 = vld [vmem:[%s1 + $0x608] sm:$0xff]
  %v235 = vld [vmem:[%s1 + $0x610] sm:$0xff]
  %v236 = vld [vmem:[%s1 + $0x618] sm:$0xff]
  %v237 = vld [vmem:[%s2] sm:$0x3]
  %v239 = vperm.slane %v237, 0
  %v240 = vperm.slane %v237, 1
  %v257 = vunpack.c.l.b16 %v27
  %v258 = vunpack.c.h.b16 %v27
  %v259 = vunpack.c.l.b16 %v28
  %v260 = vunpack.c.h.b16 %v28
  %v261 = vunpack.c.l.b16 %v29
  %v262 = vunpack.c.h.b16 %v29
  %v263 = vunpack.c.l.b16 %v30
  %v264 = vunpack.c.h.b16 %v30
  %v265 = vunpack.c.l.b16 %v31
  %v266 = vunpack.c.h.b16 %v31
  %v267 = vunpack.c.l.b16 %v32
  %v268 = vunpack.c.h.b16 %v32
  %v269 = vunpack.c.l.b16 %v33
  %v270 = vunpack.c.l.b16 %v34
  %v271 = vunpack.c.h.b16 %v34
  %v272 = vunpack.c.l.b16 %v35
  %v273 = vunpack.c.h.b16 %v35
  %v274 = vunpack.c.l.b16 %v36
  %v275 = vunpack.c.h.b16 %v36
  %v276 = vunpack.c.l.b16 %v37
  %v277 = vunpack.c.h.b16 %v37
  %v278 = vunpack.c.l.b16 %v38
  %v279 = vunpack.c.h.b16 %v38
  %v280 = vunpack.c.l.b16 %v39
  %v281 = vunpack.c.h.b16 %v39
  %v282 = vunpack.c.l.b16 %v40
  %v283 = vpack.c.b16 %v270, %v257
  %v284 = vpack.c.b16 %v271, %v258
  %v285 = vpack.c.b16 %v272, %v259
  %v286 = vpack.c.b16 %v273, %v260
  %v287 = vpack.c.b16 %v274, %v261
  %v288 = vpack.c.b16 %v275, %v262
  %v289 = vpack.c.b16 %v276, %v263
  %v290 = vpack.c.b16 %v277, %v264
  %v291 = vpack.c.b16 %v278, %v265
  %v292 = vpack.c.b16 %v279, %v266
  %v293 = vpack.c.b16 %v280, %v267
  %v294 = vpack.c.b16 %v281, %v268
  %v295 = vpack.c.b16 %v282, %v269
  %v504 = vunpack.c.l.b16 %v41
  %v505 = vunpack.c.h.b16 %v41
  %v506 = vunpack.c.l.b16 %v42
  %v507 = vunpack.c.h.b16 %v42
  %v508 = vunpack.c.l.b16 %v43
  %v509 = vunpack.c.h.b16 %v43
  %v510 = vunpack.c.l.b16 %v44
  %v511 = vunpack.c.h.b16 %v44
  %v512 = vunpack.c.l.b16 %v45
  %v513 = vunpack.c.h.b16 %v45
  %v514 = vunpack.c.l.b16 %v46
  %v515 = vunpack.c.h.b16 %v46
  %v516 = vunpack.c.l.b16 %v47
  %v517 = vunpack.c.h.b16 %v47
  %v518 = vunpack.c.l.b16 %v48
  %v519 = vunpack.c.h.b16 %v48
  %v520 = vunpack.c.l.b16 %v49
  %v521 = vunpack.c.h.b16 %v49
  %v522 = vunpack.c.l.b16 %v50
  %v523 = vunpack.c.h.b16 %v50
  %v524 = vunpack.c.l.b16 %v51
  %v525 = vunpack.c.h.b16 %v51
  %v526 = vunpack.c.l.b16 %v52
  %v527 = vunpack.c.h.b16 %v52
  %v528 = vunpack.c.l.b16 %v53
  %v529 = vunpack.c.h.b16 %v53
  %v530 = vunpack.c.l.b16 %v54
  %v531 = vunpack.c.h.b16 %v54
  %v532 = vunpack.c.l.b16 %v55
  %v533 = vunpack.c.h.b16 %v55
  %v534 = vunpack.c.l.b16 %v56
  %v535 = vunpack.c.h.b16 %v56
  %v536 = vunpack.c.l.b16 %v57
  %v537 = vunpack.c.h.b16 %v57
  %v538 = vunpack.c.l.b16 %v58
  %v539 = vunpack.c.h.b16 %v58
  %v540 = vunpack.c.l.b16 %v59
  %v541 = vunpack.c.h.b16 %v59
  %v542 = vunpack.c.l.b16 %v60
  %v543 = vunpack.c.h.b16 %v60
  %v544 = vunpack.c.l.b16 %v61
  %v545 = vunpack.c.h.b16 %v61
  %v546 = vunpack.c.l.b16 %v62
  %v547 = vunpack.c.h.b16 %v62
  %v548 = vunpack.c.l.b16 %v63
  %v549 = vunpack.c.h.b16 %v63
  %v550 = vunpack.c.l.b16 %v64
  %v551 = vunpack.c.h.b16 %v64
  %v552 = vunpack.c.l.b16 %v65
  %v553 = vunpack.c.h.b16 %v65
  %v554 = vunpack.c.l.b16 %v66
  %v555 = vunpack.c.h.b16 %v66
  %v556 = vunpack.c.l.b16 %v67
  %v557 = vunpack.c.h.b16 %v67
  %v558 = vunpack.c.l.b16 %v68
  %v559 = vunpack.c.h.b16 %v68
  %v560 = vunpack.c.l.b16 %v69
  %v561 = vunpack.c.h.b16 %v69
  %v562 = vunpack.c.l.b16 %v70
  %v563 = vunpack.c.h.b16 %v70
  %v564 = vunpack.c.l.b16 %v71
  %v565 = vunpack.c.h.b16 %v71
  %v566 = vunpack.c.l.b16 %v72
  %v567 = vunpack.c.h.b16 %v72
  %v568 = vunpack.c.l.b16 %v73
  %v569 = vunpack.c.h.b16 %v73
  %v570 = vunpack.c.l.b16 %v74
  %v571 = vunpack.c.h.b16 %v74
  %v572 = vunpack.c.l.b16 %v75
  %v573 = vunpack.c.h.b16 %v75
  %v574 = vunpack.c.l.b16 %v76
  %v575 = vunpack.c.h.b16 %v76
  %v576 = vunpack.c.l.b16 %v77
  %v577 = vunpack.c.h.b16 %v77
  %v578 = vunpack.c.l.b16 %v78
  %v579 = vunpack.c.h.b16 %v78
  %v580 = vunpack.c.l.b16 %v79
  %v581 = vunpack.c.h.b16 %v79
  %v582 = vunpack.c.l.b16 %v80
  %v583 = vunpack.c.h.b16 %v80
  %v584 = vunpack.c.l.b16 %v81
  %v585 = vunpack.c.h.b16 %v81
  %v586 = vunpack.c.l.b16 %v82
  %v587 = vunpack.c.h.b16 %v82
  %v588 = vunpack.c.l.b16 %v83
  %v589 = vunpack.c.h.b16 %v83
  %v590 = vunpack.c.l.b16 %v84
  %v591 = vunpack.c.h.b16 %v84
  %v592 = vunpack.c.l.b16 %v85
  %v593 = vunpack.c.h.b16 %v85
  %v594 = vunpack.c.l.b16 %v86
  %v595 = vunpack.c.h.b16 %v86
  %v596 = vunpack.c.l.b16 %v87
  %v597 = vunpack.c.h.b16 %v87
  %v598 = vunpack.c.l.b16 %v88
  %v599 = vunpack.c.h.b16 %v88
  %v600 = vunpack.c.l.b16 %v89
  %v601 = vunpack.c.h.b16 %v89
  %v602 = vunpack.c.l.b16 %v90
  %v603 = vunpack.c.h.b16 %v90
  %v604 = vunpack.c.l.b16 %v91
  %v605 = vunpack.c.h.b16 %v91
  %v606 = vunpack.c.l.b16 %v92
  %v607 = vunpack.c.h.b16 %v92
  %v608 = vunpack.c.l.b16 %v93
  %v609 = vunpack.c.h.b16 %v93
  %v610 = vunpack.c.l.b16 %v94
  %v611 = vunpack.c.h.b16 %v94
  %v612 = vunpack.c.l.b16 %v95
  %v613 = vunpack.c.h.b16 %v95
  %v614 = vunpack.c.l.b16 %v96
  %v615 = vunpack.c.h.b16 %v96
  %v616 = vunpack.c.l.b16 %v97
  %v617 = vunpack.c.h.b16 %v97
  %v618 = vunpack.c.l.b16 %v98
  %v619 = vunpack.c.h.b16 %v98
  %v620 = vunpack.c.l.b16 %v99
  %v621 = vunpack.c.h.b16 %v99
  %v622 = vunpack.c.l.b16 %v100
  %v623 = vunpack.c.h.b16 %v100
  %v624 = vunpack.c.l.b16 %v101
  %v625 = vunpack.c.h.b16 %v101
  %v626 = vunpack.c.l.b16 %v102
  %v627 = vunpack.c.h.b16 %v102
  %v628 = vunpack.c.l.b16 %v103
  %v629 = vunpack.c.h.b16 %v103
  %v630 = vunpack.c.l.b16 %v104
  %v631 = vunpack.c.h.b16 %v104
  %v632 = vunpack.c.l.b16 %v105
  %v633 = vunpack.c.h.b16 %v105
  %v634 = vunpack.c.l.b16 %v106
  %v635 = vunpack.c.h.b16 %v106
  %v636 = vunpack.c.l.b16 %v107
  %v637 = vunpack.c.h.b16 %v107
  %v638 = vunpack.c.l.b16 %v108
  %v639 = vunpack.c.h.b16 %v108
  %v640 = vunpack.c.l.b16 %v109
  %v641 = vunpack.c.h.b16 %v109
  %v642 = vunpack.c.l.b16 %v110
  %v643 = vunpack.c.h.b16 %v110
  %v644 = vunpack.c.l.b16 %v111
  %v645 = vunpack.c.h.b16 %v111
  %v646 = vunpack.c.l.b16 %v112
  %v647 = vunpack.c.h.b16 %v112
  %v648 = vunpack.c.l.b16 %v113
  %v649 = vunpack.c.h.b16 %v113
  %v650 = vunpack.c.l.b16 %v114
  %v651 = vunpack.c.h.b16 %v114
  %v652 = vunpack.c.l.b16 %v115
  %v653 = vunpack.c.h.b16 %v115
  %v654 = vunpack.c.l.b16 %v116
  %v655 = vunpack.c.h.b16 %v116
  %v656 = vunpack.c.l.b16 %v117
  %v657 = vunpack.c.h.b16 %v117
  %v658 = vunpack.c.l.b16 %v118
  %v659 = vunpack.c.h.b16 %v118
  %v660 = vunpack.c.l.b16 %v119
  %v661 = vunpack.c.h.b16 %v119
  %v662 = vunpack.c.l.b16 %v120
  %v663 = vunpack.c.h.b16 %v120
  %v664 = vunpack.c.l.b16 %v121
  %v665 = vunpack.c.h.b16 %v121
  %v666 = vunpack.c.l.b16 %v122
  %v667 = vunpack.c.h.b16 %v122
  %v668 = vunpack.c.l.b16 %v123
  %v669 = vunpack.c.h.b16 %v123
  %v670 = vunpack.c.l.b16 %v124
  %v671 = vunpack.c.h.b16 %v124
  %v672 = vunpack.c.l.b16 %v125
  %v673 = vunpack.c.h.b16 %v125
  %v674 = vunpack.c.l.b16 %v126
  %v675 = vunpack.c.h.b16 %v126
  %v676 = vunpack.c.l.b16 %v127
  %v677 = vunpack.c.h.b16 %v127
  %v678 = vunpack.c.l.b16 %v128
  %v679 = vunpack.c.h.b16 %v128
  %v680 = vunpack.c.l.b16 %v129
  %v681 = vunpack.c.h.b16 %v129
  %v682 = vunpack.c.l.b16 %v130
  %v683 = vunpack.c.h.b16 %v130
  %v684 = vunpack.c.l.b16 %v131
  %v685 = vunpack.c.h.b16 %v131
  %v686 = vunpack.c.l.b16 %v132
  %v687 = vunpack.c.h.b16 %v132
  %v688 = vunpack.c.l.b16 %v133
  %v689 = vunpack.c.h.b16 %v133
  %v690 = vunpack.c.l.b16 %v134
  %v691 = vunpack.c.h.b16 %v134
  %v692 = vunpack.c.l.b16 %v135
  %v693 = vunpack.c.h.b16 %v135
  %v694 = vunpack.c.l.b16 %v136
  %v695 = vunpack.c.h.b16 %v136
  %v696 = vunpack.c.l.b16 %v137
  %v697 = vunpack.c.h.b16 %v137
  %v698 = vunpack.c.l.b16 %v138
  %v699 = vunpack.c.h.b16 %v138
  %v700 = vunpack.c.l.b16 %v139
  %v701 = vunpack.c.h.b16 %v139
  %v702 = vunpack.c.l.b16 %v140
  %v703 = vunpack.c.h.b16 %v140
  %v704 = vunpack.c.l.b16 %v141
  %v705 = vunpack.c.h.b16 %v141
  %v706 = vunpack.c.l.b16 %v142
  %v707 = vunpack.c.h.b16 %v142
  %v708 = vunpack.c.l.b16 %v143
  %v709 = vunpack.c.h.b16 %v143
  %v710 = vunpack.c.l.b16 %v144
  %v711 = vunpack.c.h.b16 %v144
  %v712 = vunpack.c.l.b16 %v145
  %v713 = vunpack.c.h.b16 %v145
  %v714 = vunpack.c.l.b16 %v146
  %v715 = vunpack.c.h.b16 %v146
  %v716 = vunpack.c.l.b16 %v147
  %v717 = vunpack.c.h.b16 %v147
  %v718 = vunpack.c.l.b16 %v148
  %v719 = vunpack.c.h.b16 %v148
  %v720 = vunpack.c.l.b16 %v149
  %v721 = vunpack.c.h.b16 %v149
  %v722 = vunpack.c.l.b16 %v150
  %v723 = vunpack.c.h.b16 %v150
  %v724 = vunpack.c.l.b16 %v151
  %v725 = vunpack.c.h.b16 %v151
  %v726 = vunpack.c.l.b16 %v152
  %v727 = vunpack.c.h.b16 %v152
  %v728 = vunpack.c.l.b16 %v153
  %v729 = vunpack.c.h.b16 %v153
  %v730 = vunpack.c.l.b16 %v154
  %v731 = vunpack.c.h.b16 %v154
  %v732 = vunpack.c.l.b16 %v155
  %v733 = vunpack.c.h.b16 %v155
  %v734 = vunpack.c.l.b16 %v156
  %v735 = vunpack.c.h.b16 %v156
  %v736 = vunpack.c.l.b16 %v157
  %v737 = vunpack.c.h.b16 %v157
  %v738 = vunpack.c.l.b16 %v158
  %v739 = vunpack.c.h.b16 %v158
  %v740 = vunpack.c.l.b16 %v159
  %v741 = vunpack.c.h.b16 %v159
  %v742 = vunpack.c.l.b16 %v160
  %v743 = vunpack.c.h.b16 %v160
  %v744 = vunpack.c.l.b16 %v161
  %v745 = vunpack.c.h.b16 %v161
  %v746 = vunpack.c.l.b16 %v162
  %v747 = vunpack.c.h.b16 %v162
  %v748 = vunpack.c.l.b16 %v163
  %v749 = vunpack.c.h.b16 %v163
  %v750 = vunpack.c.l.b16 %v164
  %v751 = vunpack.c.h.b16 %v164
  %v752 = vunpack.c.l.b16 %v165
  %v753 = vunpack.c.h.b16 %v165
  %v754 = vunpack.c.l.b16 %v166
  %v755 = vunpack.c.h.b16 %v166
  %v756 = vunpack.c.l.b16 %v167
  %v757 = vunpack.c.h.b16 %v167
  %v758 = vunpack.c.l.b16 %v168
  %v759 = vunpack.c.h.b16 %v168
  %v760 = vunpack.c.l.b16 %v169
  %v761 = vunpack.c.h.b16 %v169
  %v762 = vunpack.c.l.b16 %v170
  %v763 = vunpack.c.h.b16 %v170
  %v764 = vunpack.c.l.b16 %v171
  %v765 = vunpack.c.h.b16 %v171
  %v766 = vunpack.c.l.b16 %v172
  %v767 = vunpack.c.h.b16 %v172
  %v768 = vunpack.c.l.b16 %v173
  %v769 = vunpack.c.h.b16 %v173
  %v770 = vunpack.c.l.b16 %v174
  %v771 = vunpack.c.h.b16 %v174
  %v772 = vunpack.c.l.b16 %v175
  %v773 = vunpack.c.h.b16 %v175
  %v774 = vunpack.c.l.b16 %v176
  %v775 = vunpack.c.h.b16 %v176
  %v776 = vunpack.c.l.b16 %v177
  %v777 = vunpack.c.h.b16 %v177
  %v778 = vunpack.c.l.b16 %v178
  %v779 = vunpack.c.h.b16 %v178
  %v780 = vunpack.c.l.b16 %v179
  %v781 = vunpack.c.h.b16 %v179
  %v782 = vunpack.c.l.b16 %v180
  %v783 = vunpack.c.h.b16 %v180
  %v784 = vunpack.c.l.b16 %v181
  %v785 = vunpack.c.h.b16 %v181
  %v786 = vunpack.c.l.b16 %v182
  %v787 = vunpack.c.h.b16 %v182
  %v788 = vunpack.c.l.b16 %v183
  %v789 = vunpack.c.h.b16 %v183
  %v790 = vunpack.c.l.b16 %v184
  %v791 = vunpack.c.h.b16 %v184
  %v792 = vunpack.c.l.b16 %v185
  %v793 = vunpack.c.h.b16 %v185
  %v794 = vunpack.c.l.b16 %v186
  %v795 = vunpack.c.h.b16 %v186
  %v796 = vunpack.c.l.b16 %v187
  %v797 = vunpack.c.h.b16 %v187
  %v798 = vunpack.c.l.b16 %v188
  %v799 = vunpack.c.h.b16 %v188
  %v800 = vunpack.c.l.b16 %v189
  %v801 = vunpack.c.h.b16 %v189
  %v802 = vunpack.c.l.b16 %v190
  %v803 = vunpack.c.h.b16 %v190
  %v804 = vunpack.c.l.b16 %v191
  %v805 = vunpack.c.h.b16 %v191
  %v806 = vunpack.c.l.b16 %v192
  %v807 = vunpack.c.h.b16 %v192
  %v808 = vunpack.c.l.b16 %v193
  %v809 = vunpack.c.h.b16 %v193
  %v810 = vunpack.c.l.b16 %v194
  %v811 = vunpack.c.h.b16 %v194
  %v812 = vunpack.c.l.b16 %v195
  %v813 = vunpack.c.h.b16 %v195
  %v814 = vunpack.c.l.b16 %v196
  %v815 = vunpack.c.h.b16 %v196
  %v816 = vunpack.c.l.b16 %v197
  %v817 = vunpack.c.h.b16 %v197
  %v818 = vunpack.c.l.b16 %v198
  %v819 = vunpack.c.h.b16 %v198
  %v820 = vunpack.c.l.b16 %v199
  %v821 = vunpack.c.h.b16 %v199
  %v822 = vunpack.c.l.b16 %v200
  %v823 = vunpack.c.h.b16 %v200
  %v824 = vunpack.c.l.b16 %v201
  %v825 = vunpack.c.h.b16 %v201
  %v826 = vunpack.c.l.b16 %v202
  %v827 = vunpack.c.h.b16 %v202
  %v828 = vunpack.c.l.b16 %v203
  %v829 = vunpack.c.h.b16 %v203
  %v830 = vunpack.c.l.b16 %v204
  %v831 = vunpack.c.h.b16 %v204
  %v832 = vunpack.c.l.b16 %v205
  %v833 = vunpack.c.h.b16 %v205
  %v834 = vunpack.c.l.b16 %v206
  %v835 = vunpack.c.h.b16 %v206
  %v836 = vunpack.c.l.b16 %v207
  %v837 = vunpack.c.h.b16 %v207
  %v838 = vunpack.c.l.b16 %v208
  %v839 = vunpack.c.h.b16 %v208
  %v840 = vunpack.c.l.b16 %v209
  %v841 = vunpack.c.h.b16 %v209
  %v842 = vunpack.c.l.b16 %v210
  %v843 = vunpack.c.h.b16 %v210
  %v844 = vunpack.c.l.b16 %v211
  %v845 = vunpack.c.h.b16 %v211
  %v846 = vunpack.c.l.b16 %v212
  %v847 = vunpack.c.h.b16 %v212
  %v848 = vunpack.c.l.b16 %v213
  %v849 = vunpack.c.h.b16 %v213
  %v850 = vunpack.c.l.b16 %v214
  %v851 = vunpack.c.h.b16 %v214
  %v852 = vunpack.c.l.b16 %v215
  %v853 = vunpack.c.h.b16 %v215
  %v854 = vunpack.c.l.b16 %v216
  %v855 = vunpack.c.h.b16 %v216
  %v856 = vunpack.c.l.b16 %v217
  %v857 = vunpack.c.h.b16 %v217
  %v858 = vunpack.c.l.b16 %v218
  %v859 = vunpack.c.h.b16 %v218
  %v860 = vunpack.c.l.b16 %v219
  %v861 = vunpack.c.h.b16 %v219
  %v862 = vunpack.c.l.b16 %v220
  %v863 = vunpack.c.h.b16 %v220
  %v864 = vunpack.c.l.b16 %v221
  %v865 = vunpack.c.h.b16 %v221
  %v866 = vunpack.c.l.b16 %v222
  %v867 = vunpack.c.h.b16 %v222
  %v868 = vunpack.c.l.b16 %v223
  %v869 = vunpack.c.h.b16 %v223
  %v870 = vunpack.c.l.b16 %v224
  %v871 = vunpack.c.h.b16 %v224
  %v872 = vunpack.c.l.b16 %v225
  %v873 = vunpack.c.h.b16 %v225
  %v874 = vunpack.c.l.b16 %v226
  %v875 = vunpack.c.h.b16 %v226
  %v876 = vunpack.c.l.b16 %v227
  %v877 = vunpack.c.h.b16 %v227
  %v878 = vunpack.c.l.b16 %v228
  %v879 = vunpack.c.h.b16 %v228
  %v880 = vunpack.c.l.b16 %v229
  %v881 = vunpack.c.h.b16 %v229
  %v882 = vunpack.c.l.b16 %v230
  %v883 = vunpack.c.h.b16 %v230
  %v884 = vunpack.c.l.b16 %v231
  %v885 = vunpack.c.h.b16 %v231
  %v886 = vunpack.c.l.b16 %v232
  %v887 = vunpack.c.h.b16 %v232
  %v888 = vunpack.c.l.b16 %v233
  %v889 = vunpack.c.h.b16 %v233
  %v890 = vunpack.c.l.b16 %v234
  %v891 = vunpack.c.h.b16 %v234
  %v892 = vunpack.c.l.b16 %v235
  %v893 = vunpack.c.h.b16 %v235
  %v894 = vunpack.c.l.b16 %v236
  %v895 = vunpack.c.h.b16 %v236
  %v896 = vpack.c.b16 %v506, %v504
  %v897 = vpack.c.b16 %v507, %v505
  %v898 = vpack.c.b16 %v510, %v508
  %v899 = vpack.c.b16 %v511, %v509
  %v900 = vpack.c.b16 %v514, %v512
  %v901 = vpack.c.b16 %v515, %v513
  %v902 = vpack.c.b16 %v518, %v516
  %v903 = vpack.c.b16 %v519, %v517
  %v904 = vpack.c.b16 %v522, %v520
  %v905 = vpack.c.b16 %v523, %v521
  %v906 = vpack.c.b16 %v526, %v524
  %v907 = vpack.c.b16 %v527, %v525
  %v908 = vpack.c.b16 %v530, %v528
  %v909 = vpack.c.b16 %v531, %v529
  %v910 = vpack.c.b16 %v534, %v532
  %v911 = vpack.c.b16 %v535, %v533
  %v912 = vpack.c.b16 %v538, %v536
  %v913 = vpack.c.b16 %v539, %v537
  %v914 = vpack.c.b16 %v542, %v540
  %v915 = vpack.c.b16 %v543, %v541
  %v916 = vpack.c.b16 %v546, %v544
  %v917 = vpack.c.b16 %v547, %v545
  %v918 = vpack.c.b16 %v550, %v548
  %v919 = vpack.c.b16 %v551, %v549
  %v920 = vpack.c.b16 %v554, %v552
  %v921 = vpack.c.b16 %v555, %v553
  %v922 = vpack.c.b16 %v558, %v556
  %v923 = vpack.c.b16 %v559, %v557
  %v924 = vpack.c.b16 %v562, %v560
  %v925 = vpack.c.b16 %v563, %v561
  %v926 = vpack.c.b16 %v566, %v564
  %v927 = vpack.c.b16 %v567, %v565
  %v928 = vpack.c.b16 %v570, %v568
  %v929 = vpack.c.b16 %v571, %v569
  %v930 = vpack.c.b16 %v574, %v572
  %v931 = vpack.c.b16 %v575, %v573
  %v932 = vpack.c.b16 %v578, %v576
  %v933 = vpack.c.b16 %v579, %v577
  %v934 = vpack.c.b16 %v582, %v580
  %v935 = vpack.c.b16 %v583, %v581
  %v936 = vpack.c.b16 %v586, %v584
  %v937 = vpack.c.b16 %v587, %v585
  %v938 = vpack.c.b16 %v590, %v588
  %v939 = vpack.c.b16 %v591, %v589
  %v940 = vpack.c.b16 %v594, %v592
  %v941 = vpack.c.b16 %v595, %v593
  %v942 = vpack.c.b16 %v598, %v596
  %v943 = vpack.c.b16 %v599, %v597
  %v944 = vpack.c.b16 %v602, %v600
  %v945 = vpack.c.b16 %v603, %v601
  %v946 = vpack.c.b16 %v606, %v604
  %v947 = vpack.c.b16 %v607, %v605
  %v948 = vpack.c.b16 %v610, %v608
  %v949 = vpack.c.b16 %v611, %v609
  %v950 = vpack.c.b16 %v614, %v612
  %v951 = vpack.c.b16 %v615, %v613
  %v952 = vpack.c.b16 %v618, %v616
  %v953 = vpack.c.b16 %v619, %v617
  %v954 = vpack.c.b16 %v622, %v620
  %v955 = vpack.c.b16 %v623, %v621
  %v956 = vpack.c.b16 %v626, %v624
  %v957 = vpack.c.b16 %v627, %v625
  %v958 = vpack.c.b16 %v630, %v628
  %v959 = vpack.c.b16 %v631, %v629
  %v960 = vpack.c.b16 %v634, %v632
  %v961 = vpack.c.b16 %v635, %v633
  %v962 = vpack.c.b16 %v638, %v636
  %v963 = vpack.c.b16 %v639, %v637
  %v964 = vpack.c.b16 %v642, %v640
  %v965 = vpack.c.b16 %v643, %v641
  %v966 = vpack.c.b16 %v646, %v644
  %v967 = vpack.c.b16 %v647, %v645
  %v968 = vpack.c.b16 %v650, %v648
  %v969 = vpack.c.b16 %v651, %v649
  %v970 = vpack.c.b16 %v654, %v652
  %v971 = vpack.c.b16 %v655, %v653
  %v972 = vpack.c.b16 %v658, %v656
  %v973 = vpack.c.b16 %v659, %v657
  %v974 = vpack.c.b16 %v662, %v660
  %v975 = vpack.c.b16 %v663, %v661
  %v976 = vpack.c.b16 %v666, %v664
  %v977 = vpack.c.b16 %v667, %v665
  %v978 = vpack.c.b16 %v670, %v668
  %v979 = vpack.c.b16 %v671, %v669
  %v980 = vpack.c.b16 %v674, %v672
  %v981 = vpack.c.b16 %v675, %v673
  %v982 = vpack.c.b16 %v678, %v676
  %v983 = vpack.c.b16 %v679, %v677
  %v984 = vpack.c.b16 %v682, %v680
  %v985 = vpack.c.b16 %v683, %v681
  %v986 = vpack.c.b16 %v686, %v684
  %v987 = vpack.c.b16 %v687, %v685
  %v988 = vpack.c.b16 %v690, %v688
  %v989 = vpack.c.b16 %v691, %v689
  %v990 = vpack.c.b16 %v694, %v692
  %v991 = vpack.c.b16 %v695, %v693
  %v992 = vpack.c.b16 %v698, %v696
  %v993 = vpack.c.b16 %v699, %v697
  %v994 = vpack.c.b16 %v702, %v700
  %v995 = vpack.c.b16 %v703, %v701
  %v996 = vpack.c.b16 %v706, %v704
  %v997 = vpack.c.b16 %v707, %v705
  %v998 = vpack.c.b16 %v710, %v708
  %v999 = vpack.c.b16 %v711, %v709
  %v1000 = vpack.c.b16 %v714, %v712
  %v1001 = vpack.c.b16 %v715, %v713
  %v1002 = vpack.c.b16 %v718, %v716
  %v1003 = vpack.c.b16 %v719, %v717
  %v1004 = vpack.c.b16 %v722, %v720
  %v1005 = vpack.c.b16 %v723, %v721
  %v1006 = vpack.c.b16 %v726, %v724
  %v1007 = vpack.c.b16 %v727, %v725
  %v1008 = vpack.c.b16 %v730, %v728
  %v1009 = vpack.c.b16 %v731, %v729
  %v1010 = vpack.c.b16 %v734, %v732
  %v1011 = vpack.c.b16 %v735, %v733
  %v1012 = vpack.c.b16 %v738, %v736
  %v1013 = vpack.c.b16 %v739, %v737
  %v1014 = vpack.c.b16 %v742, %v740
  %v1015 = vpack.c.b16 %v743, %v741
  %v1016 = vpack.c.b16 %v746, %v744
  %v1017 = vpack.c.b16 %v747, %v745
  %v1018 = vpack.c.b16 %v750, %v748
  %v1019 = vpack.c.b16 %v751, %v749
  %v1020 = vpack.c.b16 %v754, %v752
  %v1021 = vpack.c.b16 %v755, %v753
  %v1022 = vpack.c.b16 %v758, %v756
  %v1023 = vpack.c.b16 %v759, %v757
  %v1024 = vpack.c.b16 %v762, %v760
  %v1025 = vpack.c.b16 %v763, %v761
  %v1026 = vpack.c.b16 %v766, %v764
  %v1027 = vpack.c.b16 %v767, %v765
  %v1028 = vpack.c.b16 %v770, %v768
  %v1029 = vpack.c.b16 %v771, %v769
  %v1030 = vpack.c.b16 %v774, %v772
  %v1031 = vpack.c.b16 %v775, %v773
  %v1032 = vpack.c.b16 %v778, %v776
  %v1033 = vpack.c.b16 %v779, %v777
  %v1034 = vpack.c.b16 %v782, %v780
  %v1035 = vpack.c.b16 %v783, %v781
  %v1036 = vpack.c.b16 %v786, %v784
  %v1037 = vpack.c.b16 %v787, %v785
  %v1038 = vpack.c.b16 %v790, %v788
  %v1039 = vpack.c.b16 %v791, %v789
  %v1040 = vpack.c.b16 %v794, %v792
  %v1041 = vpack.c.b16 %v795, %v793
  %v1042 = vpack.c.b16 %v798, %v796
  %v1043 = vpack.c.b16 %v799, %v797
  %v1044 = vpack.c.b16 %v802, %v800
  %v1045 = vpack.c.b16 %v803, %v801
  %v1046 = vpack.c.b16 %v806, %v804
  %v1047 = vpack.c.b16 %v807, %v805
  %v1048 = vpack.c.b16 %v810, %v808
  %v1049 = vpack.c.b16 %v811, %v809
  %v1050 = vpack.c.b16 %v814, %v812
  %v1051 = vpack.c.b16 %v815, %v813
  %v1052 = vpack.c.b16 %v818, %v816
  %v1053 = vpack.c.b16 %v819, %v817
  %v1054 = vpack.c.b16 %v822, %v820
  %v1055 = vpack.c.b16 %v823, %v821
  %v1056 = vpack.c.b16 %v826, %v824
  %v1057 = vpack.c.b16 %v827, %v825
  %v1058 = vpack.c.b16 %v830, %v828
  %v1059 = vpack.c.b16 %v831, %v829
  %v1060 = vpack.c.b16 %v834, %v832
  %v1061 = vpack.c.b16 %v835, %v833
  %v1062 = vpack.c.b16 %v838, %v836
  %v1063 = vpack.c.b16 %v839, %v837
  %v1064 = vpack.c.b16 %v842, %v840
  %v1065 = vpack.c.b16 %v843, %v841
  %v1066 = vpack.c.b16 %v846, %v844
  %v1067 = vpack.c.b16 %v847, %v845
  %v1068 = vpack.c.b16 %v850, %v848
  %v1069 = vpack.c.b16 %v851, %v849
  %v1070 = vpack.c.b16 %v854, %v852
  %v1071 = vpack.c.b16 %v855, %v853
  %v1072 = vpack.c.b16 %v858, %v856
  %v1073 = vpack.c.b16 %v859, %v857
  %v1074 = vpack.c.b16 %v862, %v860
  %v1075 = vpack.c.b16 %v863, %v861
  %v1076 = vpack.c.b16 %v866, %v864
  %v1077 = vpack.c.b16 %v867, %v865
  %v1078 = vpack.c.b16 %v870, %v868
  %v1079 = vpack.c.b16 %v871, %v869
  %v1080 = vpack.c.b16 %v874, %v872
  %v1081 = vpack.c.b16 %v875, %v873
  %v1082 = vpack.c.b16 %v878, %v876
  %v1083 = vpack.c.b16 %v879, %v877
  %v1084 = vpack.c.b16 %v882, %v880
  %v1085 = vpack.c.b16 %v883, %v881
  %v1086 = vpack.c.b16 %v886, %v884
  %v1087 = vpack.c.b16 %v887, %v885
  %v1088 = vpack.c.b16 %v890, %v888
  %v1089 = vpack.c.b16 %v891, %v889
  %v1090 = vpack.c.b16 %v894, %v892
  %v1091 = vpack.c.b16 %v895, %v893
  %vm1288 = vcmask 261120
  %v1290 = vsel %vm1288, %v295, 0
  %1292 = vmatpush.bf16.msra.mxu0 %v910
  %1293 = vmatpush.bf16.msra.mxu0 %v908
  %1294 = vmatpush.bf16.msra.mxu0 %v906
  %1295 = vmatpush.bf16.msra.mxu0 %v904
  %1296 = vmatpush.bf16.msra.mxu0 %v902
  %1297 = vmatpush.bf16.msra.mxu0 %v900
  %1298 = vmatpush.bf16.msra.mxu0 %v898
  %1299 = vmatpush.bf16.msra.mxu0 %v896
  %1300 = vmatmul.bf16.gmra.mxu0 %v283
  %v1301 = vpop.f32.mrf.mxu0
  %v1302 = vadd.f32 %v239, %v1301
  %v1303 = vpop.f32.mrf.mxu0
  %v1304 = vadd.f32 %v239, %v1303
  %1305 = vdwg.mxu0
  %1306 = vmatpush.bf16.msra.mxu0 %v926
  %1307 = vmatpush.bf16.msra.mxu0 %v924
  %1308 = vmatpush.bf16.msra.mxu0 %v922
  %1309 = vmatpush.bf16.msra.mxu0 %v920
  %1310 = vmatpush.bf16.msra.mxu0 %v918
  %1311 = vmatpush.bf16.msra.mxu0 %v916
  %1312 = vmatpush.bf16.msra.mxu0 %v914
  %1313 = vmatpush.bf16.msra.mxu0 %v912
  %1314 = vmatmul.bf16.gmra.mxu0 %v284
  %v1315 = vpop.f32.mrf.mxu0
  %v1316 = vadd.f32 %v1302, %v1315
  %v1317 = vpop.f32.mrf.mxu0
  %v1318 = vadd.f32 %v1304, %v1317
  %1319 = vdwg.mxu0
  %1320 = vmatpush.bf16.msra.mxu0 %v942
  %1321 = vmatpush.bf16.msra.mxu0 %v940
  %1322 = vmatpush.bf16.msra.mxu0 %v938
  %1323 = vmatpush.bf16.msra.mxu0 %v936
  %1324 = vmatpush.bf16.msra.mxu0 %v934
  %1325 = vmatpush.bf16.msra.mxu0 %v932
  %1326 = vmatpush.bf16.msra.mxu0 %v930
  %1327 = vmatpush.bf16.msra.mxu0 %v928
  %1328 = vmatmul.bf16.gmra.mxu0 %v285
  %v1329 = vpop.f32.mrf.mxu0
  %v1330 = vadd.f32 %v1316, %v1329
  %v1331 = vpop.f32.mrf.mxu0
  %v1332 = vadd.f32 %v1318, %v1331
  %1333 = vdwg.mxu0
  %1334 = vmatpush.bf16.msra.mxu0 %v958
  %1335 = vmatpush.bf16.msra.mxu0 %v956
  %1336 = vmatpush.bf16.msra.mxu0 %v954
  %1337 = vmatpush.bf16.msra.mxu0 %v952
  %1338 = vmatpush.bf16.msra.mxu0 %v950
  %1339 = vmatpush.bf16.msra.mxu0 %v948
  %1340 = vmatpush.bf16.msra.mxu0 %v946
  %1341 = vmatpush.bf16.msra.mxu0 %v944
  %1342 = vmatmul.bf16.gmra.mxu0 %v286
  %v1343 = vpop.f32.mrf.mxu0
  %v1344 = vadd.f32 %v1330, %v1343
  %v1345 = vpop.f32.mrf.mxu0
  %v1346 = vadd.f32 %v1332, %v1345
  %1347 = vdwg.mxu0
  %1348 = vmatpush.bf16.msra.mxu0 %v974
  %1349 = vmatpush.bf16.msra.mxu0 %v972
  %1350 = vmatpush.bf16.msra.mxu0 %v970
  %1351 = vmatpush.bf16.msra.mxu0 %v968
  %1352 = vmatpush.bf16.msra.mxu0 %v966
  %1353 = vmatpush.bf16.msra.mxu0 %v964
  %1354 = vmatpush.bf16.msra.mxu0 %v962
  %1355 = vmatpush.bf16.msra.mxu0 %v960
  %1356 = vmatmul.bf16.gmra.mxu0 %v287
  %v1357 = vpop.f32.mrf.mxu0
  %v1358 = vadd.f32 %v1344, %v1357
  %v1359 = vpop.f32.mrf.mxu0
  %v1360 = vadd.f32 %v1346, %v1359
  %1361 = vdwg.mxu0
  %1362 = vmatpush.bf16.msra.mxu0 %v990
  %1363 = vmatpush.bf16.msra.mxu0 %v988
  %1364 = vmatpush.bf16.msra.mxu0 %v986
  %1365 = vmatpush.bf16.msra.mxu0 %v984
  %1366 = vmatpush.bf16.msra.mxu0 %v982
  %1367 = vmatpush.bf16.msra.mxu0 %v980
  %1368 = vmatpush.bf16.msra.mxu0 %v978
  %1369 = vmatpush.bf16.msra.mxu0 %v976
  %1370 = vmatmul.bf16.gmra.mxu0 %v288
  %v1371 = vpop.f32.mrf.mxu0
  %v1372 = vadd.f32 %v1358, %v1371
  %v1373 = vpop.f32.mrf.mxu0
  %v1374 = vadd.f32 %v1360, %v1373
  %1375 = vdwg.mxu0
  %1376 = vmatpush.bf16.msra.mxu0 %v1006
  %1377 = vmatpush.bf16.msra.mxu0 %v1004
  %1378 = vmatpush.bf16.msra.mxu0 %v1002
  %1379 = vmatpush.bf16.msra.mxu0 %v1000
  %1380 = vmatpush.bf16.msra.mxu0 %v998
  %1381 = vmatpush.bf16.msra.mxu0 %v996
  %1382 = vmatpush.bf16.msra.mxu0 %v994
  %1383 = vmatpush.bf16.msra.mxu0 %v992
  %1384 = vmatmul.bf16.gmra.mxu0 %v289
  %v1385 = vpop.f32.mrf.mxu0
  %v1386 = vadd.f32 %v1372, %v1385
  %v1387 = vpop.f32.mrf.mxu0
  %v1388 = vadd.f32 %v1374, %v1387
  %1389 = vdwg.mxu0
  %1390 = vmatpush.bf16.msra.mxu0 %v1022
  %1391 = vmatpush.bf16.msra.mxu0 %v1020
  %1392 = vmatpush.bf16.msra.mxu0 %v1018
  %1393 = vmatpush.bf16.msra.mxu0 %v1016
  %1394 = vmatpush.bf16.msra.mxu0 %v1014
  %1395 = vmatpush.bf16.msra.mxu0 %v1012
  %1396 = vmatpush.bf16.msra.mxu0 %v1010
  %1397 = vmatpush.bf16.msra.mxu0 %v1008
  %1398 = vmatmul.bf16.gmra.mxu0 %v290
  %v1399 = vpop.f32.mrf.mxu0
  %v1400 = vadd.f32 %v1386, %v1399
  %v1401 = vpop.f32.mrf.mxu0
  %v1402 = vadd.f32 %v1388, %v1401
  %1403 = vdwg.mxu0
  %1404 = vmatpush.bf16.msra.mxu0 %v1038
  %1405 = vmatpush.bf16.msra.mxu0 %v1036
  %1406 = vmatpush.bf16.msra.mxu0 %v1034
  %1407 = vmatpush.bf16.msra.mxu0 %v1032
  %1408 = vmatpush.bf16.msra.mxu0 %v1030
  %1409 = vmatpush.bf16.msra.mxu0 %v1028
  %1410 = vmatpush.bf16.msra.mxu0 %v1026
  %1411 = vmatpush.bf16.msra.mxu0 %v1024
  %1412 = vmatmul.bf16.gmra.mxu0 %v291
  %v1413 = vpop.f32.mrf.mxu0
  %v1414 = vadd.f32 %v1400, %v1413
  %v1415 = vpop.f32.mrf.mxu0
  %v1416 = vadd.f32 %v1402, %v1415
  %1417 = vdwg.mxu0
  %1418 = vmatpush.bf16.msra.mxu0 %v1054
  %1419 = vmatpush.bf16.msra.mxu0 %v1052
  %1420 = vmatpush.bf16.msra.mxu0 %v1050
  %1421 = vmatpush.bf16.msra.mxu0 %v1048
  %1422 = vmatpush.bf16.msra.mxu0 %v1046
  %1423 = vmatpush.bf16.msra.mxu0 %v1044
  %1424 = vmatpush.bf16.msra.mxu0 %v1042
  %1425 = vmatpush.bf16.msra.mxu0 %v1040
  %1426 = vmatmul.bf16.gmra.mxu0 %v292
  %v1427 = vpop.f32.mrf.mxu0
  %v1428 = vadd.f32 %v1414, %v1427
  %v1429 = vpop.f32.mrf.mxu0
  %v1430 = vadd.f32 %v1416, %v1429
  %1431 = vdwg.mxu0
  %1432 = vmatpush.bf16.msra.mxu0 %v1070
  %1433 = vmatpush.bf16.msra.mxu0 %v1068
  %1434 = vmatpush.bf16.msra.mxu0 %v1066
  %1435 = vmatpush.bf16.msra.mxu0 %v1064
  %1436 = vmatpush.bf16.msra.mxu0 %v1062
  %1437 = vmatpush.bf16.msra.mxu0 %v1060
  %1438 = vmatpush.bf16.msra.mxu0 %v1058
  %1439 = vmatpush.bf16.msra.mxu0 %v1056
  %1440 = vmatmul.bf16.gmra.mxu0 %v293
  %v1441 = vpop.f32.mrf.mxu0
  %v1442 = vadd.f32 %v1428, %v1441
  %v1443 = vpop.f32.mrf.mxu0
  %v1444 = vadd.f32 %v1430, %v1443
  %1445 = vdwg.mxu0
  %1446 = vmatpush.bf16.msra.mxu0 %v1086
  %1447 = vmatpush.bf16.msra.mxu0 %v1084
  %1448 = vmatpush.bf16.msra.mxu0 %v1082
  %1449 = vmatpush.bf16.msra.mxu0 %v1080
  %1450 = vmatpush.bf16.msra.mxu0 %v1078
  %1451 = vmatpush.bf16.msra.mxu0 %v1076
  %1452 = vmatpush.bf16.msra.mxu0 %v1074
  %1453 = vmatpush.bf16.msra.mxu0 %v1072
  %1454 = vmatmul.bf16.gmra.mxu0 %v294
  %v1455 = vpop.f32.mrf.mxu0
  %v1456 = vadd.f32 %v1442, %v1455
  %v1457 = vpop.f32.mrf.mxu0
  %v1458 = vadd.f32 %v1444, %v1457
  %1459 = vdwg.mxu0
  %1460 = vmatpush.bf16.msra.mxu0 0
  %1461 = vmatpush.bf16.msra.mxu0 0
  %1462 = vmatpush.bf16.msra.mxu0 0
  %1463 = vmatpush.bf16.msra.mxu0 0
  %1464 = vmatpush.bf16.msra.mxu0 0
  %1465 = vmatpush.bf16.msra.mxu0 0
  %1466 = vmatpush.bf16.msra.mxu0 %v1090
  %1467 = vmatpush.bf16.msra.mxu0 %v1088
  %1468 = vmatmul.bf16.gmra.mxu0 %v1290
  %v1469 = vpop.f32.mrf.mxu0
  %v1470 = vadd.f32 %v1456, %v1469
  %v1471 = vpop.f32.mrf.mxu0
  %v1472 = vadd.f32 %v1458, %v1471
  %1473 = vdwg.mxu0
  %1474 = vmatpush.bf16.msra.mxu0 %v911
  %1475 = vmatpush.bf16.msra.mxu0 %v909
  %1476 = vmatpush.bf16.msra.mxu0 %v907
  %1477 = vmatpush.bf16.msra.mxu0 %v905
  %1478 = vmatpush.bf16.msra.mxu0 %v903
  %1479 = vmatpush.bf16.msra.mxu0 %v901
  %1480 = vmatpush.bf16.msra.mxu0 %v899
  %1481 = vmatpush.bf16.msra.mxu0 %v897
  %1482 = vmatmul.bf16.gmra.mxu0 %v283
  %v1483 = vpop.f32.mrf.mxu0
  %v1484 = vadd.f32 %v240, %v1483
  %v1485 = vpop.f32.mrf.mxu0
  %v1486 = vadd.f32 %v240, %v1485
  %1487 = vdwg.mxu0
  %1488 = vmatpush.bf16.msra.mxu0 %v927
  %1489 = vmatpush.bf16.msra.mxu0 %v925
  %1490 = vmatpush.bf16.msra.mxu0 %v923
  %1491 = vmatpush.bf16.msra.mxu0 %v921
  %1492 = vmatpush.bf16.msra.mxu0 %v919
  %1493 = vmatpush.bf16.msra.mxu0 %v917
  %1494 = vmatpush.bf16.msra.mxu0 %v915
  %1495 = vmatpush.bf16.msra.mxu0 %v913
  %1496 = vmatmul.bf16.gmra.mxu0 %v284
  %v1497 = vpop.f32.mrf.mxu0
  %v1498 = vadd.f32 %v1484, %v1497
  %v1499 = vpop.f32.mrf.mxu0
  %v1500 = vadd.f32 %v1486, %v1499
  %1501 = vdwg.mxu0
  %1502 = vmatpush.bf16.msra.mxu0 %v943
  %1503 = vmatpush.bf16.msra.mxu0 %v941
  %1504 = vmatpush.bf16.msra.mxu0 %v939
  %1505 = vmatpush.bf16.msra.mxu0 %v937
  %1506 = vmatpush.bf16.msra.mxu0 %v935
  %1507 = vmatpush.bf16.msra.mxu0 %v933
  %1508 = vmatpush.bf16.msra.mxu0 %v931
  %1509 = vmatpush.bf16.msra.mxu0 %v929
  %1510 = vmatmul.bf16.gmra.mxu0 %v285
  %v1511 = vpop.f32.mrf.mxu0
  %v1512 = vadd.f32 %v1498, %v1511
  %v1513 = vpop.f32.mrf.mxu0
  %v1514 = vadd.f32 %v1500, %v1513
  %1515 = vdwg.mxu0
  %1516 = vmatpush.bf16.msra.mxu0 %v959
  %1517 = vmatpush.bf16.msra.mxu0 %v957
  %1518 = vmatpush.bf16.msra.mxu0 %v955
  %1519 = vmatpush.bf16.msra.mxu0 %v953
  %1520 = vmatpush.bf16.msra.mxu0 %v951
  %1521 = vmatpush.bf16.msra.mxu0 %v949
  %1522 = vmatpush.bf16.msra.mxu0 %v947
  %1523 = vmatpush.bf16.msra.mxu0 %v945
  %1524 = vmatmul.bf16.gmra.mxu0 %v286
  %v1525 = vpop.f32.mrf.mxu0
  %v1526 = vadd.f32 %v1512, %v1525
  %v1527 = vpop.f32.mrf.mxu0
  %v1528 = vadd.f32 %v1514, %v1527
  %1529 = vdwg.mxu0
  %1530 = vmatpush.bf16.msra.mxu0 %v975
  %1531 = vmatpush.bf16.msra.mxu0 %v973
  %1532 = vmatpush.bf16.msra.mxu0 %v971
  %1533 = vmatpush.bf16.msra.mxu0 %v969
  %1534 = vmatpush.bf16.msra.mxu0 %v967
  %1535 = vmatpush.bf16.msra.mxu0 %v965
  %1536 = vmatpush.bf16.msra.mxu0 %v963
  %1537 = vmatpush.bf16.msra.mxu0 %v961
  %1538 = vmatmul.bf16.gmra.mxu0 %v287
  %v1539 = vpop.f32.mrf.mxu0
  %v1540 = vadd.f32 %v1526, %v1539
  %v1541 = vpop.f32.mrf.mxu0
  %v1542 = vadd.f32 %v1528, %v1541
  %1543 = vdwg.mxu0
  %1544 = vmatpush.bf16.msra.mxu0 %v991
  %1545 = vmatpush.bf16.msra.mxu0 %v989
  %1546 = vmatpush.bf16.msra.mxu0 %v987
  %1547 = vmatpush.bf16.msra.mxu0 %v985
  %1548 = vmatpush.bf16.msra.mxu0 %v983
  %1549 = vmatpush.bf16.msra.mxu0 %v981
  %1550 = vmatpush.bf16.msra.mxu0 %v979
  %1551 = vmatpush.bf16.msra.mxu0 %v977
  %1552 = vmatmul.bf16.gmra.mxu0 %v288
  %v1553 = vpop.f32.mrf.mxu0
  %v1554 = vadd.f32 %v1540, %v1553
  %v1555 = vpop.f32.mrf.mxu0
  %v1556 = vadd.f32 %v1542, %v1555
  %1557 = vdwg.mxu0
  %1558 = vmatpush.bf16.msra.mxu0 %v1007
  %1559 = vmatpush.bf16.msra.mxu0 %v1005
  %1560 = vmatpush.bf16.msra.mxu0 %v1003
  %1561 = vmatpush.bf16.msra.mxu0 %v1001
  %1562 = vmatpush.bf16.msra.mxu0 %v999
  %1563 = vmatpush.bf16.msra.mxu0 %v997
  %1564 = vmatpush.bf16.msra.mxu0 %v995
  %1565 = vmatpush.bf16.msra.mxu0 %v993
  %1566 = vmatmul.bf16.gmra.mxu0 %v289
  %v1567 = vpop.f32.mrf.mxu0
  %v1568 = vadd.f32 %v1554, %v1567
  %v1569 = vpop.f32.mrf.mxu0
  %v1570 = vadd.f32 %v1556, %v1569
  %1571 = vdwg.mxu0
  %1572 = vmatpush.bf16.msra.mxu0 %v1023
  %1573 = vmatpush.bf16.msra.mxu0 %v1021
  %1574 = vmatpush.bf16.msra.mxu0 %v1019
  %1575 = vmatpush.bf16.msra.mxu0 %v1017
  %1576 = vmatpush.bf16.msra.mxu0 %v1015
  %1577 = vmatpush.bf16.msra.mxu0 %v1013
  %1578 = vmatpush.bf16.msra.mxu0 %v1011
  %1579 = vmatpush.bf16.msra.mxu0 %v1009
  %1580 = vmatmul.bf16.gmra.mxu0 %v290
  %v1581 = vpop.f32.mrf.mxu0
  %v1582 = vadd.f32 %v1568, %v1581
  %v1583 = vpop.f32.mrf.mxu0
  %v1584 = vadd.f32 %v1570, %v1583
  %1585 = vdwg.mxu0
  %1586 = vmatpush.bf16.msra.mxu0 %v1039
  %1587 = vmatpush.bf16.msra.mxu0 %v1037
  %1588 = vmatpush.bf16.msra.mxu0 %v1035
  %1589 = vmatpush.bf16.msra.mxu0 %v1033
  %1590 = vmatpush.bf16.msra.mxu0 %v1031
  %1591 = vmatpush.bf16.msra.mxu0 %v1029
  %1592 = vmatpush.bf16.msra.mxu0 %v1027
  %1593 = vmatpush.bf16.msra.mxu0 %v1025
  %1594 = vmatmul.bf16.gmra.mxu0 %v291
  %v1595 = vpop.f32.mrf.mxu0
  %v1596 = vadd.f32 %v1582, %v1595
  %v1597 = vpop.f32.mrf.mxu0
  %v1598 = vadd.f32 %v1584, %v1597
  %1599 = vdwg.mxu0
  %1600 = vmatpush.bf16.msra.mxu0 %v1055
  %1601 = vmatpush.bf16.msra.mxu0 %v1053
  %1602 = vmatpush.bf16.msra.mxu0 %v1051
  %1603 = vmatpush.bf16.msra.mxu0 %v1049
  %1604 = vmatpush.bf16.msra.mxu0 %v1047
  %1605 = vmatpush.bf16.msra.mxu0 %v1045
  %1606 = vmatpush.bf16.msra.mxu0 %v1043
  %1607 = vmatpush.bf16.msra.mxu0 %v1041
  %1608 = vmatmul.bf16.gmra.mxu0 %v292
  %v1609 = vpop.f32.mrf.mxu0
  %v1610 = vadd.f32 %v1596, %v1609
  %v1611 = vpop.f32.mrf.mxu0
  %v1612 = vadd.f32 %v1598, %v1611
  %1613 = vdwg.mxu0
  %1614 = vmatpush.bf16.msra.mxu0 %v1071
  %1615 = vmatpush.bf16.msra.mxu0 %v1069
  %1616 = vmatpush.bf16.msra.mxu0 %v1067
  %1617 = vmatpush.bf16.msra.mxu0 %v1065
  %1618 = vmatpush.bf16.msra.mxu0 %v1063
  %1619 = vmatpush.bf16.msra.mxu0 %v1061
  %1620 = vmatpush.bf16.msra.mxu0 %v1059
  %1621 = vmatpush.bf16.msra.mxu0 %v1057
  %1622 = vmatmul.bf16.gmra.mxu0 %v293
  %v1623 = vpop.f32.mrf.mxu0
  %v1624 = vadd.f32 %v1610, %v1623
  %v1625 = vpop.f32.mrf.mxu0
  %v1626 = vadd.f32 %v1612, %v1625
  %1627 = vdwg.mxu0
  %1628 = vmatpush.bf16.msra.mxu0 %v1087
  %1629 = vmatpush.bf16.msra.mxu0 %v1085
  %1630 = vmatpush.bf16.msra.mxu0 %v1083
  %1631 = vmatpush.bf16.msra.mxu0 %v1081
  %1632 = vmatpush.bf16.msra.mxu0 %v1079
  %1633 = vmatpush.bf16.msra.mxu0 %v1077
  %1634 = vmatpush.bf16.msra.mxu0 %v1075
  %1635 = vmatpush.bf16.msra.mxu0 %v1073
  %1636 = vmatmul.bf16.gmra.mxu0 %v294
  %v1637 = vpop.f32.mrf.mxu0
  %v1638 = vadd.f32 %v1624, %v1637
  %v1639 = vpop.f32.mrf.mxu0
  %v1640 = vadd.f32 %v1626, %v1639
  %1641 = vdwg.mxu0
  %1642 = vmatpush.bf16.msra.mxu0 0
  %1643 = vmatpush.bf16.msra.mxu0 0
  %1644 = vmatpush.bf16.msra.mxu0 0
  %1645 = vmatpush.bf16.msra.mxu0 0
  %1646 = vmatpush.bf16.msra.mxu0 0
  %1647 = vmatpush.bf16.msra.mxu0 0
  %1648 = vmatpush.bf16.msra.mxu0 %v1091
  %1649 = vmatpush.bf16.msra.mxu0 %v1089
  %1650 = vmatmul.bf16.gmra.mxu0 %v1290
  %v1651 = vpop.f32.mrf.mxu0
  %v1652 = vadd.f32 %v1638, %v1651
  %v1653 = vpop.f32.mrf.mxu0
  %v1654 = vadd.f32 %v1640, %v1653
  %1655 = vdwg.mxu0
  %v1656 = vmax.f32 %v1470, 0.0
  %v1657 = vmax.f32 %v1652, 0.0
  %v1658 = vmax.f32 %v1472, 0.0
  %v1659 = vmax.f32 %v1654, 0.0
  %v1660 = vpack.c.bf16 %v1658, %v1656
  %v1661 = vpack.c.bf16 %v1659, %v1657
  %v1662 = vld [vmem:[%s3] sm:$0xf]
  %v1663 = vld [vmem:[%s3 + $0x4] sm:$0xf]
  %v1664 = vld [vmem:[%s3 + $0x8] sm:$0xf]
  %v1665 = vld [vmem:[%s3 + $0xc] sm:$0xf]
  %v1666 = vld [vmem:[%s3 + $0x10] sm:$0xf]
  %v1667 = vld [vmem:[%s3 + $0x14] sm:$0xf]
  %v1668 = vld [vmem:[%s3 + $0x18] sm:$0xf]
  %v1669 = vld [vmem:[%s3 + $0x1c] sm:$0xf]
  %v1670 = vld [vmem:[%s3 + $0x20] sm:$0xf]
  %v1671 = vld [vmem:[%s3 + $0x24] sm:$0xf]
  %v1672 = vld [vmem:[%s3 + $0x28] sm:$0xf]
  %v1673 = vld [vmem:[%s3 + $0x2c] sm:$0xf]
  %v1674 = vld [vmem:[%s3 + $0x30] sm:$0xf]
  %v1675 = vld [vmem:[%s3 + $0x34] sm:$0xf]
  %v1676 = vld [vmem:[%s3 + $0x38] sm:$0xf]
  %v1677 = vld [vmem:[%s3 + $0x3c] sm:$0xf]
  %v1678 = vld [vmem:[%s3 + $0x40] sm:$0xf]
  %v1679 = vld [vmem:[%s3 + $0x44] sm:$0xf]
  %v1680 = vld [vmem:[%s3 + $0x48] sm:$0xf]
  %v1681 = vld [vmem:[%s3 + $0x4c] sm:$0xf]
  %v1682 = vld [vmem:[%s3 + $0x50] sm:$0xf]
  %v1683 = vld [vmem:[%s3 + $0x54] sm:$0xf]
  %v1684 = vld [vmem:[%s3 + $0x58] sm:$0xf]
  %v1685 = vld [vmem:[%s3 + $0x5c] sm:$0xf]
  %v1686 = vld [vmem:[%s3 + $0x60] sm:$0xf]
  %v1687 = vld [vmem:[%s3 + $0x64] sm:$0xf]
  %v1688 = vld [vmem:[%s3 + $0x68] sm:$0xf]
  %v1689 = vld [vmem:[%s3 + $0x6c] sm:$0xf]
  %v1690 = vld [vmem:[%s3 + $0x70] sm:$0xf]
  %v1691 = vld [vmem:[%s3 + $0x74] sm:$0xf]
  %v1692 = vld [vmem:[%s3 + $0x78] sm:$0xf]
  %v1693 = vld [vmem:[%s3 + $0x7c] sm:$0xf]
  %v1694 = vld [vmem:[%s4] sm:$0x1]
  %v1696 = vperm.slane %v1694, 0
  %v1730 = vunpack.c.l.b16 %v1662
  %v1731 = vunpack.c.l.b16 %v1663
  %v1732 = vunpack.c.l.b16 %v1664
  %v1733 = vunpack.c.l.b16 %v1665
  %v1734 = vunpack.c.l.b16 %v1666
  %v1735 = vunpack.c.l.b16 %v1667
  %v1736 = vunpack.c.l.b16 %v1668
  %v1737 = vunpack.c.l.b16 %v1669
  %v1738 = vunpack.c.l.b16 %v1670
  %v1739 = vunpack.c.l.b16 %v1671
  %v1740 = vunpack.c.l.b16 %v1672
  %v1741 = vunpack.c.l.b16 %v1673
  %v1742 = vunpack.c.l.b16 %v1674
  %v1743 = vunpack.c.l.b16 %v1675
  %v1744 = vunpack.c.l.b16 %v1676
  %v1745 = vunpack.c.l.b16 %v1677
  %v1746 = vunpack.c.l.b16 %v1678
  %v1747 = vunpack.c.l.b16 %v1679
  %v1748 = vunpack.c.l.b16 %v1680
  %v1749 = vunpack.c.l.b16 %v1681
  %v1750 = vunpack.c.l.b16 %v1682
  %v1751 = vunpack.c.l.b16 %v1683
  %v1752 = vunpack.c.l.b16 %v1684
  %v1753 = vunpack.c.l.b16 %v1685
  %v1754 = vunpack.c.l.b16 %v1686
  %v1755 = vunpack.c.l.b16 %v1687
  %v1756 = vunpack.c.l.b16 %v1688
  %v1757 = vunpack.c.l.b16 %v1689
  %v1758 = vunpack.c.l.b16 %v1690
  %v1759 = vunpack.c.l.b16 %v1691
  %v1760 = vunpack.c.l.b16 %v1692
  %v1761 = vunpack.c.l.b16 %v1693
  %v1762 = vpack.c.b16 %v1731, %v1730
  %v1763 = vpack.c.b16 %v1733, %v1732
  %v1764 = vpack.c.b16 %v1735, %v1734
  %v1765 = vpack.c.b16 %v1737, %v1736
  %v1766 = vpack.c.b16 %v1739, %v1738
  %v1767 = vpack.c.b16 %v1741, %v1740
  %v1768 = vpack.c.b16 %v1743, %v1742
  %v1769 = vpack.c.b16 %v1745, %v1744
  %v1770 = vpack.c.b16 %v1747, %v1746
  %v1771 = vpack.c.b16 %v1749, %v1748
  %v1772 = vpack.c.b16 %v1751, %v1750
  %v1773 = vpack.c.b16 %v1753, %v1752
  %v1774 = vpack.c.b16 %v1755, %v1754
  %v1775 = vpack.c.b16 %v1757, %v1756
  %v1776 = vpack.c.b16 %v1759, %v1758
  %v1777 = vpack.c.b16 %v1761, %v1760
  %1794 = vmatpush.bf16.msra.mxu0 %v1769
  %1795 = vmatpush.bf16.msra.mxu0 %v1768
  %1796 = vmatpush.bf16.msra.mxu0 %v1767
  %1797 = vmatpush.bf16.msra.mxu0 %v1766
  %1798 = vmatpush.bf16.msra.mxu0 %v1765
  %1799 = vmatpush.bf16.msra.mxu0 %v1764
  %1800 = vmatpush.bf16.msra.mxu0 %v1763
  %1801 = vmatpush.bf16.msra.mxu0 %v1762
  %1802 = vmatmul.bf16.gmra.mxu0 %v1660
  %v1803 = vpop.f32.mrf.mxu0
  %v1804 = vadd.f32 %v1696, %v1803
  %v1805 = vpop.f32.mrf.mxu0
  %v1806 = vadd.f32 %v1696, %v1805
  %1807 = vdwg.mxu0
  %1808 = vmatpush.bf16.msra.mxu0 %v1777
  %1809 = vmatpush.bf16.msra.mxu0 %v1776
  %1810 = vmatpush.bf16.msra.mxu0 %v1775
  %1811 = vmatpush.bf16.msra.mxu0 %v1774
  %1812 = vmatpush.bf16.msra.mxu0 %v1773
  %1813 = vmatpush.bf16.msra.mxu0 %v1772
  %1814 = vmatpush.bf16.msra.mxu0 %v1771
  %1815 = vmatpush.bf16.msra.mxu0 %v1770
  %1816 = vmatmul.bf16.gmra.mxu0 %v1661
  %v1817 = vpop.f32.mrf.mxu0
  %v1818 = vadd.f32 %v1804, %v1817
  %v1819 = vpop.f32.mrf.mxu0
  %v1820 = vadd.f32 %v1806, %v1819
  %1821 = vdwg.mxu0
  %v1822 = vmax.f32 %v1818, 0.0
  %v1823 = vmax.f32 %v1820, 0.0
  %v1824 = vpack.c.bf16 %v1823, %v1822
  %v1825 = vld [vmem:[%s5] sm:$0xf]
  %v1826 = vld [vmem:[%s5 + $0x4] sm:$0xf]
  %v1827 = vld [vmem:[%s5 + $0x8] sm:$0xf]
  %v1828 = vld [vmem:[%s5 + $0xc] sm:$0xf]
  %v1829 = vld [vmem:[%s5 + $0x10] sm:$0xf]
  %v1830 = vld [vmem:[%s5 + $0x14] sm:$0xf]
  %v1831 = vld [vmem:[%s5 + $0x18] sm:$0xf]
  %v1832 = vld [vmem:[%s5 + $0x1c] sm:$0xf]
  %v1833 = vld [vmem:[%s5 + $0x20] sm:$0xf]
  %v1834 = vld [vmem:[%s5 + $0x24] sm:$0xf]
  %v1835 = vld [vmem:[%s5 + $0x28] sm:$0xf]
  %v1836 = vld [vmem:[%s5 + $0x2c] sm:$0xf]
  %v1837 = vld [vmem:[%s5 + $0x30] sm:$0xf]
  %v1838 = vld [vmem:[%s5 + $0x34] sm:$0xf]
  %v1839 = vld [vmem:[%s5 + $0x38] sm:$0xf]
  %v1840 = vld [vmem:[%s5 + $0x3c] sm:$0xf]
  %v1841 = vld [vmem:[%s6] sm:$0x1]
  %v1843 = vperm.slane %v1841, 0
  %v1861 = vunpack.c.l.b16 %v1825
  %v1862 = vunpack.c.l.b16 %v1826
  %v1863 = vunpack.c.l.b16 %v1827
  %v1864 = vunpack.c.l.b16 %v1828
  %v1865 = vunpack.c.l.b16 %v1829
  %v1866 = vunpack.c.l.b16 %v1830
  %v1867 = vunpack.c.l.b16 %v1831
  %v1868 = vunpack.c.l.b16 %v1832
  %v1869 = vunpack.c.l.b16 %v1833
  %v1870 = vunpack.c.l.b16 %v1834
  %v1871 = vunpack.c.l.b16 %v1835
  %v1872 = vunpack.c.l.b16 %v1836
  %v1873 = vunpack.c.l.b16 %v1837
  %v1874 = vunpack.c.l.b16 %v1838
  %v1875 = vunpack.c.l.b16 %v1839
  %v1876 = vunpack.c.l.b16 %v1840
  %v1877 = vpack.c.b16 %v1862, %v1861
  %v1878 = vpack.c.b16 %v1864, %v1863
  %v1879 = vpack.c.b16 %v1866, %v1865
  %v1880 = vpack.c.b16 %v1868, %v1867
  %v1881 = vpack.c.b16 %v1870, %v1869
  %v1882 = vpack.c.b16 %v1872, %v1871
  %v1883 = vpack.c.b16 %v1874, %v1873
  %v1884 = vpack.c.b16 %v1876, %v1875
  %1893 = vmatpush.bf16.msra.mxu0 %v1884
  %1894 = vmatpush.bf16.msra.mxu0 %v1883
  %1895 = vmatpush.bf16.msra.mxu0 %v1882
  %1896 = vmatpush.bf16.msra.mxu0 %v1881
  %1897 = vmatpush.bf16.msra.mxu0 %v1880
  %1898 = vmatpush.bf16.msra.mxu0 %v1879
  %1899 = vmatpush.bf16.msra.mxu0 %v1878
  %1900 = vmatpush.bf16.msra.mxu0 %v1877
  %1901 = vmatmul.bf16.gmra.mxu0 %v1824
  %v1902 = vpop.f32.mrf.mxu0
  %v1903 = vadd.f32 %v1843, %v1902
  %v1904 = vpop.f32.mrf.mxu0
  %v1905 = vadd.f32 %v1843, %v1904
  %1906 = vdwg.mxu0
  %vm1907 = vcmask 15360
  %v1908 = vsel %vm1907, %v1903, -inf
  %1909 = vmax.xlane.f32.xlu0 %v1908
  %v1910 = vpop.xlane.xlu0 %1909
  %v1911 = vsel %vm1907, %v1905, -inf
  %1912 = vmax.xlane.f32.xlu0 %v1911
  %v1913 = vpop.xlane.xlu0 %1912
  %v1914 = vsub.f32 %v1903, %v1910
  %v1915 = vsub.f32 %v1905, %v1913
  %v1916 = vmul.f32 %v1914, 1.442695
  %v1917 = vpow.pop %v1916
  %v1918 = vmul.f32 %v1915, 1.442695
  %v1919 = vpow.pop %v1918
  %v1920 = vsel %vm1907, %v1917, 0.0
  %1921 = vadd.xlane.f32.xlu0 %v1920
  %v1922 = vpop.xlane.xlu0 %1921
  %v1923 = vsel %vm1907, %v1919, 0.0
  %1924 = vadd.xlane.f32.xlu0 %v1923
  %v1925 = vpop.xlane.xlu0 %1924
  %v1926 = vrcp.pop %v1922
  %v1927 = vmul.f32 %v1922, %v1926
  %v1928 = vsub.f32 1.0, %v1927
  %v1929 = vmul.f32 %v1926, %v1928
  %v1930 = vadd.f32 %v1926, %v1929
  %vm1931 = vweird.f32 %v1922
  %vm1932 = vweird.f32 %v1926
  %vm1933 = vmor %vm1931, %vm1932
  %v1934 = vsel %vm1933, %v1926, %v1930
  %v1935 = vand.u32 2147483647, %v1922
  %vm1936 = vcmp.eq.f32.partialorder %v1935, 8.507059e+37
  %v1937 = vand.u32 %v1922, 2147483648
  %v1938 = vor.u32 1.1754944e-38, %v1937
  %v1939 = vsel %vm1936, %v1938, %v1934
  %v1940 = vmul.f32 %v1917, %v1939
  %v1941 = vrcp.pop %v1925
  %v1942 = vmul.f32 %v1925, %v1941
  %v1943 = vsub.f32 1.0, %v1942
  %v1944 = vmul.f32 %v1941, %v1943
  %v1945 = vadd.f32 %v1941, %v1944
  %vm1946 = vweird.f32 %v1925
  %vm1947 = vweird.f32 %v1941
  %vm1948 = vmor %vm1946, %vm1947
  %v1949 = vsel %vm1948, %v1941, %v1945
  %v1950 = vand.u32 2147483647, %v1925
  %vm1951 = vcmp.eq.f32.partialorder %v1950, 8.507059e+37
  %v1952 = vand.u32 %v1925, 2147483648
  %v1953 = vor.u32 1.1754944e-38, %v1952
  %v1954 = vsel %vm1951, %v1953, %v1949
  %v1955 = vmul.f32 %v1919, %v1954
  %1956 = vst.msk [vmem:[%s7] sm:$0xff] %vm1907, %v1940
  %1957 = vst.msk [vmem:[%s7 + $0x8] sm:$0xff] %vm1907, %v1955
  // Predicated region
  $region30: #{deep_cnn_forward.3} parent=0 // pred_check
    _
  $region31: #{deep_cnn_forward.3} parent=0 // pred_check_branch
    %1959 = sbr.rel (0) target = $region33
  $region32: #{deep_cnn_forward.3} parent=0 // pred_region
    _
  $region33: #{deep_cnn_forward.3} parent=0 // pred_fallthru
    _
  // Predicated region
  $region34: #{deep_cnn_forward.3} parent=0 // pred_check
    _
  $region35: #{deep_cnn_forward.3} parent=0 // pred_check_branch
    %1961 = sbr.rel (0) target = $region37
  $region36: #{deep_cnn_forward.3} parent=0 // pred_region
    _
  $region37: #{deep_cnn_forward.3} parent=0 // pred_fallthru
    _

</llo_original>
